<compile_context>
chip_gen: v7x
topology: tpu7x:2x2x1
jax: 0.10.0
libtpu: 0.0.40
codegen_flags: <defaults>
</compile_context>

<pallas_src>
import functools

import jax
import jax.numpy as jnp
from jax.experimental import pallas as pl
from jax.experimental.pallas import tpu as pltpu


def _round_up(x, m):
    return ((x + m - 1) // m) * m


def fc2_kernel(x_ref, w1_ref, b1_ref, w2_ref, b2_ref, w3_ref, b3_ref, y_ref,
               score_ref, feat_ref, *, num_classes):
    C = num_classes
    x = x_ref[...]                                                     # (TM, D) bf16

    # layer1: Linear + ReLU   (bf16 MXU operands, f32 accumulate, f32 elementwise)
    h1 = jnp.dot(x, w1_ref[...], preferred_element_type=jnp.float32) + b1_ref[...]
    h1 = jnp.maximum(h1, 0.0)

    # layer1 second Linear + ReLU  (feat = relu(relu(...)) == relu(...), idempotent)
    feat = jnp.dot(h1.astype(jnp.bfloat16), w2_ref[...],
                   preferred_element_type=jnp.float32) + b2_ref[...]
    feat = jnp.maximum(feat, 0.0)
    feat_ref[...] = feat.astype(jnp.bfloat16)                          # (TM, H_pad) bf16

    # last_layer: Linear -> logits (padded to C_pad lanes; padded cols are exactly 0)
    logits = jnp.dot(feat.astype(jnp.bfloat16), w3_ref[...],
                     preferred_element_type=jnp.float32) + b3_ref[...]  # (TM, C_pad)

    # cross_entropy (stable logsumexp over the C valid classes only)
    col = jax.lax.broadcasted_iota(jnp.int32, logits.shape, 1)          # (TM, C_pad)
    neg_big = jnp.float32(-1e30)
    masked = jnp.where(col < C, logits, neg_big)
    m = jnp.max(masked, axis=-1, keepdims=True)                         # (TM, 1)
    lse = m + jnp.log(jnp.sum(jnp.exp(masked - m), axis=-1, keepdims=True))

    y = y_ref[...]                                                      # (TM, 1) int32
    onehot = (col == y).astype(jnp.float32)                             # padded cols never hit
    tgt = jnp.sum(logits * onehot, axis=-1, keepdims=True)              # (TM, 1)
    per_example = lse - tgt                                             # (TM, 1)

    # lane-dense f32 output slab: lanes [0, C) = logits, lane C = per-example loss, rest 0.
    score_ref[...] = jnp.where(col < C, logits,
                               jnp.where(col == C, per_example, 0.0))


def fc2layers_forward(x, y, params, *, tm=1024):
    """x: (B, ...) -> flattened to (B, input_size). y: (B,) int labels.

    Returns dict with 'score' (B, C), 'loss' (scalar mean CE), 'feat' (B, 400),
    mirroring FC2Layers.forward with reduce=True, task_incremental=False.
    """
    # TODO(synk): task_incremental per-sample class-slice branch not implemented
    # (default task_incremental=False path is implemented).
    w1, b1, w2, b2, w3, b3 = params
    B = x.shape[0]
    D, H = w1.shape
    C = w3.shape[1]

    H_pad = _round_up(H, 128)            # 400 -> 512 : lane-dense feat / W2 / W3-K
    C_pad = _round_up(C + 1, 128)        # 10 -> 128  : lane-dense logits + loss lane

    # ---- batch tiling: TM multiple of 128 (full MXU M-height); v7x wants G >= 2 ----
    b128 = _round_up(B, 128)
    tm_eff = _round_up(max(tm, 128), 128)
    if b128 >= 256:
        # cap TM so B_pad / TM >= 2 -> both v7x TensorCores get work
        tm_eff = min(tm_eff, max(128, (b128 // 2) // 128 * 128))
    TM = min(tm_eff, b128)
    B_pad = _round_up(B, TM)
    G = B_pad // TM

    # ---- wrapper-side layout plumbing (zero padding is numerically inert) ----
    x2 = jnp.pad(x.reshape(B, D).astype(jnp.bfloat16), ((0, B_pad - B), (0, 0)))
    y2 = jnp.pad(y.reshape(B).astype(jnp.int32), (0, B_pad - B)).reshape(B_pad, 1)

    w1p = jnp.pad(w1, ((0, 0), (0, H_pad - H))).astype(jnp.bfloat16)
    b1p = jnp.pad(b1, (0, H_pad - H)).reshape(1, H_pad).astype(jnp.float32)
    w2p = jnp.pad(w2, ((0, H_pad - H), (0, H_pad - H))).astype(jnp.bfloat16)
    b2p = jnp.pad(b2, (0, H_pad - H)).reshape(1, H_pad).astype(jnp.float32)
    w3p = jnp.pad(w3, ((0, H_pad - H), (0, C_pad - C))).astype(jnp.bfloat16)
    b3p = jnp.pad(b3, (0, C_pad - C)).reshape(1, C_pad).astype(jnp.float32)

    flops = 2 * B_pad * (D * H_pad + H_pad * H_pad + H_pad * C_pad)
    bytes_accessed = (
        x2.size * 2 + y2.size * 4
        + (w1p.size + w2p.size + w3p.size) * 2
        + (b1p.size + b2p.size + b3p.size) * 4
        + B_pad * C_pad * 4          # f32 score slab
        + B_pad * H_pad * 2          # bf16 feat writeback
    )

    def resident(shape):
        # Constant index_map -> weights/biases stay VMEM-resident; single buffer.
        return pl.BlockSpec(shape, lambda i: (0, 0),
                            pipeline_mode=pl.Buffered(buffer_count=1))

    kernel = functools.partial(fc2_kernel, num_classes=C)

    score_slab, feat_pad = pl.pallas_call(
        kernel,
        grid=(G,),
        in_specs=[
            pl.BlockSpec((TM, D), lambda i: (i, 0)),     # x tile (pipelined)
            resident((D, H_pad)),                        # W1 (VMEM-resident)
            resident((1, H_pad)),                        # b1
            resident((H_pad, H_pad)),                    # W2
            resident((1, H_pad)),                        # b2
            resident((H_pad, C_pad)),                    # W3
            resident((1, C_pad)),                        # b3
            pl.BlockSpec((TM, 1), lambda i: (i, 0)),     # labels tile
        ],
        out_specs=(
            pl.BlockSpec((TM, C_pad), lambda i: (i, 0)),  # score slab (logits + loss lane)
            pl.BlockSpec((TM, H_pad), lambda i: (i, 0)),  # feat (padded, bf16)
        ),
        out_shape=(
            jax.ShapeDtypeStruct((B_pad, C_pad), jnp.float32),
            jax.ShapeDtypeStruct((B_pad, H_pad), jnp.bfloat16),
        ),
        compiler_params=pltpu.CompilerParams(
            dimension_semantics=("parallel",),
            vmem_limit_bytes=48 * 1024 * 1024,
        ),
        cost_estimate=pl.CostEstimate(
            flops=int(flops),
            transcendentals=int(B_pad * C_pad),
            bytes_accessed=int(bytes_accessed),
        ),
    )(x2, w1p, b1p, w2p, b2p, w3p, b3p, y2)

    score = score_slab[:B, :C]
    per_example = score_slab[:B, C]
    feat = feat_pad[:B, :H]
    loss = jnp.sum(per_example) / B
    return {"score": score, "loss": loss, "feat": feat}


def init_params(key, input_size=784, layer1_width=400, num_classes=10, num_datasets=1):
    """Deterministic init mimicking nn.Linear default (uniform +/- 1/sqrt(fan_in)).
    Weights returned as (in, out)."""
    out_dim = num_classes * num_datasets
    keys = jax.random.split(key, 6)

    def lin(kw, kb, fan_in, fan_out):
        bound = 1.0 / jnp.sqrt(fan_in)
        w = jax.random.uniform(kw, (fan_in, fan_out), jnp.float32, -bound, bound)
        b = jax.random.uniform(kb, (fan_out,), jnp.float32, -bound, bound)
        return w, b

    w1, b1 = lin(keys[0], keys[1], input_size, layer1_width)
    w2, b2 = lin(keys[2], keys[3], layer1_width, layer1_width)
    w3, b3 = lin(keys[4], keys[5], layer1_width, out_dim)
    return (w1, b1, w2, b2, w3, b3)


if __name__ == "__main__":
    key = jax.random.PRNGKey(0)
    k_params, k_x, k_y = jax.random.split(key, 3)

    B, input_size, num_classes = 8, 784, 10
    params = init_params(k_params, input_size=input_size, num_classes=num_classes)

    # x like a small MNIST batch (NCHW), flattened inside the wrapper to (B, 784).
    x = jax.random.normal(k_x, (B, 1, 28, 28), jnp.float32)
    y = jax.random.randint(k_y, (B,), 0, num_classes, jnp.int32)

    out = fc2layers_forward(x, y, params)
    jax.block_until_ready(out)

    # sanity: pure-JAX reference using the same bf16 MXU operands / f32 accumulation
    w1, b1, w2, b2, w3, b3 = params
    xf = x.reshape(B, input_size)
    h1 = jnp.maximum(
        jnp.dot(xf.astype(jnp.bfloat16), w1.astype(jnp.bfloat16),
                preferred_element_type=jnp.float32) + b1, 0.0)
    feat_ref = jnp.maximum(
        jnp.dot(h1.astype(jnp.bfloat16), w2.astype(jnp.bfloat16),
                preferred_element_type=jnp.float32) + b2, 0.0)
    logits_ref = jnp.dot(feat_ref.astype(jnp.bfloat16), w3.astype(jnp.bfloat16),
                         preferred_element_type=jnp.float32) + b3
    lse = jax.nn.logsumexp(logits_ref, axis=-1)
    loss_ref = jnp.mean(lse - logits_ref[jnp.arange(B), y])

    assert jnp.allclose(out["score"], logits_ref, atol=2e-3, rtol=2e-3)
    # feat is returned in bf16 now -> compare with bf16-level tolerance
    assert jnp.allclose(out["feat"].astype(jnp.float32), feat_ref, atol=1e-2, rtol=1e-2)
    assert jnp.allclose(out["loss"], loss_ref, atol=2e-3, rtol=2e-3)

    print("KERNEL_OK")
</pallas_src>

<mosaic_0001>
module attributes {stable_mosaic.version = 11 : i64} {
  func.func @fc2_kernel(%arg0: i32, %arg1: memref<128x784xbf16, #tpu.memory_space<vmem>>, %arg2: memref<784x512xbf16, #tpu.memory_space<vmem>>, %arg3: memref<1x512xf32, #tpu.memory_space<vmem>>, %arg4: memref<512x512xbf16, #tpu.memory_space<vmem>>, %arg5: memref<1x512xf32, #tpu.memory_space<vmem>>, %arg6: memref<512x128xbf16, #tpu.memory_space<vmem>>, %arg7: memref<1x128xf32, #tpu.memory_space<vmem>>, %arg8: memref<128x1xi32, #tpu.memory_space<vmem>>, %arg9: memref<128x128xf32, #tpu.memory_space<vmem>>, %arg10: memref<128x512xbf16, #tpu.memory_space<vmem>>) attributes {dimension_semantics = [#tpu.dimension_semantics<parallel>], iteration_bounds = array<i64: 1>, scalar_prefetch = 0 : i64, scratch_operands = 0 : i64, tpu.core_type = #tpu.core_type<tc>, window_params = [{transform_indices = @transform_0, window_bounds = array<i64: 128, 784>}, {pipeline_mode = #tpu.pipeline_mode<synchronous>, transform_indices = @transform_1, window_bounds = array<i64: 784, 512>}, {pipeline_mode = #tpu.pipeline_mode<synchronous>, transform_indices = @transform_2, window_bounds = array<i64: 1, 512>}, {pipeline_mode = #tpu.pipeline_mode<synchronous>, transform_indices = @transform_3, window_bounds = array<i64: 512, 512>}, {pipeline_mode = #tpu.pipeline_mode<synchronous>, transform_indices = @transform_4, window_bounds = array<i64: 1, 512>}, {pipeline_mode = #tpu.pipeline_mode<synchronous>, transform_indices = @transform_5, window_bounds = array<i64: 512, 128>}, {pipeline_mode = #tpu.pipeline_mode<synchronous>, transform_indices = @transform_6, window_bounds = array<i64: 1, 128>}, {transform_indices = @transform_7, window_bounds = array<i64: 128, 1>}, {transform_indices = @transform_8, window_bounds = array<i64: 128, 128>}, {transform_indices = @transform_9, window_bounds = array<i64: 128, 512>}]} {
    %c0 = arith.constant 0 : index
    %c0_0 = arith.constant 0 : index
    %0 = vector.load %arg1[%c0, %c0_0] : memref<128x784xbf16, #tpu.memory_space<vmem>>, vector<128x784xbf16>
    %c0_1 = arith.constant 0 : index
    %c0_2 = arith.constant 0 : index
    %1 = vector.load %arg2[%c0_1, %c0_2] : memref<784x512xbf16, #tpu.memory_space<vmem>>, vector<784x512xbf16>
    %cst = arith.constant dense<0.000000e+00> : vector<128x512xf32>
    %2 = tpu.matmul %0, %1, %cst {dimension_numbers = #tpu.dot_dimension_numbers<[1], [0], [0], [1], [0, 0, 1, 1], [], []>} : vector<128x784xbf16>, vector<784x512xbf16>, vector<128x512xf32> -> vector<128x512xf32>
    %c0_3 = arith.constant 0 : index
    %c0_4 = arith.constant 0 : index
    %3 = vector.load %arg3[%c0_3, %c0_4] : memref<1x512xf32, #tpu.memory_space<vmem>>, vector<1x512xf32>
    %4 = vector.broadcast %3 : vector<1x512xf32> to vector<128x512xf32>
    %5 = arith.addf %2, %4 : vector<128x512xf32>
    %cst_5 = arith.constant 0.000000e+00 : f32
    %6 = vector.broadcast %cst_5 : f32 to vector<128x512xf32>
    %7 = arith.maximumf %5, %6 : vector<128x512xf32>
    %8 = arith.truncf %7 : vector<128x512xf32> to vector<128x512xbf16>
    %c0_6 = arith.constant 0 : index
    %c0_7 = arith.constant 0 : index
    %9 = vector.load %arg4[%c0_6, %c0_7] : memref<512x512xbf16, #tpu.memory_space<vmem>>, vector<512x512xbf16>
    %cst_8 = arith.constant dense<0.000000e+00> : vector<128x512xf32>
    %10 = tpu.matmul %8, %9, %cst_8 {dimension_numbers = #tpu.dot_dimension_numbers<[1], [0], [0], [1], [0, 0, 1, 1], [], []>} : vector<128x512xbf16>, vector<512x512xbf16>, vector<128x512xf32> -> vector<128x512xf32>
    %c0_9 = arith.constant 0 : index
    %c0_10 = arith.constant 0 : index
    %11 = vector.load %arg5[%c0_9, %c0_10] : memref<1x512xf32, #tpu.memory_space<vmem>>, vector<1x512xf32>
    %12 = vector.broadcast %11 : vector<1x512xf32> to vector<128x512xf32>
    %13 = arith.addf %10, %12 : vector<128x512xf32>
    %cst_11 = arith.constant 0.000000e+00 : f32
    %14 = vector.broadcast %cst_11 : f32 to vector<128x512xf32>
    %15 = arith.maximumf %13, %14 : vector<128x512xf32>
    %16 = arith.truncf %15 : vector<128x512xf32> to vector<128x512xbf16>
    %c0_12 = arith.constant 0 : index
    %c0_13 = arith.constant 0 : index
    %17 = vector.load %arg10[%c0_12, %c0_13] : memref<128x512xbf16, #tpu.memory_space<vmem>>, vector<128x512xbf16>
    tpu.vector_store %arg10[%c0_12, %c0_13], %16 {strides = array<i32>} : memref<128x512xbf16, #tpu.memory_space<vmem>>, vector<128x512xbf16>,
    %18 = arith.truncf %15 : vector<128x512xf32> to vector<128x512xbf16>
    %c0_14 = arith.constant 0 : index
    %c0_15 = arith.constant 0 : index
    %19 = vector.load %arg6[%c0_14, %c0_15] : memref<512x128xbf16, #tpu.memory_space<vmem>>, vector<512x128xbf16>
    %cst_16 = arith.constant dense<0.000000e+00> : vector<128x128xf32>
    %20 = tpu.matmul %18, %19, %cst_16 {dimension_numbers = #tpu.dot_dimension_numbers<[1], [0], [0], [1], [0, 0, 1, 1], [], []>} : vector<128x512xbf16>, vector<512x128xbf16>, vector<128x128xf32> -> vector<128x128xf32>
    %c0_17 = arith.constant 0 : index
    %c0_18 = arith.constant 0 : index
    %21 = vector.load %arg7[%c0_17, %c0_18] : memref<1x128xf32, #tpu.memory_space<vmem>>, vector<1x128xf32>
    %22 = vector.broadcast %21 : vector<1x128xf32> to vector<128x128xf32>
    %23 = arith.addf %20, %22 : vector<128x128xf32>
    %24 = tpu.iota {dimensions = array<i32: 1>} : vector<128x128xi32>
    %c10_i32 = arith.constant 10 : i32
    %25 = vector.broadcast %c10_i32 : i32 to vector<128x128xi32>
    %26 = arith.cmpi slt, %24, %25 : vector<128x128xi32>
    %cst_19 = arith.constant -1.000000e+30 : f32
    %27 = vector.broadcast %cst_19 : f32 to vector<128x128xf32>
    %28 = arith.select %26, %23, %27 : vector<128x128xi1>, vector<128x128xf32>
    %cst_20 = arith.constant dense<0xFF800000> : vector<128xf32>
    %29 = vector.multi_reduction <maximumf>, %28, %cst_20 [1] : vector<128x128xf32> to vector<128xf32>
    %30 = vector.shape_cast %29 : vector<128xf32> to vector<128x1xf32>
    %31 = vector.broadcast %30 : vector<128x1xf32> to vector<128x128xf32>
    %32 = arith.subf %28, %31 : vector<128x128xf32>
    %33 = math.exp %32 : vector<128x128xf32>
    %cst_21 = arith.constant dense<0.000000e+00> : vector<128xf32>
    %34 = vector.multi_reduction <add>, %33, %cst_21 [1] : vector<128x128xf32> to vector<128xf32>
    %35 = vector.shape_cast %34 : vector<128xf32> to vector<128x1xf32>
    %36 = math.log %35 : vector<128x1xf32>
    %37 = arith.addf %30, %36 : vector<128x1xf32>
    %c0_22 = arith.constant 0 : index
    %c0_23 = arith.constant 0 : index
    %38 = vector.load %arg8[%c0_22, %c0_23] : memref<128x1xi32, #tpu.memory_space<vmem>>, vector<128x1xi32>
    %39 = vector.broadcast %38 : vector<128x1xi32> to vector<128x128xi32>
    %40 = arith.cmpi eq, %24, %39 : vector<128x128xi32>
    %41 = arith.extui %40 : vector<128x128xi1> to vector<128x128xi32>
    %42 = arith.sitofp %41 : vector<128x128xi32> to vector<128x128xf32>
    %43 = arith.mulf %23, %42 : vector<128x128xf32>
    %cst_24 = arith.constant dense<0.000000e+00> : vector<128xf32>
    %44 = vector.multi_reduction <add>, %43, %cst_24 [1] : vector<128x128xf32> to vector<128xf32>
    %45 = vector.shape_cast %44 : vector<128xf32> to vector<128x1xf32>
    %46 = arith.subf %37, %45 : vector<128x1xf32>
    %c10_i32_25 = arith.constant 10 : i32
    %47 = vector.broadcast %c10_i32_25 : i32 to vector<128x128xi32>
    %48 = arith.cmpi slt, %24, %47 : vector<128x128xi32>
    %c10_i32_26 = arith.constant 10 : i32
    %49 = vector.broadcast %c10_i32_26 : i32 to vector<128x128xi32>
    %50 = arith.cmpi eq, %24, %49 : vector<128x128xi32>
    %cst_27 = arith.constant 0.000000e+00 : f32
    %51 = vector.shape_cast %46 : vector<128x1xf32> to vector<128x1xf32>
    %52 = vector.broadcast %51 : vector<128x1xf32> to vector<128x128xf32>
    %53 = vector.broadcast %cst_27 : f32 to vector<128x128xf32>
    %54 = arith.select %50, %52, %53 : vector<128x128xi1>, vector<128x128xf32>
    %55 = arith.select %48, %23, %54 : vector<128x128xi1>, vector<128x128xf32>
    %c0_28 = arith.constant 0 : index
    %c0_29 = arith.constant 0 : index
    %56 = vector.load %arg9[%c0_28, %c0_29] : memref<128x128xf32, #tpu.memory_space<vmem>>, vector<128x128xf32>
    tpu.vector_store %arg9[%c0_28, %c0_29], %55 {strides = array<i32>} : memref<128x128xf32, #tpu.memory_space<vmem>>, vector<128x128xf32>,
    return
  }
  func.func @transform_0(%arg0: i32) -> (i32, i32) {
    %c0_i32 = arith.constant 0 : i32
    %c0_i32_0 = arith.constant 0 : i32
    return %arg0, %c0_i32 : i32, i32
  }
  func.func @transform_1(%arg0: i32) -> (i32, i32) {
    %c0_i32 = arith.constant 0 : i32
    %c0_i32_0 = arith.constant 0 : i32
    %c0_i32_1 = arith.constant 0 : i32
    return %c0_i32, %c0_i32_0 : i32, i32
  }
  func.func @transform_2(%arg0: i32) -> (i32, i32) {
    %c0_i32 = arith.constant 0 : i32
    %c0_i32_0 = arith.constant 0 : i32
    %c0_i32_1 = arith.constant 0 : i32
    return %c0_i32, %c0_i32_0 : i32, i32
  }
  func.func @transform_3(%arg0: i32) -> (i32, i32) {
    %c0_i32 = arith.constant 0 : i32
    %c0_i32_0 = arith.constant 0 : i32
    %c0_i32_1 = arith.constant 0 : i32
    return %c0_i32, %c0_i32_0 : i32, i32
  }
  func.func @transform_4(%arg0: i32) -> (i32, i32) {
    %c0_i32 = arith.constant 0 : i32
    %c0_i32_0 = arith.constant 0 : i32
    %c0_i32_1 = arith.constant 0 : i32
    return %c0_i32, %c0_i32_0 : i32, i32
  }
  func.func @transform_5(%arg0: i32) -> (i32, i32) {
    %c0_i32 = arith.constant 0 : i32
    %c0_i32_0 = arith.constant 0 : i32
    %c0_i32_1 = arith.constant 0 : i32
    return %c0_i32, %c0_i32_0 : i32, i32
  }
  func.func @transform_6(%arg0: i32) -> (i32, i32) {
    %c0_i32 = arith.constant 0 : i32
    %c0_i32_0 = arith.constant 0 : i32
    %c0_i32_1 = arith.constant 0 : i32
    return %c0_i32, %c0_i32_0 : i32, i32
  }
  func.func @transform_7(%arg0: i32) -> (i32, i32) {
    %c0_i32 = arith.constant 0 : i32
    %c0_i32_0 = arith.constant 0 : i32
    return %arg0, %c0_i32 : i32, i32
  }
  func.func @transform_8(%arg0: i32) -> (i32, i32) {
    %c0_i32 = arith.constant 0 : i32
    %c0_i32_0 = arith.constant 0 : i32
    return %arg0, %c0_i32 : i32, i32
  }
  func.func @transform_9(%arg0: i32) -> (i32, i32) {
    %c0_i32 = arith.constant 0 : i32
    %c0_i32_0 = arith.constant 0 : i32
    return %arg0, %c0_i32 : i32, i32
  }
}

</mosaic_0001>

<llo_original>
// kernel: tpu_custom_call.1
$region0: #{tpu_custom_call.1}
  #allocation0 [shape = 'u32[]', space=smem, size = 0x4, offset = 0x4, fixed_abs, tag = 'smem constant byte address 0x4 - core index']
  #allocation1 [shape = 'u32[144,128]{1,0:T(1,128)}', space=vmem, size = 0x12000, scoped, tag = 'internal scratch']
  %s0 = inlined_call_operand.vmem [shape: bf16[128,784], index: 0, kind: input, shape index: {}]
  %s1 = inlined_call_operand.hbm [shape: bf16[784,512], index: 1, kind: input, shape index: {}]
  %s2 = inlined_call_operand.vmem [shape: f32[1,512], index: 2, kind: input, shape index: {}]
  %s3 = inlined_call_operand.hbm [shape: bf16[512,512], index: 3, kind: input, shape index: {}]
  %s4 = inlined_call_operand.vmem [shape: f32[1,512], index: 4, kind: input, shape index: {}]
  %s5 = inlined_call_operand.vmem [shape: bf16[512,128], index: 5, kind: input, shape index: {}]
  %s6 = inlined_call_operand.vmem [shape: f32[1,128], index: 6, kind: input, shape index: {}]
  %s7 = inlined_call_operand.vmem [shape: s32[128,1], index: 7, kind: input, shape index: {}]
  %s8 = inlined_call_operand.hbm [shape: f32[128,128], index: 8, kind: output, shape index: {0}]
  %s9 = inlined_call_operand.hbm [shape: bf16[128,512], index: 9, kind: output, shape index: {1}]
  %10 = xla_tuple %s8, %s9
  %s11 = sld [smem:[#allocation0]]
  $region58: #{tpu_custom_call.1} parent=0
    _
  %s13 = ssub.s32 1, %s11
  %s14 = scalar_select 0, %s13, %s11
  $region1: #{tpu_custom_call.1} parent=0
    #allocation2 [shape = 'u8[802816]{0}', space=vmem, size = 0xc4000, scoped, tag = 'input window, operand 1, single buffered']
    #allocation3 [shape = 's32[1]{0}', space=sflag, size = 0x4, scoped, tag = 'scoped memory for tpu_custom_call.1']
    #allocation4 [shape = 's32[1]{0}', space=sflag, size = 0x4, scoped, tag = 'scoped memory for tpu_custom_call.1']
    #allocation5 [shape = 'u8[524288]{0}', space=vmem, size = 0x80000, scoped, tag = 'input window, operand 3, single buffered']
    #allocation6 [shape = 's32[1]{0}', space=sflag, size = 0x4, scoped, tag = 'scoped memory for tpu_custom_call.1']
    #allocation7 [shape = 'u8[65536]{0}', space=vmem, size = 0x10000, scoped, tag = 'output window, operand 0, single buffered']
    #allocation8 [shape = 'u8[131072]{0}', space=vmem, size = 0x20000, scoped, tag = 'output window, operand 1, single buffered']
    #allocation9 [shape = 's32[1]{0}', space=sflag, size = 0x4, scoped, tag = 'scoped memory for tpu_custom_call.1']
    %15 = vsyncpa [#allocation3], 0
    %16 = vsyncpa [#allocation6], 0
    %17 = vsyncpa [#allocation4], 0
    %18 = vsyncpa [#allocation9], 0
    // Predicated region
    $region2: #{tpu_custom_call.1} parent=1 // pred_check
      _
    $region3: #{tpu_custom_call.1} parent=1 // pred_check_branch
      %20 = sbr.rel (0) target = $region5
    $region4: #{tpu_custom_call.1} parent=1 // pred_region
      _
    $region5: #{tpu_custom_call.1} parent=1 // pred_fallthru
      _
    // Predicated region
    $region6: #{tpu_custom_call.1} parent=1 // pred_check
      _
    $region7: #{tpu_custom_call.1} parent=1 // pred_check_branch
      %22 = sbr.rel (0) target = $region9
    $region8: #{tpu_custom_call.1} parent=1 // pred_region
      %s24 = ssub.s32 25088, 25088
      %25 = vsyncadd [#allocation3], %s24
      %s26 = sshll.u32 [#allocation2], 4
      %s27 = int_to_ptr.vmem [resolvable:$true] %s26
      %32 = dma.hbm_to_vmem [thread:$0]  %s1, 25088, %s27, [#allocation3], 256, 256, 16
    $region9: #{tpu_custom_call.1} parent=1 // pred_fallthru
      _
    // Predicated region
    $region10: #{tpu_custom_call.1} parent=1 // pred_check
      _
    $region11: #{tpu_custom_call.1} parent=1 // pred_check_branch
      %34 = sbr.rel (0) target = $region13
    $region12: #{tpu_custom_call.1} parent=1 // pred_region
      _
    $region13: #{tpu_custom_call.1} parent=1 // pred_fallthru
      _
    // Predicated region
    $region14: #{tpu_custom_call.1} parent=1 // pred_check
      _
    $region15: #{tpu_custom_call.1} parent=1 // pred_check_branch
      %36 = sbr.rel (0) target = $region17
    $region16: #{tpu_custom_call.1} parent=1 // pred_region
      %s38 = ssub.s32 16384, 16384
      %39 = vsyncadd [#allocation6], %s38
      %s40 = sshll.u32 [#allocation5], 4
      %s41 = int_to_ptr.vmem [resolvable:$true] %s40
      %46 = dma.hbm_to_vmem [thread:$0]  %s3, 16384, %s41, [#allocation6], 256, 256, 16
    $region17: #{tpu_custom_call.1} parent=1 // pred_fallthru
      _
    // Predicated region
    $region18: #{tpu_custom_call.1} parent=1 // pred_check
      _
    $region19: #{tpu_custom_call.1} parent=1 // pred_check_branch
      %48 = sbr.rel (0) target = $region21
    $region20: #{tpu_custom_call.1} parent=1 // pred_region
      _
    $region21: #{tpu_custom_call.1} parent=1 // pred_fallthru
      _
    // Predicated region
    $region22: #{tpu_custom_call.1} parent=1 // pred_check
      _
    $region23: #{tpu_custom_call.1} parent=1 // pred_check_branch
      %50 = sbr.rel (0) target = $region25
    $region24: #{tpu_custom_call.1} parent=1 // pred_region
      _
    $region25: #{tpu_custom_call.1} parent=1 // pred_fallthru
      _
    // Predicated region
    $region26: #{tpu_custom_call.1} parent=1 // pred_check
      _
    $region27: #{tpu_custom_call.1} parent=1 // pred_check_branch
      %52 = sbr.rel (0) target = $region29
    $region28: #{tpu_custom_call.1} parent=1 // pred_region
      _
    $region29: #{tpu_custom_call.1} parent=1 // pred_fallthru
      _
    // Predicated region
    $region30: #{tpu_custom_call.1} parent=1 // pred_check
      _
    $region31: #{tpu_custom_call.1} parent=1 // pred_check_branch
      %54 = sbr.rel (0) target = $region33
    $region32: #{tpu_custom_call.1} parent=1 // pred_region
      _
    $region33: #{tpu_custom_call.1} parent=1 // pred_fallthru
      _
    // Predicated region
    $region34: #{tpu_custom_call.1} parent=1 // pred_check
      _
    $region35: #{tpu_custom_call.1} parent=1 // pred_check_branch
      %56 = sbr.rel (0) target = $region37
    $region36: #{tpu_custom_call.1} parent=1 // pred_region
      %57 = dma.done [#allocation3], 25088
    $region37: #{tpu_custom_call.1} parent=1 // pred_fallthru
      _
    // Predicated region
    $region38: #{tpu_custom_call.1} parent=1 // pred_check
      _
    $region39: #{tpu_custom_call.1} parent=1 // pred_check_branch
      %59 = sbr.rel (0) target = $region41
    $region40: #{tpu_custom_call.1} parent=1 // pred_region
      %60 = dma.done [#allocation6], 16384
    $region41: #{tpu_custom_call.1} parent=1 // pred_fallthru
      _
    %v62 = vld [vmem:[%s0] sm:$0xff]
    %v63 = vld [vmem:[%s0 + $0x8] sm:$0xff]
    %v64 = vld [vmem:[%s0 + $0x10] sm:$0xff]
    %v65 = vld [vmem:[%s0 + $0x18] sm:$0xf]
    %v66 = vld [vmem:[%s0 + $0x1c] sm:$0xff]
    %v67 = vld [vmem:[%s0 + $0x24] sm:$0xff]
    %v68 = vld [vmem:[%s0 + $0x2c] sm:$0xff]
    %v69 = vld [vmem:[%s0 + $0x34] sm:$0xf]
    %v70 = vld [vmem:[%s0 + $0x38] sm:$0xff]
    %v71 = vld [vmem:[%s0 + $0x40] sm:$0xff]
    %v72 = vld [vmem:[%s0 + $0x48] sm:$0xff]
    %v73 = vld [vmem:[%s0 + $0x50] sm:$0xf]
    %v74 = vld [vmem:[%s0 + $0x54] sm:$0xff]
    %v75 = vld [vmem:[%s0 + $0x5c] sm:$0xff]
    %v76 = vld [vmem:[%s0 + $0x64] sm:$0xff]
    %v77 = vld [vmem:[%s0 + $0x6c] sm:$0xf]
    %v78 = vld [vmem:[%s0 + $0x70] sm:$0xff]
    %v79 = vld [vmem:[%s0 + $0x78] sm:$0xff]
    %v80 = vld [vmem:[%s0 + $0x80] sm:$0xff]
    %v81 = vld [vmem:[%s0 + $0x88] sm:$0xf]
    %v82 = vld [vmem:[%s0 + $0x8c] sm:$0xff]
    %v83 = vld [vmem:[%s0 + $0x94] sm:$0xff]
    %v84 = vld [vmem:[%s0 + $0x9c] sm:$0xff]
    %v85 = vld [vmem:[%s0 + $0xa4] sm:$0xf]
    %v86 = vld [vmem:[%s0 + $0xa8] sm:$0xff]
    %v87 = vld [vmem:[%s0 + $0xb0] sm:$0xff]
    %v88 = vld [vmem:[%s0 + $0xb8] sm:$0xff]
    %v89 = vld [vmem:[%s0 + $0xc0] sm:$0xf]
    %v90 = vld [vmem:[%s0 + $0xc4] sm:$0xff]
    %v91 = vld [vmem:[%s0 + $0xcc] sm:$0xff]
    %v92 = vld [vmem:[%s0 + $0xd4] sm:$0xff]
    %v93 = vld [vmem:[%s0 + $0xdc] sm:$0xf]
    %v94 = vld [vmem:[%s0 + $0xe0] sm:$0xff]
    %v95 = vld [vmem:[%s0 + $0xe8] sm:$0xff]
    %v96 = vld [vmem:[%s0 + $0xf0] sm:$0xff]
    %v97 = vld [vmem:[%s0 + $0xf8] sm:$0xf]
    %v98 = vld [vmem:[%s0 + $0xfc] sm:$0xff]
    %v99 = vld [vmem:[%s0 + $0x104] sm:$0xff]
    %v100 = vld [vmem:[%s0 + $0x10c] sm:$0xff]
    %v101 = vld [vmem:[%s0 + $0x114] sm:$0xf]
    %v102 = vld [vmem:[%s0 + $0x118] sm:$0xff]
    %v103 = vld [vmem:[%s0 + $0x120] sm:$0xff]
    %v104 = vld [vmem:[%s0 + $0x128] sm:$0xff]
    %v105 = vld [vmem:[%s0 + $0x130] sm:$0xf]
    %v106 = vld [vmem:[%s0 + $0x134] sm:$0xff]
    %v107 = vld [vmem:[%s0 + $0x13c] sm:$0xff]
    %v108 = vld [vmem:[%s0 + $0x144] sm:$0xff]
    %v109 = vld [vmem:[%s0 + $0x14c] sm:$0xf]
    %v110 = vld [vmem:[%s0 + $0x150] sm:$0xff]
    %v111 = vld [vmem:[%s0 + $0x158] sm:$0xff]
    %v112 = vld [vmem:[%s0 + $0x160] sm:$0xff]
    %v113 = vld [vmem:[%s0 + $0x168] sm:$0xf]
    %v114 = vld [vmem:[%s0 + $0x16c] sm:$0xff]
    %v115 = vld [vmem:[%s0 + $0x174] sm:$0xff]
    %v116 = vld [vmem:[%s0 + $0x17c] sm:$0xff]
    %v117 = vld [vmem:[%s0 + $0x184] sm:$0xf]
    %v118 = vld [vmem:[%s0 + $0x188] sm:$0xff]
    %v119 = vld [vmem:[%s0 + $0x190] sm:$0xff]
    %v120 = vld [vmem:[%s0 + $0x198] sm:$0xff]
    %v121 = vld [vmem:[%s0 + $0x1a0] sm:$0xf]
    %v122 = vld [vmem:[%s0 + $0x1a4] sm:$0xff]
    %v123 = vld [vmem:[%s0 + $0x1ac] sm:$0xff]
    %v124 = vld [vmem:[%s0 + $0x1b4] sm:$0xff]
    %v125 = vld [vmem:[%s0 + $0x1bc] sm:$0xf]
    %v126 = vld [vmem:[#allocation2] sm:$0xff]
    %v127 = vld [vmem:[#allocation2 + $0x8] sm:$0xff]
    %v128 = vld [vmem:[#allocation2 + $0x10] sm:$0xff]
    %v129 = vld [vmem:[#allocation2 + $0x18] sm:$0xff]
    %v130 = vld [vmem:[#allocation2 + $0x20] sm:$0xff]
    %v131 = vld [vmem:[#allocation2 + $0x28] sm:$0xff]
    %v132 = vld [vmem:[#allocation2 + $0x30] sm:$0xff]
    %v133 = vld [vmem:[#allocation2 + $0x38] sm:$0xff]
    %v134 = vld [vmem:[#allocation2 + $0x40] sm:$0xff]
    %v135 = vld [vmem:[#allocation2 + $0x48] sm:$0xff]
    %v136 = vld [vmem:[#allocation2 + $0x50] sm:$0xff]
    %v137 = vld [vmem:[#allocation2 + $0x58] sm:$0xff]
    %v138 = vld [vmem:[#allocation2 + $0x60] sm:$0xff]
    %v139 = vld [vmem:[#allocation2 + $0x68] sm:$0xff]
    %v140 = vld [vmem:[#allocation2 + $0x70] sm:$0xff]
    %v141 = vld [vmem:[#allocation2 + $0x78] sm:$0xff]
    %v142 = vld [vmem:[#allocation2 + $0x80] sm:$0xff]
    %v143 = vld [vmem:[#allocation2 + $0x88] sm:$0xff]
    %v144 = vld [vmem:[#allocation2 + $0x90] sm:$0xff]
    %v145 = vld [vmem:[#allocation2 + $0x98] sm:$0xff]
    %v146 = vld [vmem:[#allocation2 + $0xa0] sm:$0xff]
    %v147 = vld [vmem:[#allocation2 + $0xa8] sm:$0xff]
    %v148 = vld [vmem:[#allocation2 + $0xb0] sm:$0xff]
    %v149 = vld [vmem:[#allocation2 + $0xb8] sm:$0xff]
    %v150 = vld [vmem:[#allocation2 + $0xc0] sm:$0xff]
    %v151 = vld [vmem:[#allocation2 + $0xc8] sm:$0xff]
    %v152 = vld [vmem:[#allocation2 + $0xd0] sm:$0xff]
    %v153 = vld [vmem:[#allocation2 + $0xd8] sm:$0xff]
    %v154 = vld [vmem:[#allocation2 + $0xe0] sm:$0xff]
    %v155 = vld [vmem:[#allocation2 + $0xe8] sm:$0xff]
    %v156 = vld [vmem:[#allocation2 + $0xf0] sm:$0xff]
    %v157 = vld [vmem:[#allocation2 + $0xf8] sm:$0xff]
    %v158 = vld [vmem:[#allocation2 + $0x100] sm:$0xff]
    %v159 = vld [vmem:[#allocation2 + $0x108] sm:$0xff]
    %v160 = vld [vmem:[#allocation2 + $0x110] sm:$0xff]
    %v161 = vld [vmem:[#allocation2 + $0x118] sm:$0xff]
    %v162 = vld [vmem:[#allocation2 + $0x120] sm:$0xff]
    %v163 = vld [vmem:[#allocation2 + $0x128] sm:$0xff]
    %v164 = vld [vmem:[#allocation2 + $0x130] sm:$0xff]
    %v165 = vld [vmem:[#allocation2 + $0x138] sm:$0xff]
    %v166 = vld [vmem:[#allocation2 + $0x140] sm:$0xff]
    %v167 = vld [vmem:[#allocation2 + $0x148] sm:$0xff]
    %v168 = vld [vmem:[#allocation2 + $0x150] sm:$0xff]
    %v169 = vld [vmem:[#allocation2 + $0x158] sm:$0xff]
    %v170 = vld [vmem:[#allocation2 + $0x160] sm:$0xff]
    %v171 = vld [vmem:[#allocation2 + $0x168] sm:$0xff]
    %v172 = vld [vmem:[#allocation2 + $0x170] sm:$0xff]
    %v173 = vld [vmem:[#allocation2 + $0x178] sm:$0xff]
    %v174 = vld [vmem:[#allocation2 + $0x180] sm:$0xff]
    %v175 = vld [vmem:[#allocation2 + $0x188] sm:$0xff]
    %v176 = vld [vmem:[#allocation2 + $0x190] sm:$0xff]
    %v177 = vld [vmem:[#allocation2 + $0x198] sm:$0xff]
    %v178 = vld [vmem:[#allocation2 + $0x1a0] sm:$0xff]
    %v179 = vld [vmem:[#allocation2 + $0x1a8] sm:$0xff]
    %v180 = vld [vmem:[#allocation2 + $0x1b0] sm:$0xff]
    %v181 = vld [vmem:[#allocation2 + $0x1b8] sm:$0xff]
    %v182 = vld [vmem:[#allocation2 + $0x1c0] sm:$0xff]
    %v183 = vld [vmem:[#allocation2 + $0x1c8] sm:$0xff]
    %v184 = vld [vmem:[#allocation2 + $0x1d0] sm:$0xff]
    %v185 = vld [vmem:[#allocation2 + $0x1d8] sm:$0xff]
    %v186 = vld [vmem:[#allocation2 + $0x1e0] sm:$0xff]
    %v187 = vld [vmem:[#allocation2 + $0x1e8] sm:$0xff]
    %v188 = vld [vmem:[#allocation2 + $0x1f0] sm:$0xff]
    %v189 = vld [vmem:[#allocation2 + $0x1f8] sm:$0xff]
    %v190 = vld [vmem:[#allocation2 + $0x200] sm:$0xff]
    %v191 = vld [vmem:[#allocation2 + $0x208] sm:$0xff]
    %v192 = vld [vmem:[#allocation2 + $0x210] sm:$0xff]
    %v193 = vld [vmem:[#allocation2 + $0x218] sm:$0xff]
    %v194 = vld [vmem:[#allocation2 + $0x220] sm:$0xff]
    %v195 = vld [vmem:[#allocation2 + $0x228] sm:$0xff]
    %v196 = vld [vmem:[#allocation2 + $0x230] sm:$0xff]
    %v197 = vld [vmem:[#allocation2 + $0x238] sm:$0xff]
    %v198 = vld [vmem:[#allocation2 + $0x240] sm:$0xff]
    %v199 = vld [vmem:[#allocation2 + $0x248] sm:$0xff]
    %v200 = vld [vmem:[#allocation2 + $0x250] sm:$0xff]
    %v201 = vld [vmem:[#allocation2 + $0x258] sm:$0xff]
    %v202 = vld [vmem:[#allocation2 + $0x260] sm:$0xff]
    %v203 = vld [vmem:[#allocation2 + $0x268] sm:$0xff]
    %v204 = vld [vmem:[#allocation2 + $0x270] sm:$0xff]
    %v205 = vld [vmem:[#allocation2 + $0x278] sm:$0xff]
    %v206 = vld [vmem:[#allocation2 + $0x280] sm:$0xff]
    %v207 = vld [vmem:[#allocation2 + $0x288] sm:$0xff]
    %v208 = vld [vmem:[#allocation2 + $0x290] sm:$0xff]
    %v209 = vld [vmem:[#allocation2 + $0x298] sm:$0xff]
    %v210 = vld [vmem:[#allocation2 + $0x2a0] sm:$0xff]
    %v211 = vld [vmem:[#allocation2 + $0x2a8] sm:$0xff]
    %v212 = vld [vmem:[#allocation2 + $0x2b0] sm:$0xff]
    %v213 = vld [vmem:[#allocation2 + $0x2b8] sm:$0xff]
    %v214 = vld [vmem:[#allocation2 + $0x2c0] sm:$0xff]
    %v215 = vld [vmem:[#allocation2 + $0x2c8] sm:$0xff]
    %v216 = vld [vmem:[#allocation2 + $0x2d0] sm:$0xff]
    %v217 = vld [vmem:[#allocation2 + $0x2d8] sm:$0xff]
    %v218 = vld [vmem:[#allocation2 + $0x2e0] sm:$0xff]
    %v219 = vld [vmem:[#allocation2 + $0x2e8] sm:$0xff]
    %v220 = vld [vmem:[#allocation2 + $0x2f0] sm:$0xff]
    %v221 = vld [vmem:[#allocation2 + $0x2f8] sm:$0xff]
    %v222 = vld [vmem:[#allocation2 + $0x300] sm:$0xff]
    %v223 = vld [vmem:[#allocation2 + $0x308] sm:$0xff]
    %v224 = vld [vmem:[#allocation2 + $0x310] sm:$0xff]
    %v225 = vld [vmem:[#allocation2 + $0x318] sm:$0xff]
    %v226 = vld [vmem:[#allocation2 + $0x320] sm:$0xff]
    %v227 = vld [vmem:[#allocation2 + $0x328] sm:$0xff]
    %v228 = vld [vmem:[#allocation2 + $0x330] sm:$0xff]
    %v229 = vld [vmem:[#allocation2 + $0x338] sm:$0xff]
    %v230 = vld [vmem:[#allocation2 + $0x340] sm:$0xff]
    %v231 = vld [vmem:[#allocation2 + $0x348] sm:$0xff]
    %v232 = vld [vmem:[#allocation2 + $0x350] sm:$0xff]
    %v233 = vld [vmem:[#allocation2 + $0x358] sm:$0xff]
    %v234 = vld [vmem:[#allocation2 + $0x360] sm:$0xff]
    %v235 = vld [vmem:[#allocation2 + $0x368] sm:$0xff]
    %v236 = vld [vmem:[#allocation2 + $0x370] sm:$0xff]
    %v237 = vld [vmem:[#allocation2 + $0x378] sm:$0xff]
    %v238 = vld [vmem:[#allocation2 + $0x380] sm:$0xff]
    %v239 = vld [vmem:[#allocation2 + $0x388] sm:$0xff]
    %v240 = vld [vmem:[#allocation2 + $0x390] sm:$0xff]
    %v241 = vld [vmem:[#allocation2 + $0x398] sm:$0xff]
    %v242 = vld [vmem:[#allocation2 + $0x3a0] sm:$0xff]
    %v243 = vld [vmem:[#allocation2 + $0x3a8] sm:$0xff]
    %v244 = vld [vmem:[#allocation2 + $0x3b0] sm:$0xff]
    %v245 = vld [vmem:[#allocation2 + $0x3b8] sm:$0xff]
    %v246 = vld [vmem:[#allocation2 + $0x3c0] sm:$0xff]
    %v247 = vld [vmem:[#allocation2 + $0x3c8] sm:$0xff]
    %v248 = vld [vmem:[#allocation2 + $0x3d0] sm:$0xff]
    %v249 = vld [vmem:[#allocation2 + $0x3d8] sm:$0xff]
    %v250 = vld [vmem:[#allocation2 + $0x3e0] sm:$0xff]
    %v251 = vld [vmem:[#allocation2 + $0x3e8] sm:$0xff]
    %v252 = vld [vmem:[#allocation2 + $0x3f0] sm:$0xff]
    %v253 = vld [vmem:[#allocation2 + $0x3f8] sm:$0xff]
    %v254 = vld [vmem:[#allocation2 + $0x400] sm:$0xff]
    %v255 = vld [vmem:[#allocation2 + $0x408] sm:$0xff]
    %v256 = vld [vmem:[#allocation2 + $0x410] sm:$0xff]
    %v257 = vld [vmem:[#allocation2 + $0x418] sm:$0xff]
    %v258 = vld [vmem:[#allocation2 + $0x420] sm:$0xff]
    %v259 = vld [vmem:[#allocation2 + $0x428] sm:$0xff]
    %v260 = vld [vmem:[#allocation2 + $0x430] sm:$0xff]
    %v261 = vld [vmem:[#allocation2 + $0x438] sm:$0xff]
    %v262 = vld [vmem:[#allocation2 + $0x440] sm:$0xff]
    %v263 = vld [vmem:[#allocation2 + $0x448] sm:$0xff]
    %v264 = vld [vmem:[#allocation2 + $0x450] sm:$0xff]
    %v265 = vld [vmem:[#allocation2 + $0x458] sm:$0xff]
    %v266 = vld [vmem:[#allocation2 + $0x460] sm:$0xff]
    %v267 = vld [vmem:[#allocation2 + $0x468] sm:$0xff]
    %v268 = vld [vmem:[#allocation2 + $0x470] sm:$0xff]
    %v269 = vld [vmem:[#allocation2 + $0x478] sm:$0xff]
    %v270 = vld [vmem:[#allocation2 + $0x480] sm:$0xff]
    %v271 = vld [vmem:[#allocation2 + $0x488] sm:$0xff]
    %v272 = vld [vmem:[#allocation2 + $0x490] sm:$0xff]
    %v273 = vld [vmem:[#allocation2 + $0x498] sm:$0xff]
    %v274 = vld [vmem:[#allocation2 + $0x4a0] sm:$0xff]
    %v275 = vld [vmem:[#allocation2 + $0x4a8] sm:$0xff]
    %v276 = vld [vmem:[#allocation2 + $0x4b0] sm:$0xff]
    %v277 = vld [vmem:[#allocation2 + $0x4b8] sm:$0xff]
    %v278 = vld [vmem:[#allocation2 + $0x4c0] sm:$0xff]
    %v279 = vld [vmem:[#allocation2 + $0x4c8] sm:$0xff]
    %v280 = vld [vmem:[#allocation2 + $0x4d0] sm:$0xff]
    %v281 = vld [vmem:[#allocation2 + $0x4d8] sm:$0xff]
    %v282 = vld [vmem:[#allocation2 + $0x4e0] sm:$0xff]
    %v283 = vld [vmem:[#allocation2 + $0x4e8] sm:$0xff]
    %v284 = vld [vmem:[#allocation2 + $0x4f0] sm:$0xff]
    %v285 = vld [vmem:[#allocation2 + $0x4f8] sm:$0xff]
    %v286 = vld [vmem:[#allocation2 + $0x500] sm:$0xff]
    %v287 = vld [vmem:[#allocation2 + $0x508] sm:$0xff]
    %v288 = vld [vmem:[#allocation2 + $0x510] sm:$0xff]
    %v289 = vld [vmem:[#allocation2 + $0x518] sm:$0xff]
    %v290 = vld [vmem:[#allocation2 + $0x520] sm:$0xff]
    %v291 = vld [vmem:[#allocation2 + $0x528] sm:$0xff]
    %v292 = vld [vmem:[#allocation2 + $0x530] sm:$0xff]
    %v293 = vld [vmem:[#allocation2 + $0x538] sm:$0xff]
    %v294 = vld [vmem:[#allocation2 + $0x540] sm:$0xff]
    %v295 = vld [vmem:[#allocation2 + $0x548] sm:$0xff]
    %v296 = vld [vmem:[#allocation2 + $0x550] sm:$0xff]
    %v297 = vld [vmem:[#allocation2 + $0x558] sm:$0xff]
    %v298 = vld [vmem:[#allocation2 + $0x560] sm:$0xff]
    %v299 = vld [vmem:[#allocation2 + $0x568] sm:$0xff]
    %v300 = vld [vmem:[#allocation2 + $0x570] sm:$0xff]
    %v301 = vld [vmem:[#allocation2 + $0x578] sm:$0xff]
    %v302 = vld [vmem:[#allocation2 + $0x580] sm:$0xff]
    %v303 = vld [vmem:[#allocation2 + $0x588] sm:$0xff]
    %v304 = vld [vmem:[#allocation2 + $0x590] sm:$0xff]
    %v305 = vld [vmem:[#allocation2 + $0x598] sm:$0xff]
    %v306 = vld [vmem:[#allocation2 + $0x5a0] sm:$0xff]
    %v307 = vld [vmem:[#allocation2 + $0x5a8] sm:$0xff]
    %v308 = vld [vmem:[#allocation2 + $0x5b0] sm:$0xff]
    %v309 = vld [vmem:[#allocation2 + $0x5b8] sm:$0xff]
    %v310 = vld [vmem:[#allocation2 + $0x5c0] sm:$0xff]
    %v311 = vld [vmem:[#allocation2 + $0x5c8] sm:$0xff]
    %v312 = vld [vmem:[#allocation2 + $0x5d0] sm:$0xff]
    %v313 = vld [vmem:[#allocation2 + $0x5d8] sm:$0xff]
    %v314 = vld [vmem:[#allocation2 + $0x5e0] sm:$0xff]
    %v315 = vld [vmem:[#allocation2 + $0x5e8] sm:$0xff]
    %v316 = vld [vmem:[#allocation2 + $0x5f0] sm:$0xff]
    %v317 = vld [vmem:[#allocation2 + $0x5f8] sm:$0xff]
    %v318 = vld [vmem:[#allocation2 + $0x600] sm:$0xff]
    %v319 = vld [vmem:[#allocation2 + $0x608] sm:$0xff]
    %v320 = vld [vmem:[#allocation2 + $0x610] sm:$0xff]
    %v321 = vld [vmem:[#allocation2 + $0x618] sm:$0xff]
    %v322 = vld [vmem:[%s2] sm:$0xf]
    %v324 = vlaneseq
    %v325 = vshrl.u32 %v324, 7
    %v326 = vsub.s32 0, %v325
    %v327 = vrot.slane %v322, %v326
    %v328 = vlaneseq
    %v329 = vshrl.u32 %v328, 7
    %v330 = vsub.s32 1, %v329
    %v331 = vrot.slane %v322, %v330
    %v332 = vlaneseq
    %v333 = vshrl.u32 %v332, 7
    %v334 = vsub.s32 2, %v333
    %v335 = vrot.slane %v322, %v334
    %v336 = vlaneseq
    %v337 = vshrl.u32 %v336, 7
    %v338 = vsub.s32 3, %v337
    %v339 = vrot.slane %v322, %v338
    %v408 = vunpack.c.l.b16 %v62
    %v409 = vunpack.c.h.b16 %v62
    %v410 = vunpack.c.l.b16 %v63
    %v411 = vunpack.c.h.b16 %v63
    %v412 = vunpack.c.l.b16 %v64
    %v413 = vunpack.c.h.b16 %v64
    %v414 = vunpack.c.l.b16 %v65
    %v415 = vunpack.c.l.b16 %v66
    %v416 = vunpack.c.h.b16 %v66
    %v417 = vunpack.c.l.b16 %v67
    %v418 = vunpack.c.h.b16 %v67
    %v419 = vunpack.c.l.b16 %v68
    %v420 = vunpack.c.h.b16 %v68
    %v421 = vunpack.c.l.b16 %v69
    %v422 = vunpack.c.l.b16 %v70
    %v423 = vunpack.c.h.b16 %v70
    %v424 = vunpack.c.l.b16 %v71
    %v425 = vunpack.c.h.b16 %v71
    %v426 = vunpack.c.l.b16 %v72
    %v427 = vunpack.c.h.b16 %v72
    %v428 = vunpack.c.l.b16 %v73
    %v429 = vunpack.c.l.b16 %v74
    %v430 = vunpack.c.h.b16 %v74
    %v431 = vunpack.c.l.b16 %v75
    %v432 = vunpack.c.h.b16 %v75
    %v433 = vunpack.c.l.b16 %v76
    %v434 = vunpack.c.h.b16 %v76
    %v435 = vunpack.c.l.b16 %v77
    %v436 = vunpack.c.l.b16 %v78
    %v437 = vunpack.c.h.b16 %v78
    %v438 = vunpack.c.l.b16 %v79
    %v439 = vunpack.c.h.b16 %v79
    %v440 = vunpack.c.l.b16 %v80
    %v441 = vunpack.c.h.b16 %v80
    %v442 = vunpack.c.l.b16 %v81
    %v443 = vunpack.c.l.b16 %v82
    %v444 = vunpack.c.h.b16 %v82
    %v445 = vunpack.c.l.b16 %v83
    %v446 = vunpack.c.h.b16 %v83
    %v447 = vunpack.c.l.b16 %v84
    %v448 = vunpack.c.h.b16 %v84
    %v449 = vunpack.c.l.b16 %v85
    %v450 = vunpack.c.l.b16 %v86
    %v451 = vunpack.c.h.b16 %v86
    %v452 = vunpack.c.l.b16 %v87
    %v453 = vunpack.c.h.b16 %v87
    %v454 = vunpack.c.l.b16 %v88
    %v455 = vunpack.c.h.b16 %v88
    %v456 = vunpack.c.l.b16 %v89
    %v457 = vunpack.c.l.b16 %v90
    %v458 = vunpack.c.h.b16 %v90
    %v459 = vunpack.c.l.b16 %v91
    %v460 = vunpack.c.h.b16 %v91
    %v461 = vunpack.c.l.b16 %v92
    %v462 = vunpack.c.h.b16 %v92
    %v463 = vunpack.c.l.b16 %v93
    %v464 = vunpack.c.l.b16 %v94
    %v465 = vunpack.c.h.b16 %v94
    %v466 = vunpack.c.l.b16 %v95
    %v467 = vunpack.c.h.b16 %v95
    %v468 = vunpack.c.l.b16 %v96
    %v469 = vunpack.c.h.b16 %v96
    %v470 = vunpack.c.l.b16 %v97
    %v471 = vunpack.c.l.b16 %v98
    %v472 = vunpack.c.h.b16 %v98
    %v473 = vunpack.c.l.b16 %v99
    %v474 = vunpack.c.h.b16 %v99
    %v475 = vunpack.c.l.b16 %v100
    %v476 = vunpack.c.h.b16 %v100
    %v477 = vunpack.c.l.b16 %v101
    %v478 = vunpack.c.l.b16 %v102
    %v479 = vunpack.c.h.b16 %v102
    %v480 = vunpack.c.l.b16 %v103
    %v481 = vunpack.c.h.b16 %v103
    %v482 = vunpack.c.l.b16 %v104
    %v483 = vunpack.c.h.b16 %v104
    %v484 = vunpack.c.l.b16 %v105
    %v485 = vunpack.c.l.b16 %v106
    %v486 = vunpack.c.h.b16 %v106
    %v487 = vunpack.c.l.b16 %v107
    %v488 = vunpack.c.h.b16 %v107
    %v489 = vunpack.c.l.b16 %v108
    %v490 = vunpack.c.h.b16 %v108
    %v491 = vunpack.c.l.b16 %v109
    %v492 = vunpack.c.l.b16 %v110
    %v493 = vunpack.c.h.b16 %v110
    %v494 = vunpack.c.l.b16 %v111
    %v495 = vunpack.c.h.b16 %v111
    %v496 = vunpack.c.l.b16 %v112
    %v497 = vunpack.c.h.b16 %v112
    %v498 = vunpack.c.l.b16 %v113
    %v499 = vunpack.c.l.b16 %v114
    %v500 = vunpack.c.h.b16 %v114
    %v501 = vunpack.c.l.b16 %v115
    %v502 = vunpack.c.h.b16 %v115
    %v503 = vunpack.c.l.b16 %v116
    %v504 = vunpack.c.h.b16 %v116
    %v505 = vunpack.c.l.b16 %v117
    %v506 = vunpack.c.l.b16 %v118
    %v507 = vunpack.c.h.b16 %v118
    %v508 = vunpack.c.l.b16 %v119
    %v509 = vunpack.c.h.b16 %v119
    %v510 = vunpack.c.l.b16 %v120
    %v511 = vunpack.c.h.b16 %v120
    %v512 = vunpack.c.l.b16 %v121
    %v513 = vunpack.c.l.b16 %v122
    %v514 = vunpack.c.h.b16 %v122
    %v515 = vunpack.c.l.b16 %v123
    %v516 = vunpack.c.h.b16 %v123
    %v517 = vunpack.c.l.b16 %v124
    %v518 = vunpack.c.h.b16 %v124
    %v519 = vunpack.c.l.b16 %v125
    %v520 = vpack.c.b16 %v415, %v408
    %v521 = vpack.c.b16 %v416, %v409
    %v522 = vpack.c.b16 %v417, %v410
    %v523 = vpack.c.b16 %v418, %v411
    %v524 = vpack.c.b16 %v419, %v412
    %v525 = vpack.c.b16 %v420, %v413
    %v526 = vpack.c.b16 %v421, %v414
    %v527 = vpack.c.b16 %v429, %v422
    %v528 = vpack.c.b16 %v430, %v423
    %v529 = vpack.c.b16 %v431, %v424
    %v530 = vpack.c.b16 %v432, %v425
    %v531 = vpack.c.b16 %v433, %v426
    %v532 = vpack.c.b16 %v434, %v427
    %v533 = vpack.c.b16 %v435, %v428
    %v534 = vpack.c.b16 %v443, %v436
    %v535 = vpack.c.b16 %v444, %v437
    %v536 = vpack.c.b16 %v445, %v438
    %v537 = vpack.c.b16 %v446, %v439
    %v538 = vpack.c.b16 %v447, %v440
    %v539 = vpack.c.b16 %v448, %v441
    %v540 = vpack.c.b16 %v449, %v442
    %v541 = vpack.c.b16 %v457, %v450
    %v542 = vpack.c.b16 %v458, %v451
    %v543 = vpack.c.b16 %v459, %v452
    %v544 = vpack.c.b16 %v460, %v453
    %v545 = vpack.c.b16 %v461, %v454
    %v546 = vpack.c.b16 %v462, %v455
    %v547 = vpack.c.b16 %v463, %v456
    %v548 = vpack.c.b16 %v471, %v464
    %v549 = vpack.c.b16 %v472, %v465
    %v550 = vpack.c.b16 %v473, %v466
    %v551 = vpack.c.b16 %v474, %v467
    %v552 = vpack.c.b16 %v475, %v468
    %v553 = vpack.c.b16 %v476, %v469
    %v554 = vpack.c.b16 %v477, %v470
    %v555 = vpack.c.b16 %v485, %v478
    %v556 = vpack.c.b16 %v486, %v479
    %v557 = vpack.c.b16 %v487, %v480
    %v558 = vpack.c.b16 %v488, %v481
    %v559 = vpack.c.b16 %v489, %v482
    %v560 = vpack.c.b16 %v490, %v483
    %v561 = vpack.c.b16 %v491, %v484
    %v562 = vpack.c.b16 %v499, %v492
    %v563 = vpack.c.b16 %v500, %v493
    %v564 = vpack.c.b16 %v501, %v494
    %v565 = vpack.c.b16 %v502, %v495
    %v566 = vpack.c.b16 %v503, %v496
    %v567 = vpack.c.b16 %v504, %v497
    %v568 = vpack.c.b16 %v505, %v498
    %v569 = vpack.c.b16 %v513, %v506
    %v570 = vpack.c.b16 %v514, %v507
    %v571 = vpack.c.b16 %v515, %v508
    %v572 = vpack.c.b16 %v516, %v509
    %v573 = vpack.c.b16 %v517, %v510
    %v574 = vpack.c.b16 %v518, %v511
    %v575 = vpack.c.b16 %v519, %v512
    %v820 = vunpack.c.l.b16 %v126
    %v821 = vunpack.c.h.b16 %v126
    %v822 = vunpack.c.l.b16 %v127
    %v823 = vunpack.c.h.b16 %v127
    %v824 = vunpack.c.l.b16 %v128
    %v825 = vunpack.c.h.b16 %v128
    %v826 = vunpack.c.l.b16 %v129
    %v827 = vunpack.c.h.b16 %v129
    %v828 = vunpack.c.l.b16 %v130
    %v829 = vunpack.c.h.b16 %v130
    %v830 = vunpack.c.l.b16 %v131
    %v831 = vunpack.c.h.b16 %v131
    %v832 = vunpack.c.l.b16 %v132
    %v833 = vunpack.c.h.b16 %v132
    %v834 = vunpack.c.l.b16 %v133
    %v835 = vunpack.c.h.b16 %v133
    %v836 = vunpack.c.l.b16 %v134
    %v837 = vunpack.c.h.b16 %v134
    %v838 = vunpack.c.l.b16 %v135
    %v839 = vunpack.c.h.b16 %v135
    %v840 = vunpack.c.l.b16 %v136
    %v841 = vunpack.c.h.b16 %v136
    %v842 = vunpack.c.l.b16 %v137
    %v843 = vunpack.c.h.b16 %v137
    %v844 = vunpack.c.l.b16 %v138
    %v845 = vunpack.c.h.b16 %v138
    %v846 = vunpack.c.l.b16 %v139
    %v847 = vunpack.c.h.b16 %v139
    %v848 = vunpack.c.l.b16 %v140
    %v849 = vunpack.c.h.b16 %v140
    %v850 = vunpack.c.l.b16 %v141
    %v851 = vunpack.c.h.b16 %v141
    %v852 = vunpack.c.l.b16 %v142
    %v853 = vunpack.c.h.b16 %v142
    %v854 = vunpack.c.l.b16 %v143
    %v855 = vunpack.c.h.b16 %v143
    %v856 = vunpack.c.l.b16 %v144
    %v857 = vunpack.c.h.b16 %v144
    %v858 = vunpack.c.l.b16 %v145
    %v859 = vunpack.c.h.b16 %v145
    %v860 = vunpack.c.l.b16 %v146
    %v861 = vunpack.c.h.b16 %v146
    %v862 = vunpack.c.l.b16 %v147
    %v863 = vunpack.c.h.b16 %v147
    %v864 = vunpack.c.l.b16 %v148
    %v865 = vunpack.c.h.b16 %v148
    %v866 = vunpack.c.l.b16 %v149
    %v867 = vunpack.c.h.b16 %v149
    %v868 = vunpack.c.l.b16 %v150
    %v869 = vunpack.c.h.b16 %v150
    %v870 = vunpack.c.l.b16 %v151
    %v871 = vunpack.c.h.b16 %v151
    %v872 = vunpack.c.l.b16 %v152
    %v873 = vunpack.c.h.b16 %v152
    %v874 = vunpack.c.l.b16 %v153
    %v875 = vunpack.c.h.b16 %v153
    %v876 = vunpack.c.l.b16 %v154
    %v877 = vunpack.c.h.b16 %v154
    %v878 = vunpack.c.l.b16 %v155
    %v879 = vunpack.c.h.b16 %v155
    %v880 = vunpack.c.l.b16 %v156
    %v881 = vunpack.c.h.b16 %v156
    %v882 = vunpack.c.l.b16 %v157
    %v883 = vunpack.c.h.b16 %v157
    %v884 = vunpack.c.l.b16 %v158
    %v885 = vunpack.c.h.b16 %v158
    %v886 = vunpack.c.l.b16 %v159
    %v887 = vunpack.c.h.b16 %v159
    %v888 = vunpack.c.l.b16 %v160
    %v889 = vunpack.c.h.b16 %v160
    %v890 = vunpack.c.l.b16 %v161
    %v891 = vunpack.c.h.b16 %v161
    %v892 = vunpack.c.l.b16 %v162
    %v893 = vunpack.c.h.b16 %v162
    %v894 = vunpack.c.l.b16 %v163
    %v895 = vunpack.c.h.b16 %v163
    %v896 = vunpack.c.l.b16 %v164
    %v897 = vunpack.c.h.b16 %v164
    %v898 = vunpack.c.l.b16 %v165
    %v899 = vunpack.c.h.b16 %v165
    %v900 = vunpack.c.l.b16 %v166
    %v901 = vunpack.c.h.b16 %v166
    %v902 = vunpack.c.l.b16 %v167
    %v903 = vunpack.c.h.b16 %v167
    %v904 = vunpack.c.l.b16 %v168
    %v905 = vunpack.c.h.b16 %v168
    %v906 = vunpack.c.l.b16 %v169
    %v907 = vunpack.c.h.b16 %v169
    %v908 = vunpack.c.l.b16 %v170
    %v909 = vunpack.c.h.b16 %v170
    %v910 = vunpack.c.l.b16 %v171
    %v911 = vunpack.c.h.b16 %v171
    %v912 = vunpack.c.l.b16 %v172
    %v913 = vunpack.c.h.b16 %v172
    %v914 = vunpack.c.l.b16 %v173
    %v915 = vunpack.c.h.b16 %v173
    %v916 = vunpack.c.l.b16 %v174
    %v917 = vunpack.c.h.b16 %v174
    %v918 = vunpack.c.l.b16 %v175
    %v919 = vunpack.c.h.b16 %v175
    %v920 = vunpack.c.l.b16 %v176
    %v921 = vunpack.c.h.b16 %v176
    %v922 = vunpack.c.l.b16 %v177
    %v923 = vunpack.c.h.b16 %v177
    %v924 = vunpack.c.l.b16 %v178
    %v925 = vunpack.c.h.b16 %v178
    %v926 = vunpack.c.l.b16 %v179
    %v927 = vunpack.c.h.b16 %v179
    %v928 = vunpack.c.l.b16 %v180
    %v929 = vunpack.c.h.b16 %v180
    %v930 = vunpack.c.l.b16 %v181
    %v931 = vunpack.c.h.b16 %v181
    %v932 = vunpack.c.l.b16 %v182
    %v933 = vunpack.c.h.b16 %v182
    %v934 = vunpack.c.l.b16 %v183
    %v935 = vunpack.c.h.b16 %v183
    %v936 = vunpack.c.l.b16 %v184
    %v937 = vunpack.c.h.b16 %v184
    %v938 = vunpack.c.l.b16 %v185
    %v939 = vunpack.c.h.b16 %v185
    %v940 = vunpack.c.l.b16 %v186
    %v941 = vunpack.c.h.b16 %v186
    %v942 = vunpack.c.l.b16 %v187
    %v943 = vunpack.c.h.b16 %v187
    %v944 = vunpack.c.l.b16 %v188
    %v945 = vunpack.c.h.b16 %v188
    %v946 = vunpack.c.l.b16 %v189
    %v947 = vunpack.c.h.b16 %v189
    %v948 = vunpack.c.l.b16 %v190
    %v949 = vunpack.c.h.b16 %v190
    %v950 = vunpack.c.l.b16 %v191
    %v951 = vunpack.c.h.b16 %v191
    %v952 = vunpack.c.l.b16 %v192
    %v953 = vunpack.c.h.b16 %v192
    %v954 = vunpack.c.l.b16 %v193
    %v955 = vunpack.c.h.b16 %v193
    %v956 = vunpack.c.l.b16 %v194
    %v957 = vunpack.c.h.b16 %v194
    %v958 = vunpack.c.l.b16 %v195
    %v959 = vunpack.c.h.b16 %v195
    %v960 = vunpack.c.l.b16 %v196
    %v961 = vunpack.c.h.b16 %v196
    %v962 = vunpack.c.l.b16 %v197
    %v963 = vunpack.c.h.b16 %v197
    %v964 = vunpack.c.l.b16 %v198
    %v965 = vunpack.c.h.b16 %v198
    %v966 = vunpack.c.l.b16 %v199
    %v967 = vunpack.c.h.b16 %v199
    %v968 = vunpack.c.l.b16 %v200
    %v969 = vunpack.c.h.b16 %v200
    %v970 = vunpack.c.l.b16 %v201
    %v971 = vunpack.c.h.b16 %v201
    %v972 = vunpack.c.l.b16 %v202
    %v973 = vunpack.c.h.b16 %v202
    %v974 = vunpack.c.l.b16 %v203
    %v975 = vunpack.c.h.b16 %v203
    %v976 = vunpack.c.l.b16 %v204
    %v977 = vunpack.c.h.b16 %v204
    %v978 = vunpack.c.l.b16 %v205
    %v979 = vunpack.c.h.b16 %v205
    %v980 = vunpack.c.l.b16 %v206
    %v981 = vunpack.c.h.b16 %v206
    %v982 = vunpack.c.l.b16 %v207
    %v983 = vunpack.c.h.b16 %v207
    %v984 = vunpack.c.l.b16 %v208
    %v985 = vunpack.c.h.b16 %v208
    %v986 = vunpack.c.l.b16 %v209
    %v987 = vunpack.c.h.b16 %v209
    %v988 = vunpack.c.l.b16 %v210
    %v989 = vunpack.c.h.b16 %v210
    %v990 = vunpack.c.l.b16 %v211
    %v991 = vunpack.c.h.b16 %v211
    %v992 = vunpack.c.l.b16 %v212
    %v993 = vunpack.c.h.b16 %v212
    %v994 = vunpack.c.l.b16 %v213
    %v995 = vunpack.c.h.b16 %v213
    %v996 = vunpack.c.l.b16 %v214
    %v997 = vunpack.c.h.b16 %v214
    %v998 = vunpack.c.l.b16 %v215
    %v999 = vunpack.c.h.b16 %v215
    %v1000 = vunpack.c.l.b16 %v216
    %v1001 = vunpack.c.h.b16 %v216
    %v1002 = vunpack.c.l.b16 %v217
    %v1003 = vunpack.c.h.b16 %v217
    %v1004 = vunpack.c.l.b16 %v218
    %v1005 = vunpack.c.h.b16 %v218
    %v1006 = vunpack.c.l.b16 %v219
    %v1007 = vunpack.c.h.b16 %v219
    %v1008 = vunpack.c.l.b16 %v220
    %v1009 = vunpack.c.h.b16 %v220
    %v1010 = vunpack.c.l.b16 %v221
    %v1011 = vunpack.c.h.b16 %v221
    %v1012 = vunpack.c.l.b16 %v222
    %v1013 = vunpack.c.h.b16 %v222
    %v1014 = vunpack.c.l.b16 %v223
    %v1015 = vunpack.c.h.b16 %v223
    %v1016 = vunpack.c.l.b16 %v224
    %v1017 = vunpack.c.h.b16 %v224
    %v1018 = vunpack.c.l.b16 %v225
    %v1019 = vunpack.c.h.b16 %v225
    %v1020 = vunpack.c.l.b16 %v226
    %v1021 = vunpack.c.h.b16 %v226
    %v1022 = vunpack.c.l.b16 %v227
    %v1023 = vunpack.c.h.b16 %v227
    %v1024 = vunpack.c.l.b16 %v228
    %v1025 = vunpack.c.h.b16 %v228
    %v1026 = vunpack.c.l.b16 %v229
    %v1027 = vunpack.c.h.b16 %v229
    %v1028 = vunpack.c.l.b16 %v230
    %v1029 = vunpack.c.h.b16 %v230
    %v1030 = vunpack.c.l.b16 %v231
    %v1031 = vunpack.c.h.b16 %v231
    %v1032 = vunpack.c.l.b16 %v232
    %v1033 = vunpack.c.h.b16 %v232
    %v1034 = vunpack.c.l.b16 %v233
    %v1035 = vunpack.c.h.b16 %v233
    %v1036 = vunpack.c.l.b16 %v234
    %v1037 = vunpack.c.h.b16 %v234
    %v1038 = vunpack.c.l.b16 %v235
    %v1039 = vunpack.c.h.b16 %v235
    %v1040 = vunpack.c.l.b16 %v236
    %v1041 = vunpack.c.h.b16 %v236
    %v1042 = vunpack.c.l.b16 %v237
    %v1043 = vunpack.c.h.b16 %v237
    %v1044 = vunpack.c.l.b16 %v238
    %v1045 = vunpack.c.h.b16 %v238
    %v1046 = vunpack.c.l.b16 %v239
    %v1047 = vunpack.c.h.b16 %v239
    %v1048 = vunpack.c.l.b16 %v240
    %v1049 = vunpack.c.h.b16 %v240
    %v1050 = vunpack.c.l.b16 %v241
    %v1051 = vunpack.c.h.b16 %v241
    %v1052 = vunpack.c.l.b16 %v242
    %v1053 = vunpack.c.h.b16 %v242
    %v1054 = vunpack.c.l.b16 %v243
    %v1055 = vunpack.c.h.b16 %v243
    %v1056 = vunpack.c.l.b16 %v244
    %v1057 = vunpack.c.h.b16 %v244
    %v1058 = vunpack.c.l.b16 %v245
    %v1059 = vunpack.c.h.b16 %v245
    %v1060 = vunpack.c.l.b16 %v246
    %v1061 = vunpack.c.h.b16 %v246
    %v1062 = vunpack.c.l.b16 %v247
    %v1063 = vunpack.c.h.b16 %v247
    %v1064 = vunpack.c.l.b16 %v248
    %v1065 = vunpack.c.h.b16 %v248
    %v1066 = vunpack.c.l.b16 %v249
    %v1067 = vunpack.c.h.b16 %v249
    %v1068 = vunpack.c.l.b16 %v250
    %v1069 = vunpack.c.h.b16 %v250
    %v1070 = vunpack.c.l.b16 %v251
    %v1071 = vunpack.c.h.b16 %v251
    %v1072 = vunpack.c.l.b16 %v252
    %v1073 = vunpack.c.h.b16 %v252
    %v1074 = vunpack.c.l.b16 %v253
    %v1075 = vunpack.c.h.b16 %v253
    %v1076 = vunpack.c.l.b16 %v254
    %v1077 = vunpack.c.h.b16 %v254
    %v1078 = vunpack.c.l.b16 %v255
    %v1079 = vunpack.c.h.b16 %v255
    %v1080 = vunpack.c.l.b16 %v256
    %v1081 = vunpack.c.h.b16 %v256
    %v1082 = vunpack.c.l.b16 %v257
    %v1083 = vunpack.c.h.b16 %v257
    %v1084 = vunpack.c.l.b16 %v258
    %v1085 = vunpack.c.h.b16 %v258
    %v1086 = vunpack.c.l.b16 %v259
    %v1087 = vunpack.c.h.b16 %v259
    %v1088 = vunpack.c.l.b16 %v260
    %v1089 = vunpack.c.h.b16 %v260
    %v1090 = vunpack.c.l.b16 %v261
    %v1091 = vunpack.c.h.b16 %v261
    %v1092 = vunpack.c.l.b16 %v262
    %v1093 = vunpack.c.h.b16 %v262
    %v1094 = vunpack.c.l.b16 %v263
    %v1095 = vunpack.c.h.b16 %v263
    %v1096 = vunpack.c.l.b16 %v264
    %v1097 = vunpack.c.h.b16 %v264
    %v1098 = vunpack.c.l.b16 %v265
    %v1099 = vunpack.c.h.b16 %v265
    %v1100 = vunpack.c.l.b16 %v266
    %v1101 = vunpack.c.h.b16 %v266
    %v1102 = vunpack.c.l.b16 %v267
    %v1103 = vunpack.c.h.b16 %v267
    %v1104 = vunpack.c.l.b16 %v268
    %v1105 = vunpack.c.h.b16 %v268
    %v1106 = vunpack.c.l.b16 %v269
    %v1107 = vunpack.c.h.b16 %v269
    %v1108 = vunpack.c.l.b16 %v270
    %v1109 = vunpack.c.h.b16 %v270
    %v1110 = vunpack.c.l.b16 %v271
    %v1111 = vunpack.c.h.b16 %v271
    %v1112 = vunpack.c.l.b16 %v272
    %v1113 = vunpack.c.h.b16 %v272
    %v1114 = vunpack.c.l.b16 %v273
    %v1115 = vunpack.c.h.b16 %v273
    %v1116 = vunpack.c.l.b16 %v274
    %v1117 = vunpack.c.h.b16 %v274
    %v1118 = vunpack.c.l.b16 %v275
    %v1119 = vunpack.c.h.b16 %v275
    %v1120 = vunpack.c.l.b16 %v276
    %v1121 = vunpack.c.h.b16 %v276
    %v1122 = vunpack.c.l.b16 %v277
    %v1123 = vunpack.c.h.b16 %v277
    %v1124 = vunpack.c.l.b16 %v278
    %v1125 = vunpack.c.h.b16 %v278
    %v1126 = vunpack.c.l.b16 %v279
    %v1127 = vunpack.c.h.b16 %v279
    %v1128 = vunpack.c.l.b16 %v280
    %v1129 = vunpack.c.h.b16 %v280
    %v1130 = vunpack.c.l.b16 %v281
    %v1131 = vunpack.c.h.b16 %v281
    %v1132 = vunpack.c.l.b16 %v282
    %v1133 = vunpack.c.h.b16 %v282
    %v1134 = vunpack.c.l.b16 %v283
    %v1135 = vunpack.c.h.b16 %v283
    %v1136 = vunpack.c.l.b16 %v284
    %v1137 = vunpack.c.h.b16 %v284
    %v1138 = vunpack.c.l.b16 %v285
    %v1139 = vunpack.c.h.b16 %v285
    %v1140 = vunpack.c.l.b16 %v286
    %v1141 = vunpack.c.h.b16 %v286
    %v1142 = vunpack.c.l.b16 %v287
    %v1143 = vunpack.c.h.b16 %v287
    %v1144 = vunpack.c.l.b16 %v288
    %v1145 = vunpack.c.h.b16 %v288
    %v1146 = vunpack.c.l.b16 %v289
    %v1147 = vunpack.c.h.b16 %v289
    %v1148 = vunpack.c.l.b16 %v290
    %v1149 = vunpack.c.h.b16 %v290
    %v1150 = vunpack.c.l.b16 %v291
    %v1151 = vunpack.c.h.b16 %v291
    %v1152 = vunpack.c.l.b16 %v292
    %v1153 = vunpack.c.h.b16 %v292
    %v1154 = vunpack.c.l.b16 %v293
    %v1155 = vunpack.c.h.b16 %v293
    %v1156 = vunpack.c.l.b16 %v294
    %v1157 = vunpack.c.h.b16 %v294
    %v1158 = vunpack.c.l.b16 %v295
    %v1159 = vunpack.c.h.b16 %v295
    %v1160 = vunpack.c.l.b16 %v296
    %v1161 = vunpack.c.h.b16 %v296
    %v1162 = vunpack.c.l.b16 %v297
    %v1163 = vunpack.c.h.b16 %v297
    %v1164 = vunpack.c.l.b16 %v298
    %v1165 = vunpack.c.h.b16 %v298
    %v1166 = vunpack.c.l.b16 %v299
    %v1167 = vunpack.c.h.b16 %v299
    %v1168 = vunpack.c.l.b16 %v300
    %v1169 = vunpack.c.h.b16 %v300
    %v1170 = vunpack.c.l.b16 %v301
    %v1171 = vunpack.c.h.b16 %v301
    %v1172 = vunpack.c.l.b16 %v302
    %v1173 = vunpack.c.h.b16 %v302
    %v1174 = vunpack.c.l.b16 %v303
    %v1175 = vunpack.c.h.b16 %v303
    %v1176 = vunpack.c.l.b16 %v304
    %v1177 = vunpack.c.h.b16 %v304
    %v1178 = vunpack.c.l.b16 %v305
    %v1179 = vunpack.c.h.b16 %v305
    %v1180 = vunpack.c.l.b16 %v306
    %v1181 = vunpack.c.h.b16 %v306
    %v1182 = vunpack.c.l.b16 %v307
    %v1183 = vunpack.c.h.b16 %v307
    %v1184 = vunpack.c.l.b16 %v308
    %v1185 = vunpack.c.h.b16 %v308
    %v1186 = vunpack.c.l.b16 %v309
    %v1187 = vunpack.c.h.b16 %v309
    %v1188 = vunpack.c.l.b16 %v310
    %v1189 = vunpack.c.h.b16 %v310
    %v1190 = vunpack.c.l.b16 %v311
    %v1191 = vunpack.c.h.b16 %v311
    %v1192 = vunpack.c.l.b16 %v312
    %v1193 = vunpack.c.h.b16 %v312
    %v1194 = vunpack.c.l.b16 %v313
    %v1195 = vunpack.c.h.b16 %v313
    %v1196 = vunpack.c.l.b16 %v314
    %v1197 = vunpack.c.h.b16 %v314
    %v1198 = vunpack.c.l.b16 %v315
    %v1199 = vunpack.c.h.b16 %v315
    %v1200 = vunpack.c.l.b16 %v316
    %v1201 = vunpack.c.h.b16 %v316
    %v1202 = vunpack.c.l.b16 %v317
    %v1203 = vunpack.c.h.b16 %v317
    %v1204 = vunpack.c.l.b16 %v318
    %v1205 = vunpack.c.h.b16 %v318
    %v1206 = vunpack.c.l.b16 %v319
    %v1207 = vunpack.c.h.b16 %v319
    %v1208 = vunpack.c.l.b16 %v320
    %v1209 = vunpack.c.h.b16 %v320
    %v1210 = vunpack.c.l.b16 %v321
    %v1211 = vunpack.c.h.b16 %v321
    %v1212 = vpack.c.b16 %v824, %v820
    %v1213 = vpack.c.b16 %v825, %v821
    %v1214 = vpack.c.b16 %v826, %v822
    %v1215 = vpack.c.b16 %v827, %v823
    %v1216 = vpack.c.b16 %v832, %v828
    %v1217 = vpack.c.b16 %v833, %v829
    %v1218 = vpack.c.b16 %v834, %v830
    %v1219 = vpack.c.b16 %v835, %v831
    %v1220 = vpack.c.b16 %v840, %v836
    %v1221 = vpack.c.b16 %v841, %v837
    %v1222 = vpack.c.b16 %v842, %v838
    %v1223 = vpack.c.b16 %v843, %v839
    %v1224 = vpack.c.b16 %v848, %v844
    %v1225 = vpack.c.b16 %v849, %v845
    %v1226 = vpack.c.b16 %v850, %v846
    %v1227 = vpack.c.b16 %v851, %v847
    %v1228 = vpack.c.b16 %v856, %v852
    %v1229 = vpack.c.b16 %v857, %v853
    %v1230 = vpack.c.b16 %v858, %v854
    %v1231 = vpack.c.b16 %v859, %v855
    %v1232 = vpack.c.b16 %v864, %v860
    %v1233 = vpack.c.b16 %v865, %v861
    %v1234 = vpack.c.b16 %v866, %v862
    %v1235 = vpack.c.b16 %v867, %v863
    %v1236 = vpack.c.b16 %v872, %v868
    %v1237 = vpack.c.b16 %v873, %v869
    %v1238 = vpack.c.b16 %v874, %v870
    %v1239 = vpack.c.b16 %v875, %v871
    %v1240 = vpack.c.b16 %v880, %v876
    %v1241 = vpack.c.b16 %v881, %v877
    %v1242 = vpack.c.b16 %v882, %v878
    %v1243 = vpack.c.b16 %v883, %v879
    %v1244 = vpack.c.b16 %v888, %v884
    %v1245 = vpack.c.b16 %v889, %v885
    %v1246 = vpack.c.b16 %v890, %v886
    %v1247 = vpack.c.b16 %v891, %v887
    %v1248 = vpack.c.b16 %v896, %v892
    %v1249 = vpack.c.b16 %v897, %v893
    %v1250 = vpack.c.b16 %v898, %v894
    %v1251 = vpack.c.b16 %v899, %v895
    %v1252 = vpack.c.b16 %v904, %v900
    %v1253 = vpack.c.b16 %v905, %v901
    %v1254 = vpack.c.b16 %v906, %v902
    %v1255 = vpack.c.b16 %v907, %v903
    %v1256 = vpack.c.b16 %v912, %v908
    %v1257 = vpack.c.b16 %v913, %v909
    %v1258 = vpack.c.b16 %v914, %v910
    %v1259 = vpack.c.b16 %v915, %v911
    %v1260 = vpack.c.b16 %v920, %v916
    %v1261 = vpack.c.b16 %v921, %v917
    %v1262 = vpack.c.b16 %v922, %v918
    %v1263 = vpack.c.b16 %v923, %v919
    %v1264 = vpack.c.b16 %v928, %v924
    %v1265 = vpack.c.b16 %v929, %v925
    %v1266 = vpack.c.b16 %v930, %v926
    %v1267 = vpack.c.b16 %v931, %v927
    %v1268 = vpack.c.b16 %v936, %v932
    %v1269 = vpack.c.b16 %v937, %v933
    %v1270 = vpack.c.b16 %v938, %v934
    %v1271 = vpack.c.b16 %v939, %v935
    %v1272 = vpack.c.b16 %v944, %v940
    %v1273 = vpack.c.b16 %v945, %v941
    %v1274 = vpack.c.b16 %v946, %v942
    %v1275 = vpack.c.b16 %v947, %v943
    %v1276 = vpack.c.b16 %v952, %v948
    %v1277 = vpack.c.b16 %v953, %v949
    %v1278 = vpack.c.b16 %v954, %v950
    %v1279 = vpack.c.b16 %v955, %v951
    %v1280 = vpack.c.b16 %v960, %v956
    %v1281 = vpack.c.b16 %v961, %v957
    %v1282 = vpack.c.b16 %v962, %v958
    %v1283 = vpack.c.b16 %v963, %v959
    %v1284 = vpack.c.b16 %v968, %v964
    %v1285 = vpack.c.b16 %v969, %v965
    %v1286 = vpack.c.b16 %v970, %v966
    %v1287 = vpack.c.b16 %v971, %v967
    %v1288 = vpack.c.b16 %v976, %v972
    %v1289 = vpack.c.b16 %v977, %v973
    %v1290 = vpack.c.b16 %v978, %v974
    %v1291 = vpack.c.b16 %v979, %v975
    %v1292 = vpack.c.b16 %v984, %v980
    %v1293 = vpack.c.b16 %v985, %v981
    %v1294 = vpack.c.b16 %v986, %v982
    %v1295 = vpack.c.b16 %v987, %v983
    %v1296 = vpack.c.b16 %v992, %v988
    %v1297 = vpack.c.b16 %v993, %v989
    %v1298 = vpack.c.b16 %v994, %v990
    %v1299 = vpack.c.b16 %v995, %v991
    %v1300 = vpack.c.b16 %v1000, %v996
    %v1301 = vpack.c.b16 %v1001, %v997
    %v1302 = vpack.c.b16 %v1002, %v998
    %v1303 = vpack.c.b16 %v1003, %v999
    %v1304 = vpack.c.b16 %v1008, %v1004
    %v1305 = vpack.c.b16 %v1009, %v1005
    %v1306 = vpack.c.b16 %v1010, %v1006
    %v1307 = vpack.c.b16 %v1011, %v1007
    %v1308 = vpack.c.b16 %v1016, %v1012
    %v1309 = vpack.c.b16 %v1017, %v1013
    %v1310 = vpack.c.b16 %v1018, %v1014
    %v1311 = vpack.c.b16 %v1019, %v1015
    %v1312 = vpack.c.b16 %v1024, %v1020
    %v1313 = vpack.c.b16 %v1025, %v1021
    %v1314 = vpack.c.b16 %v1026, %v1022
    %v1315 = vpack.c.b16 %v1027, %v1023
    %v1316 = vpack.c.b16 %v1032, %v1028
    %v1317 = vpack.c.b16 %v1033, %v1029
    %v1318 = vpack.c.b16 %v1034, %v1030
    %v1319 = vpack.c.b16 %v1035, %v1031
    %v1320 = vpack.c.b16 %v1040, %v1036
    %v1321 = vpack.c.b16 %v1041, %v1037
    %v1322 = vpack.c.b16 %v1042, %v1038
    %v1323 = vpack.c.b16 %v1043, %v1039
    %v1324 = vpack.c.b16 %v1048, %v1044
    %v1325 = vpack.c.b16 %v1049, %v1045
    %v1326 = vpack.c.b16 %v1050, %v1046
    %v1327 = vpack.c.b16 %v1051, %v1047
    %v1328 = vpack.c.b16 %v1056, %v1052
    %v1329 = vpack.c.b16 %v1057, %v1053
    %v1330 = vpack.c.b16 %v1058, %v1054
    %v1331 = vpack.c.b16 %v1059, %v1055
    %v1332 = vpack.c.b16 %v1064, %v1060
    %v1333 = vpack.c.b16 %v1065, %v1061
    %v1334 = vpack.c.b16 %v1066, %v1062
    %v1335 = vpack.c.b16 %v1067, %v1063
    %v1336 = vpack.c.b16 %v1072, %v1068
    %v1337 = vpack.c.b16 %v1073, %v1069
    %v1338 = vpack.c.b16 %v1074, %v1070
    %v1339 = vpack.c.b16 %v1075, %v1071
    %v1340 = vpack.c.b16 %v1080, %v1076
    %v1341 = vpack.c.b16 %v1081, %v1077
    %v1342 = vpack.c.b16 %v1082, %v1078
    %v1343 = vpack.c.b16 %v1083, %v1079
    %v1344 = vpack.c.b16 %v1088, %v1084
    %v1345 = vpack.c.b16 %v1089, %v1085
    %v1346 = vpack.c.b16 %v1090, %v1086
    %v1347 = vpack.c.b16 %v1091, %v1087
    %v1348 = vpack.c.b16 %v1096, %v1092
    %v1349 = vpack.c.b16 %v1097, %v1093
    %v1350 = vpack.c.b16 %v1098, %v1094
    %v1351 = vpack.c.b16 %v1099, %v1095
    %v1352 = vpack.c.b16 %v1104, %v1100
    %v1353 = vpack.c.b16 %v1105, %v1101
    %v1354 = vpack.c.b16 %v1106, %v1102
    %v1355 = vpack.c.b16 %v1107, %v1103
    %v1356 = vpack.c.b16 %v1112, %v1108
    %v1357 = vpack.c.b16 %v1113, %v1109
    %v1358 = vpack.c.b16 %v1114, %v1110
    %v1359 = vpack.c.b16 %v1115, %v1111
    %v1360 = vpack.c.b16 %v1120, %v1116
    %v1361 = vpack.c.b16 %v1121, %v1117
    %v1362 = vpack.c.b16 %v1122, %v1118
    %v1363 = vpack.c.b16 %v1123, %v1119
    %v1364 = vpack.c.b16 %v1128, %v1124
    %v1365 = vpack.c.b16 %v1129, %v1125
    %v1366 = vpack.c.b16 %v1130, %v1126
    %v1367 = vpack.c.b16 %v1131, %v1127
    %v1368 = vpack.c.b16 %v1136, %v1132
    %v1369 = vpack.c.b16 %v1137, %v1133
    %v1370 = vpack.c.b16 %v1138, %v1134
    %v1371 = vpack.c.b16 %v1139, %v1135
    %v1372 = vpack.c.b16 %v1144, %v1140
    %v1373 = vpack.c.b16 %v1145, %v1141
    %v1374 = vpack.c.b16 %v1146, %v1142
    %v1375 = vpack.c.b16 %v1147, %v1143
    %v1376 = vpack.c.b16 %v1152, %v1148
    %v1377 = vpack.c.b16 %v1153, %v1149
    %v1378 = vpack.c.b16 %v1154, %v1150
    %v1379 = vpack.c.b16 %v1155, %v1151
    %v1380 = vpack.c.b16 %v1160, %v1156
    %v1381 = vpack.c.b16 %v1161, %v1157
    %v1382 = vpack.c.b16 %v1162, %v1158
    %v1383 = vpack.c.b16 %v1163, %v1159
    %v1384 = vpack.c.b16 %v1168, %v1164
    %v1385 = vpack.c.b16 %v1169, %v1165
    %v1386 = vpack.c.b16 %v1170, %v1166
    %v1387 = vpack.c.b16 %v1171, %v1167
    %v1388 = vpack.c.b16 %v1176, %v1172
    %v1389 = vpack.c.b16 %v1177, %v1173
    %v1390 = vpack.c.b16 %v1178, %v1174
    %v1391 = vpack.c.b16 %v1179, %v1175
    %v1392 = vpack.c.b16 %v1184, %v1180
    %v1393 = vpack.c.b16 %v1185, %v1181
    %v1394 = vpack.c.b16 %v1186, %v1182
    %v1395 = vpack.c.b16 %v1187, %v1183
    %v1396 = vpack.c.b16 %v1192, %v1188
    %v1397 = vpack.c.b16 %v1193, %v1189
    %v1398 = vpack.c.b16 %v1194, %v1190
    %v1399 = vpack.c.b16 %v1195, %v1191
    %v1400 = vpack.c.b16 %v1200, %v1196
    %v1401 = vpack.c.b16 %v1201, %v1197
    %v1402 = vpack.c.b16 %v1202, %v1198
    %v1403 = vpack.c.b16 %v1203, %v1199
    %v1404 = vpack.c.b16 %v1208, %v1204
    %v1405 = vpack.c.b16 %v1209, %v1205
    %v1406 = vpack.c.b16 %v1210, %v1206
    %v1407 = vpack.c.b16 %v1211, %v1207
    %vm1604 = vcmask 130048
    %v1606 = vsel %vm1604, %v526, 0
    %v1609 = vsel %vm1604, %v533, 0
    %v1612 = vsel %vm1604, %v540, 0
    %v1615 = vsel %vm1604, %v547, 0
    %v1618 = vsel %vm1604, %v554, 0
    %v1621 = vsel %vm1604, %v561, 0
    %v1624 = vsel %vm1604, %v568, 0
    %v1627 = vsel %vm1604, %v575, 0
    %1629 = vmatprep.subr.bf16.mxu0 %v1213
    %1630 = vmatpush1.bf16.msra.mxu0 %v1212
    %1631 = vmatprep.subr.bf16.mxu0 %v1217
    %1632 = vmatpush1.bf16.msra.mxu0 %v1216
    %1633 = vmatprep.subr.bf16.mxu0 %v1221
    %1634 = vmatpush1.bf16.msra.mxu0 %v1220
    %1635 = vmatprep.subr.bf16.mxu0 %v1225
    %1636 = vmatpush1.bf16.msra.mxu0 %v1224
    %1637 = vmatprep.subr.bf16.mxu0 %v1229
    %1638 = vmatpush1.bf16.msra.mxu0 %v1228
    %1639 = vmatprep.subr.bf16.mxu0 %v1233
    %1640 = vmatpush1.bf16.msra.mxu0 %v1232
    %1641 = vmatprep.subr.bf16.mxu0 %v1237
    %1642 = vmatpush1.bf16.msra.mxu0 %v1236
    %1643 = vmatprep.subr.bf16.mxu0 %v1241
    %1644 = vmatpush1.bf16.msra.mxu0 %v1240
    %1645 = vmatprep.subr.bf16.mxu0 %v1245
    %1646 = vmatpush1.bf16.msra.mxu0 %v1244
    %1647 = vmatprep.subr.bf16.mxu0 %v1249
    %1648 = vmatpush1.bf16.msra.mxu0 %v1248
    %1649 = vmatprep.subr.bf16.mxu0 %v1253
    %1650 = vmatpush1.bf16.msra.mxu0 %v1252
    %1651 = vmatprep.subr.bf16.mxu0 %v1257
    %1652 = vmatpush1.bf16.msra.mxu0 %v1256
    %1653 = vmatprep.subr.bf16.mxu0 %v1261
    %1654 = vmatpush1.bf16.msra.mxu0 %v1260
    %1655 = vmatprep.subr.bf16.mxu0 %v1265
    %1656 = vmatpush1.bf16.msra.mxu0 %v1264
    %1657 = vmatprep.subr.bf16.mxu0 %v1269
    %1658 = vmatpush1.bf16.msra.mxu0 %v1268
    %1659 = vmatprep.subr.bf16.mxu0 %v1273
    %1660 = vmatpush1.bf16.msra.mxu0 %v1272
    %1661 = vmatprep.mubr.bf16.mxu0 %v521
    %1662 = vmatmul.mubr.bf16.gmra.mrb[0].mxu0 %v520
    %v1663 = vpop.f32.mrb[0].mxu0
    %v1664 = vadd.f32 %v327, %v1663
    %v1665 = vpop.f32.mrb[0].mxu0
    %v1666 = vadd.f32 %v331, %v1665
    %v1667 = vpop.f32.mrb[0].mxu0
    %v1668 = vadd.f32 %v327, %v1667
    %v1669 = vpop.f32.mrb[0].mxu0
    %v1670 = vadd.f32 %v331, %v1669
    %1671 = vmatprep.mubr.bf16.mxu0 %v528
    %1672 = vmatmul.mubr.bf16.gmra.mrb[0].mxu0 %v527
    %v1673 = vpop.f32.mrb[0].mxu0
    %v1674 = vadd.f32 %v327, %v1673
    %v1675 = vpop.f32.mrb[0].mxu0
    %v1676 = vadd.f32 %v331, %v1675
    %v1677 = vpop.f32.mrb[0].mxu0
    %v1678 = vadd.f32 %v327, %v1677
    %v1679 = vpop.f32.mrb[0].mxu0
    %v1680 = vadd.f32 %v331, %v1679
    %1681 = vmatprep.mubr.bf16.mxu0 %v535
    %1682 = vmatmul.mubr.bf16.gmra.mrb[0].mxu0 %v534
    %v1683 = vpop.f32.mrb[0].mxu0
    %v1684 = vadd.f32 %v327, %v1683
    %v1685 = vpop.f32.mrb[0].mxu0
    %v1686 = vadd.f32 %v331, %v1685
    %v1687 = vpop.f32.mrb[0].mxu0
    %v1688 = vadd.f32 %v327, %v1687
    %v1689 = vpop.f32.mrb[0].mxu0
    %v1690 = vadd.f32 %v331, %v1689
    %1691 = vmatprep.mubr.bf16.mxu0 %v542
    %1692 = vmatmul.mubr.bf16.gmra.mrb[0].mxu0 %v541
    %v1693 = vpop.f32.mrb[0].mxu0
    %v1694 = vadd.f32 %v327, %v1693
    %v1695 = vpop.f32.mrb[0].mxu0
    %v1696 = vadd.f32 %v331, %v1695
    %v1697 = vpop.f32.mrb[0].mxu0
    %v1698 = vadd.f32 %v327, %v1697
    %v1699 = vpop.f32.mrb[0].mxu0
    %v1700 = vadd.f32 %v331, %v1699
    %1701 = vmatprep.mubr.bf16.mxu0 %v549
    %1702 = vmatmul.mubr.bf16.gmra.mrb[0].mxu0 %v548
    %v1703 = vpop.f32.mrb[0].mxu0
    %v1704 = vadd.f32 %v327, %v1703
    %v1705 = vpop.f32.mrb[0].mxu0
    %v1706 = vadd.f32 %v331, %v1705
    %v1707 = vpop.f32.mrb[0].mxu0
    %v1708 = vadd.f32 %v327, %v1707
    %v1709 = vpop.f32.mrb[0].mxu0
    %v1710 = vadd.f32 %v331, %v1709
    %1711 = vmatprep.mubr.bf16.mxu0 %v556
    %1712 = vmatmul.mubr.bf16.gmra.mrb[0].mxu0 %v555
    %v1713 = vpop.f32.mrb[0].mxu0
    %v1714 = vadd.f32 %v327, %v1713
    %v1715 = vpop.f32.mrb[0].mxu0
    %v1716 = vadd.f32 %v331, %v1715
    %v1717 = vpop.f32.mrb[0].mxu0
    %v1718 = vadd.f32 %v327, %v1717
    %v1719 = vpop.f32.mrb[0].mxu0
    %v1720 = vadd.f32 %v331, %v1719
    %1721 = vmatprep.mubr.bf16.mxu0 %v563
    %1722 = vmatmul.mubr.bf16.gmra.mrb[0].mxu0 %v562
    %v1723 = vpop.f32.mrb[0].mxu0
    %v1724 = vadd.f32 %v327, %v1723
    %v1725 = vpop.f32.mrb[0].mxu0
    %v1726 = vadd.f32 %v331, %v1725
    %v1727 = vpop.f32.mrb[0].mxu0
    %v1728 = vadd.f32 %v327, %v1727
    %v1729 = vpop.f32.mrb[0].mxu0
    %v1730 = vadd.f32 %v331, %v1729
    %1731 = vmatprep.mubr.bf16.mxu0 %v570
    %1732 = vmatmul.mubr.bf16.gmra.mrb[0].mxu0 %v569
    %v1733 = vpop.f32.mrb[0].mxu0
    %v1734 = vadd.f32 %v327, %v1733
    %v1735 = vpop.f32.mrb[0].mxu0
    %v1736 = vadd.f32 %v331, %v1735
    %v1737 = vpop.f32.mrb[0].mxu0
    %v1738 = vadd.f32 %v327, %v1737
    %v1739 = vpop.f32.mrb[0].mxu0
    %v1740 = vadd.f32 %v331, %v1739
    %1741 = vdwg.mxu0
    %1742 = vmatprep.subr.bf16.mxu0 %v1277
    %1743 = vmatpush1.bf16.msra.mxu0 %v1276
    %1744 = vmatprep.subr.bf16.mxu0 %v1281
    %1745 = vmatpush1.bf16.msra.mxu0 %v1280
    %1746 = vmatprep.subr.bf16.mxu0 %v1285
    %1747 = vmatpush1.bf16.msra.mxu0 %v1284
    %1748 = vmatprep.subr.bf16.mxu0 %v1289
    %1749 = vmatpush1.bf16.msra.mxu0 %v1288
    %1750 = vmatprep.subr.bf16.mxu0 %v1293
    %1751 = vmatpush1.bf16.msra.mxu0 %v1292
    %1752 = vmatprep.subr.bf16.mxu0 %v1297
    %1753 = vmatpush1.bf16.msra.mxu0 %v1296
    %1754 = vmatprep.subr.bf16.mxu0 %v1301
    %1755 = vmatpush1.bf16.msra.mxu0 %v1300
    %1756 = vmatprep.subr.bf16.mxu0 %v1305
    %1757 = vmatpush1.bf16.msra.mxu0 %v1304
    %1758 = vmatprep.subr.bf16.mxu0 %v1309
    %1759 = vmatpush1.bf16.msra.mxu0 %v1308
    %1760 = vmatprep.subr.bf16.mxu0 %v1313
    %1761 = vmatpush1.bf16.msra.mxu0 %v1312
    %1762 = vmatprep.subr.bf16.mxu0 %v1317
    %1763 = vmatpush1.bf16.msra.mxu0 %v1316
    %1764 = vmatprep.subr.bf16.mxu0 %v1321
    %1765 = vmatpush1.bf16.msra.mxu0 %v1320
    %1766 = vmatprep.subr.bf16.mxu0 %v1325
    %1767 = vmatpush1.bf16.msra.mxu0 %v1324
    %1768 = vmatprep.subr.bf16.mxu0 %v1329
    %1769 = vmatpush1.bf16.msra.mxu0 %v1328
    %1770 = vmatprep.subr.bf16.mxu0 %v1333
    %1771 = vmatpush1.bf16.msra.mxu0 %v1332
    %1772 = vmatprep.subr.bf16.mxu0 %v1337
    %1773 = vmatpush1.bf16.msra.mxu0 %v1336
    %1774 = vmatprep.mubr.bf16.mxu0 %v523
    %1775 = vmatmul.mubr.bf16.gmra.mrb[0].mxu0 %v522
    %v1776 = vpop.f32.mrb[0].mxu0
    %v1777 = vadd.f32 %v1664, %v1776
    %v1778 = vpop.f32.mrb[0].mxu0
    %v1779 = vadd.f32 %v1666, %v1778
    %v1780 = vpop.f32.mrb[0].mxu0
    %v1781 = vadd.f32 %v1668, %v1780
    %v1782 = vpop.f32.mrb[0].mxu0
    %v1783 = vadd.f32 %v1670, %v1782
    %1784 = vmatprep.mubr.bf16.mxu0 %v530
    %1785 = vmatmul.mubr.bf16.gmra.mrb[0].mxu0 %v529
    %v1786 = vpop.f32.mrb[0].mxu0
    %v1787 = vadd.f32 %v1674, %v1786
    %v1788 = vpop.f32.mrb[0].mxu0
    %v1789 = vadd.f32 %v1676, %v1788
    %v1790 = vpop.f32.mrb[0].mxu0
    %v1791 = vadd.f32 %v1678, %v1790
    %v1792 = vpop.f32.mrb[0].mxu0
    %v1793 = vadd.f32 %v1680, %v1792
    %1794 = vmatprep.mubr.bf16.mxu0 %v537
    %1795 = vmatmul.mubr.bf16.gmra.mrb[0].mxu0 %v536
    %v1796 = vpop.f32.mrb[0].mxu0
    %v1797 = vadd.f32 %v1684, %v1796
    %v1798 = vpop.f32.mrb[0].mxu0
    %v1799 = vadd.f32 %v1686, %v1798
    %v1800 = vpop.f32.mrb[0].mxu0
    %v1801 = vadd.f32 %v1688, %v1800
    %v1802 = vpop.f32.mrb[0].mxu0
    %v1803 = vadd.f32 %v1690, %v1802
    %1804 = vmatprep.mubr.bf16.mxu0 %v544
    %1805 = vmatmul.mubr.bf16.gmra.mrb[0].mxu0 %v543
    %v1806 = vpop.f32.mrb[0].mxu0
    %v1807 = vadd.f32 %v1694, %v1806
    %v1808 = vpop.f32.mrb[0].mxu0
    %v1809 = vadd.f32 %v1696, %v1808
    %v1810 = vpop.f32.mrb[0].mxu0
    %v1811 = vadd.f32 %v1698, %v1810
    %v1812 = vpop.f32.mrb[0].mxu0
    %v1813 = vadd.f32 %v1700, %v1812
    %1814 = vmatprep.mubr.bf16.mxu0 %v551
    %1815 = vmatmul.mubr.bf16.gmra.mrb[0].mxu0 %v550
    %v1816 = vpop.f32.mrb[0].mxu0
    %v1817 = vadd.f32 %v1704, %v1816
    %v1818 = vpop.f32.mrb[0].mxu0
    %v1819 = vadd.f32 %v1706, %v1818
    %v1820 = vpop.f32.mrb[0].mxu0
    %v1821 = vadd.f32 %v1708, %v1820
    %v1822 = vpop.f32.mrb[0].mxu0
    %v1823 = vadd.f32 %v1710, %v1822
    %1824 = vmatprep.mubr.bf16.mxu0 %v558
    %1825 = vmatmul.mubr.bf16.gmra.mrb[0].mxu0 %v557
    %v1826 = vpop.f32.mrb[0].mxu0
    %v1827 = vadd.f32 %v1714, %v1826
    %v1828 = vpop.f32.mrb[0].mxu0
    %v1829 = vadd.f32 %v1716, %v1828
    %v1830 = vpop.f32.mrb[0].mxu0
    %v1831 = vadd.f32 %v1718, %v1830
    %v1832 = vpop.f32.mrb[0].mxu0
    %v1833 = vadd.f32 %v1720, %v1832
    %1834 = vmatprep.mubr.bf16.mxu0 %v565
    %1835 = vmatmul.mubr.bf16.gmra.mrb[0].mxu0 %v564
    %v1836 = vpop.f32.mrb[0].mxu0
    %v1837 = vadd.f32 %v1724, %v1836
    %v1838 = vpop.f32.mrb[0].mxu0
    %v1839 = vadd.f32 %v1726, %v1838
    %v1840 = vpop.f32.mrb[0].mxu0
    %v1841 = vadd.f32 %v1728, %v1840
    %v1842 = vpop.f32.mrb[0].mxu0
    %v1843 = vadd.f32 %v1730, %v1842
    %1844 = vmatprep.mubr.bf16.mxu0 %v572
    %1845 = vmatmul.mubr.bf16.gmra.mrb[0].mxu0 %v571
    %v1846 = vpop.f32.mrb[0].mxu0
    %v1847 = vadd.f32 %v1734, %v1846
    %v1848 = vpop.f32.mrb[0].mxu0
    %v1849 = vadd.f32 %v1736, %v1848
    %v1850 = vpop.f32.mrb[0].mxu0
    %v1851 = vadd.f32 %v1738, %v1850
    %v1852 = vpop.f32.mrb[0].mxu0
    %v1853 = vadd.f32 %v1740, %v1852
    %1854 = vdwg.mxu0
    %1855 = vmatprep.subr.bf16.mxu0 %v1341
    %1856 = vmatpush1.bf16.msra.mxu0 %v1340
    %1857 = vmatprep.subr.bf16.mxu0 %v1345
    %1858 = vmatpush1.bf16.msra.mxu0 %v1344
    %1859 = vmatprep.subr.bf16.mxu0 %v1349
    %1860 = vmatpush1.bf16.msra.mxu0 %v1348
    %1861 = vmatprep.subr.bf16.mxu0 %v1353
    %1862 = vmatpush1.bf16.msra.mxu0 %v1352
    %1863 = vmatprep.subr.bf16.mxu0 %v1357
    %1864 = vmatpush1.bf16.msra.mxu0 %v1356
    %1865 = vmatprep.subr.bf16.mxu0 %v1361
    %1866 = vmatpush1.bf16.msra.mxu0 %v1360
    %1867 = vmatprep.subr.bf16.mxu0 %v1365
    %1868 = vmatpush1.bf16.msra.mxu0 %v1364
    %1869 = vmatprep.subr.bf16.mxu0 %v1369
    %1870 = vmatpush1.bf16.msra.mxu0 %v1368
    %1871 = vmatprep.subr.bf16.mxu0 %v1373
    %1872 = vmatpush1.bf16.msra.mxu0 %v1372
    %1873 = vmatprep.subr.bf16.mxu0 %v1377
    %1874 = vmatpush1.bf16.msra.mxu0 %v1376
    %1875 = vmatprep.subr.bf16.mxu0 %v1381
    %1876 = vmatpush1.bf16.msra.mxu0 %v1380
    %1877 = vmatprep.subr.bf16.mxu0 %v1385
    %1878 = vmatpush1.bf16.msra.mxu0 %v1384
    %1879 = vmatprep.subr.bf16.mxu0 %v1389
    %1880 = vmatpush1.bf16.msra.mxu0 %v1388
    %1881 = vmatprep.subr.bf16.mxu0 %v1393
    %1882 = vmatpush1.bf16.msra.mxu0 %v1392
    %1883 = vmatprep.subr.bf16.mxu0 %v1397
    %1884 = vmatpush1.bf16.msra.mxu0 %v1396
    %1885 = vmatprep.subr.bf16.mxu0 %v1401
    %1886 = vmatpush1.bf16.msra.mxu0 %v1400
    %1887 = vmatprep.mubr.bf16.mxu0 %v525
    %1888 = vmatmul.mubr.bf16.gmra.mrb[0].mxu0 %v524
    %v1889 = vpop.f32.mrb[0].mxu0
    %v1890 = vadd.f32 %v1777, %v1889
    %v1891 = vpop.f32.mrb[0].mxu0
    %v1892 = vadd.f32 %v1779, %v1891
    %v1893 = vpop.f32.mrb[0].mxu0
    %v1894 = vadd.f32 %v1781, %v1893
    %v1895 = vpop.f32.mrb[0].mxu0
    %v1896 = vadd.f32 %v1783, %v1895
    %1897 = vmatprep.mubr.bf16.mxu0 %v532
    %1898 = vmatmul.mubr.bf16.gmra.mrb[0].mxu0 %v531
    %v1899 = vpop.f32.mrb[0].mxu0
    %v1900 = vadd.f32 %v1787, %v1899
    %v1901 = vpop.f32.mrb[0].mxu0
    %v1902 = vadd.f32 %v1789, %v1901
    %v1903 = vpop.f32.mrb[0].mxu0
    %v1904 = vadd.f32 %v1791, %v1903
    %v1905 = vpop.f32.mrb[0].mxu0
    %v1906 = vadd.f32 %v1793, %v1905
    %1907 = vmatprep.mubr.bf16.mxu0 %v539
    %1908 = vmatmul.mubr.bf16.gmra.mrb[0].mxu0 %v538
    %v1909 = vpop.f32.mrb[0].mxu0
    %v1910 = vadd.f32 %v1797, %v1909
    %v1911 = vpop.f32.mrb[0].mxu0
    %v1912 = vadd.f32 %v1799, %v1911
    %v1913 = vpop.f32.mrb[0].mxu0
    %v1914 = vadd.f32 %v1801, %v1913
    %v1915 = vpop.f32.mrb[0].mxu0
    %v1916 = vadd.f32 %v1803, %v1915
    %1917 = vmatprep.mubr.bf16.mxu0 %v546
    %1918 = vmatmul.mubr.bf16.gmra.mrb[0].mxu0 %v545
    %v1919 = vpop.f32.mrb[0].mxu0
    %v1920 = vadd.f32 %v1807, %v1919
    %v1921 = vpop.f32.mrb[0].mxu0
    %v1922 = vadd.f32 %v1809, %v1921
    %v1923 = vpop.f32.mrb[0].mxu0
    %v1924 = vadd.f32 %v1811, %v1923
    %v1925 = vpop.f32.mrb[0].mxu0
    %v1926 = vadd.f32 %v1813, %v1925
    %1927 = vmatprep.mubr.bf16.mxu0 %v553
    %1928 = vmatmul.mubr.bf16.gmra.mrb[0].mxu0 %v552
    %v1929 = vpop.f32.mrb[0].mxu0
    %v1930 = vadd.f32 %v1817, %v1929
    %v1931 = vpop.f32.mrb[0].mxu0
    %v1932 = vadd.f32 %v1819, %v1931
    %v1933 = vpop.f32.mrb[0].mxu0
    %v1934 = vadd.f32 %v1821, %v1933
    %v1935 = vpop.f32.mrb[0].mxu0
    %v1936 = vadd.f32 %v1823, %v1935
    %1937 = vmatprep.mubr.bf16.mxu0 %v560
    %1938 = vmatmul.mubr.bf16.gmra.mrb[0].mxu0 %v559
    %v1939 = vpop.f32.mrb[0].mxu0
    %v1940 = vadd.f32 %v1827, %v1939
    %v1941 = vpop.f32.mrb[0].mxu0
    %v1942 = vadd.f32 %v1829, %v1941
    %v1943 = vpop.f32.mrb[0].mxu0
    %v1944 = vadd.f32 %v1831, %v1943
    %v1945 = vpop.f32.mrb[0].mxu0
    %v1946 = vadd.f32 %v1833, %v1945
    %1947 = vmatprep.mubr.bf16.mxu0 %v567
    %1948 = vmatmul.mubr.bf16.gmra.mrb[0].mxu0 %v566
    %v1949 = vpop.f32.mrb[0].mxu0
    %v1950 = vadd.f32 %v1837, %v1949
    %v1951 = vpop.f32.mrb[0].mxu0
    %v1952 = vadd.f32 %v1839, %v1951
    %v1953 = vpop.f32.mrb[0].mxu0
    %v1954 = vadd.f32 %v1841, %v1953
    %v1955 = vpop.f32.mrb[0].mxu0
    %v1956 = vadd.f32 %v1843, %v1955
    %1957 = vmatprep.mubr.bf16.mxu0 %v574
    %1958 = vmatmul.mubr.bf16.gmra.mrb[0].mxu0 %v573
    %v1959 = vpop.f32.mrb[0].mxu0
    %v1960 = vadd.f32 %v1847, %v1959
    %v1961 = vpop.f32.mrb[0].mxu0
    %v1962 = vadd.f32 %v1849, %v1961
    %v1963 = vpop.f32.mrb[0].mxu0
    %v1964 = vadd.f32 %v1851, %v1963
    %v1965 = vpop.f32.mrb[0].mxu0
    %v1966 = vadd.f32 %v1853, %v1965
    %1967 = vdwg.mxu0
    %1968 = vmatprep.subr.bf16.mxu0 %v1405
    %1969 = vmatpush1.bf16.msra.mxu0 %v1404
    %1970 = vmatprep.subr.bf16.mxu0 0
    %1971 = vmatpush1.bf16.msra.mxu0 0
    %1972 = vmatprep.subr.bf16.mxu0 0
    %1973 = vmatpush1.bf16.msra.mxu0 0
    %1974 = vmatprep.subr.bf16.mxu0 0
    %1975 = vmatpush1.bf16.msra.mxu0 0
    %1976 = vmatprep.subr.bf16.mxu0 0
    %1977 = vmatpush1.bf16.msra.mxu0 0
    %1978 = vmatprep.subr.bf16.mxu0 0
    %1979 = vmatpush1.bf16.msra.mxu0 0
    %1980 = vmatprep.subr.bf16.mxu0 0
    %1981 = vmatpush1.bf16.msra.mxu0 0
    %1982 = vmatprep.subr.bf16.mxu0 0
    %1983 = vmatpush1.bf16.msra.mxu0 0
    %1984 = vmatprep.subr.bf16.mxu0 0
    %1985 = vmatpush1.bf16.msra.mxu0 0
    %1986 = vmatprep.subr.bf16.mxu0 0
    %1987 = vmatpush1.bf16.msra.mxu0 0
    %1988 = vmatprep.subr.bf16.mxu0 0
    %1989 = vmatpush1.bf16.msra.mxu0 0
    %1990 = vmatprep.subr.bf16.mxu0 0
    %1991 = vmatpush1.bf16.msra.mxu0 0
    %1992 = vmatprep.subr.bf16.mxu0 0
    %1993 = vmatpush1.bf16.msra.mxu0 0
    %1994 = vmatprep.subr.bf16.mxu0 0
    %1995 = vmatpush1.bf16.msra.mxu0 0
    %1996 = vmatprep.subr.bf16.mxu0 0
    %1997 = vmatpush1.bf16.msra.mxu0 0
    %1998 = vmatprep.subr.bf16.mxu0 0
    %1999 = vmatpush1.bf16.msra.mxu0 0
    %2000 = vmatprep.mubr.bf16.mxu0 0
    %2001 = vmatmul.mubr.bf16.gmra.mrb[0].mxu0 %v1606
    %v2002 = vpop.f32.mrb[0].mxu0
    %v2003 = vadd.f32 %v1890, %v2002
    %v2004 = vpop.f32.mrb[0].mxu0
    %v2005 = vadd.f32 %v1892, %v2004
    %v2006 = vpop.f32.mrb[0].mxu0
    %v2007 = vadd.f32 %v1894, %v2006
    %v2008 = vpop.f32.mrb[0].mxu0
    %v2009 = vadd.f32 %v1896, %v2008
    %2010 = vmatprep.mubr.bf16.mxu0 0
    %2011 = vmatmul.mubr.bf16.gmra.mrb[0].mxu0 %v1609
    %v2012 = vpop.f32.mrb[0].mxu0
    %v2013 = vadd.f32 %v1900, %v2012
    %v2014 = vpop.f32.mrb[0].mxu0
    %v2015 = vadd.f32 %v1902, %v2014
    %v2016 = vpop.f32.mrb[0].mxu0
    %v2017 = vadd.f32 %v1904, %v2016
    %v2018 = vpop.f32.mrb[0].mxu0
    %v2019 = vadd.f32 %v1906, %v2018
    %2020 = vmatprep.mubr.bf16.mxu0 0
    %2021 = vmatmul.mubr.bf16.gmra.mrb[0].mxu0 %v1612
    %v2022 = vpop.f32.mrb[0].mxu0
    %v2023 = vadd.f32 %v1910, %v2022
    %v2024 = vpop.f32.mrb[0].mxu0
    %v2025 = vadd.f32 %v1912, %v2024
    %v2026 = vpop.f32.mrb[0].mxu0
    %v2027 = vadd.f32 %v1914, %v2026
    %v2028 = vpop.f32.mrb[0].mxu0
    %v2029 = vadd.f32 %v1916, %v2028
    %2030 = vmatprep.mubr.bf16.mxu0 0
    %2031 = vmatmul.mubr.bf16.gmra.mrb[0].mxu0 %v1615
    %v2032 = vpop.f32.mrb[0].mxu0
    %v2033 = vadd.f32 %v1920, %v2032
    %v2034 = vpop.f32.mrb[0].mxu0
    %v2035 = vadd.f32 %v1922, %v2034
    %v2036 = vpop.f32.mrb[0].mxu0
    %v2037 = vadd.f32 %v1924, %v2036
    %v2038 = vpop.f32.mrb[0].mxu0
    %v2039 = vadd.f32 %v1926, %v2038
    %2040 = vmatprep.mubr.bf16.mxu0 0
    %2041 = vmatmul.mubr.bf16.gmra.mrb[0].mxu0 %v1618
    %v2042 = vpop.f32.mrb[0].mxu0
    %v2043 = vadd.f32 %v1930, %v2042
    %v2044 = vpop.f32.mrb[0].mxu0
    %v2045 = vadd.f32 %v1932, %v2044
    %v2046 = vpop.f32.mrb[0].mxu0
    %v2047 = vadd.f32 %v1934, %v2046
    %v2048 = vpop.f32.mrb[0].mxu0
    %v2049 = vadd.f32 %v1936, %v2048
    %2050 = vmatprep.mubr.bf16.mxu0 0
    %2051 = vmatmul.mubr.bf16.gmra.mrb[0].mxu0 %v1621
    %v2052 = vpop.f32.mrb[0].mxu0
    %v2053 = vadd.f32 %v1940, %v2052
    %v2054 = vpop.f32.mrb[0].mxu0
    %v2055 = vadd.f32 %v1942, %v2054
    %v2056 = vpop.f32.mrb[0].mxu0
    %v2057 = vadd.f32 %v1944, %v2056
    %v2058 = vpop.f32.mrb[0].mxu0
    %v2059 = vadd.f32 %v1946, %v2058
    %2060 = vmatprep.mubr.bf16.mxu0 0
    %2061 = vmatmul.mubr.bf16.gmra.mrb[0].mxu0 %v1624
    %v2062 = vpop.f32.mrb[0].mxu0
    %v2063 = vadd.f32 %v1950, %v2062
    %v2064 = vpop.f32.mrb[0].mxu0
    %v2065 = vadd.f32 %v1952, %v2064
    %v2066 = vpop.f32.mrb[0].mxu0
    %v2067 = vadd.f32 %v1954, %v2066
    %v2068 = vpop.f32.mrb[0].mxu0
    %v2069 = vadd.f32 %v1956, %v2068
    %2070 = vmatprep.mubr.bf16.mxu0 0
    %2071 = vmatmul.mubr.bf16.gmra.mrb[0].mxu0 %v1627
    %v2072 = vpop.f32.mrb[0].mxu0
    %v2073 = vadd.f32 %v1960, %v2072
    %v2074 = vpop.f32.mrb[0].mxu0
    %v2075 = vadd.f32 %v1962, %v2074
    %v2076 = vpop.f32.mrb[0].mxu0
    %v2077 = vadd.f32 %v1964, %v2076
    %v2078 = vpop.f32.mrb[0].mxu0
    %v2079 = vadd.f32 %v1966, %v2078
    %2080 = vdwg.mxu0
    %2081 = vmatprep.subr.bf16.mxu0 %v1215
    %2082 = vmatpush1.bf16.msra.mxu0 %v1214
    %2083 = vmatprep.subr.bf16.mxu0 %v1219
    %2084 = vmatpush1.bf16.msra.mxu0 %v1218
    %2085 = vmatprep.subr.bf16.mxu0 %v1223
    %2086 = vmatpush1.bf16.msra.mxu0 %v1222
    %2087 = vmatprep.subr.bf16.mxu0 %v1227
    %2088 = vmatpush1.bf16.msra.mxu0 %v1226
    %2089 = vmatprep.subr.bf16.mxu0 %v1231
    %2090 = vmatpush1.bf16.msra.mxu0 %v1230
    %2091 = vmatprep.subr.bf16.mxu0 %v1235
    %2092 = vmatpush1.bf16.msra.mxu0 %v1234
    %2093 = vmatprep.subr.bf16.mxu0 %v1239
    %2094 = vmatpush1.bf16.msra.mxu0 %v1238
    %2095 = vmatprep.subr.bf16.mxu0 %v1243
    %2096 = vmatpush1.bf16.msra.mxu0 %v1242
    %2097 = vmatprep.subr.bf16.mxu0 %v1247
    %2098 = vmatpush1.bf16.msra.mxu0 %v1246
    %2099 = vmatprep.subr.bf16.mxu0 %v1251
    %2100 = vmatpush1.bf16.msra.mxu0 %v1250
    %2101 = vmatprep.subr.bf16.mxu0 %v1255
    %2102 = vmatpush1.bf16.msra.mxu0 %v1254
    %2103 = vmatprep.subr.bf16.mxu0 %v1259
    %2104 = vmatpush1.bf16.msra.mxu0 %v1258
    %2105 = vmatprep.subr.bf16.mxu0 %v1263
    %2106 = vmatpush1.bf16.msra.mxu0 %v1262
    %2107 = vmatprep.subr.bf16.mxu0 %v1267
    %2108 = vmatpush1.bf16.msra.mxu0 %v1266
    %2109 = vmatprep.subr.bf16.mxu0 %v1271
    %2110 = vmatpush1.bf16.msra.mxu0 %v1270
    %2111 = vmatprep.subr.bf16.mxu0 %v1275
    %2112 = vmatpush1.bf16.msra.mxu0 %v1274
    %2113 = vmatprep.mubr.bf16.mxu0 %v521
    %2114 = vmatmul.mubr.bf16.gmra.mrb[0].mxu0 %v520
    %v2115 = vpop.f32.mrb[0].mxu0
    %v2116 = vadd.f32 %v335, %v2115
    %v2117 = vpop.f32.mrb[0].mxu0
    %v2118 = vadd.f32 %v339, %v2117
    %v2119 = vpop.f32.mrb[0].mxu0
    %v2120 = vadd.f32 %v335, %v2119
    %v2121 = vpop.f32.mrb[0].mxu0
    %v2122 = vadd.f32 %v339, %v2121
    %2123 = vmatprep.mubr.bf16.mxu0 %v528
    %2124 = vmatmul.mubr.bf16.gmra.mrb[0].mxu0 %v527
    %v2125 = vpop.f32.mrb[0].mxu0
    %v2126 = vadd.f32 %v335, %v2125
    %v2127 = vpop.f32.mrb[0].mxu0
    %v2128 = vadd.f32 %v339, %v2127
    %v2129 = vpop.f32.mrb[0].mxu0
    %v2130 = vadd.f32 %v335, %v2129
    %v2131 = vpop.f32.mrb[0].mxu0
    %v2132 = vadd.f32 %v339, %v2131
    %2133 = vmatprep.mubr.bf16.mxu0 %v535
    %2134 = vmatmul.mubr.bf16.gmra.mrb[0].mxu0 %v534
    %v2135 = vpop.f32.mrb[0].mxu0
    %v2136 = vadd.f32 %v335, %v2135
    %v2137 = vpop.f32.mrb[0].mxu0
    %v2138 = vadd.f32 %v339, %v2137
    %v2139 = vpop.f32.mrb[0].mxu0
    %v2140 = vadd.f32 %v335, %v2139
    %v2141 = vpop.f32.mrb[0].mxu0
    %v2142 = vadd.f32 %v339, %v2141
    %2143 = vmatprep.mubr.bf16.mxu0 %v542
    %2144 = vmatmul.mubr.bf16.gmra.mrb[0].mxu0 %v541
    %v2145 = vpop.f32.mrb[0].mxu0
    %v2146 = vadd.f32 %v335, %v2145
    %v2147 = vpop.f32.mrb[0].mxu0
    %v2148 = vadd.f32 %v339, %v2147
    %v2149 = vpop.f32.mrb[0].mxu0
    %v2150 = vadd.f32 %v335, %v2149
    %v2151 = vpop.f32.mrb[0].mxu0
    %v2152 = vadd.f32 %v339, %v2151
    %2153 = vmatprep.mubr.bf16.mxu0 %v549
    %2154 = vmatmul.mubr.bf16.gmra.mrb[0].mxu0 %v548
    %v2155 = vpop.f32.mrb[0].mxu0
    %v2156 = vadd.f32 %v335, %v2155
    %v2157 = vpop.f32.mrb[0].mxu0
    %v2158 = vadd.f32 %v339, %v2157
    %v2159 = vpop.f32.mrb[0].mxu0
    %v2160 = vadd.f32 %v335, %v2159
    %v2161 = vpop.f32.mrb[0].mxu0
    %v2162 = vadd.f32 %v339, %v2161
    %2163 = vmatprep.mubr.bf16.mxu0 %v556
    %2164 = vmatmul.mubr.bf16.gmra.mrb[0].mxu0 %v555
    %v2165 = vpop.f32.mrb[0].mxu0
    %v2166 = vadd.f32 %v335, %v2165
    %v2167 = vpop.f32.mrb[0].mxu0
    %v2168 = vadd.f32 %v339, %v2167
    %v2169 = vpop.f32.mrb[0].mxu0
    %v2170 = vadd.f32 %v335, %v2169
    %v2171 = vpop.f32.mrb[0].mxu0
    %v2172 = vadd.f32 %v339, %v2171
    %2173 = vmatprep.mubr.bf16.mxu0 %v563
    %2174 = vmatmul.mubr.bf16.gmra.mrb[0].mxu0 %v562
    %v2175 = vpop.f32.mrb[0].mxu0
    %v2176 = vadd.f32 %v335, %v2175
    %v2177 = vpop.f32.mrb[0].mxu0
    %v2178 = vadd.f32 %v339, %v2177
    %v2179 = vpop.f32.mrb[0].mxu0
    %v2180 = vadd.f32 %v335, %v2179
    %v2181 = vpop.f32.mrb[0].mxu0
    %v2182 = vadd.f32 %v339, %v2181
    %2183 = vmatprep.mubr.bf16.mxu0 %v570
    %2184 = vmatmul.mubr.bf16.gmra.mrb[0].mxu0 %v569
    %v2185 = vpop.f32.mrb[0].mxu0
    %v2186 = vadd.f32 %v335, %v2185
    %v2187 = vpop.f32.mrb[0].mxu0
    %v2188 = vadd.f32 %v339, %v2187
    %v2189 = vpop.f32.mrb[0].mxu0
    %v2190 = vadd.f32 %v335, %v2189
    %v2191 = vpop.f32.mrb[0].mxu0
    %v2192 = vadd.f32 %v339, %v2191
    %2193 = vdwg.mxu0
    %2194 = vmatprep.subr.bf16.mxu0 %v1279
    %2195 = vmatpush1.bf16.msra.mxu0 %v1278
    %2196 = vmatprep.subr.bf16.mxu0 %v1283
    %2197 = vmatpush1.bf16.msra.mxu0 %v1282
    %2198 = vmatprep.subr.bf16.mxu0 %v1287
    %2199 = vmatpush1.bf16.msra.mxu0 %v1286
    %2200 = vmatprep.subr.bf16.mxu0 %v1291
    %2201 = vmatpush1.bf16.msra.mxu0 %v1290
    %2202 = vmatprep.subr.bf16.mxu0 %v1295
    %2203 = vmatpush1.bf16.msra.mxu0 %v1294
    %2204 = vmatprep.subr.bf16.mxu0 %v1299
    %2205 = vmatpush1.bf16.msra.mxu0 %v1298
    %2206 = vmatprep.subr.bf16.mxu0 %v1303
    %2207 = vmatpush1.bf16.msra.mxu0 %v1302
    %2208 = vmatprep.subr.bf16.mxu0 %v1307
    %2209 = vmatpush1.bf16.msra.mxu0 %v1306
    %2210 = vmatprep.subr.bf16.mxu0 %v1311
    %2211 = vmatpush1.bf16.msra.mxu0 %v1310
    %2212 = vmatprep.subr.bf16.mxu0 %v1315
    %2213 = vmatpush1.bf16.msra.mxu0 %v1314
    %2214 = vmatprep.subr.bf16.mxu0 %v1319
    %2215 = vmatpush1.bf16.msra.mxu0 %v1318
    %2216 = vmatprep.subr.bf16.mxu0 %v1323
    %2217 = vmatpush1.bf16.msra.mxu0 %v1322
    %2218 = vmatprep.subr.bf16.mxu0 %v1327
    %2219 = vmatpush1.bf16.msra.mxu0 %v1326
    %2220 = vmatprep.subr.bf16.mxu0 %v1331
    %2221 = vmatpush1.bf16.msra.mxu0 %v1330
    %2222 = vmatprep.subr.bf16.mxu0 %v1335
    %2223 = vmatpush1.bf16.msra.mxu0 %v1334
    %2224 = vmatprep.subr.bf16.mxu0 %v1339
    %2225 = vmatpush1.bf16.msra.mxu0 %v1338
    %2226 = vmatprep.mubr.bf16.mxu0 %v523
    %2227 = vmatmul.mubr.bf16.gmra.mrb[0].mxu0 %v522
    %v2228 = vpop.f32.mrb[0].mxu0
    %v2229 = vadd.f32 %v2116, %v2228
    %v2230 = vpop.f32.mrb[0].mxu0
    %v2231 = vadd.f32 %v2118, %v2230
    %v2232 = vpop.f32.mrb[0].mxu0
    %v2233 = vadd.f32 %v2120, %v2232
    %v2234 = vpop.f32.mrb[0].mxu0
    %v2235 = vadd.f32 %v2122, %v2234
    %2236 = vmatprep.mubr.bf16.mxu0 %v530
    %2237 = vmatmul.mubr.bf16.gmra.mrb[0].mxu0 %v529
    %v2238 = vpop.f32.mrb[0].mxu0
    %v2239 = vadd.f32 %v2126, %v2238
    %v2240 = vpop.f32.mrb[0].mxu0
    %v2241 = vadd.f32 %v2128, %v2240
    %v2242 = vpop.f32.mrb[0].mxu0
    %v2243 = vadd.f32 %v2130, %v2242
    %v2244 = vpop.f32.mrb[0].mxu0
    %v2245 = vadd.f32 %v2132, %v2244
    %2246 = vmatprep.mubr.bf16.mxu0 %v537
    %2247 = vmatmul.mubr.bf16.gmra.mrb[0].mxu0 %v536
    %v2248 = vpop.f32.mrb[0].mxu0
    %v2249 = vadd.f32 %v2136, %v2248
    %v2250 = vpop.f32.mrb[0].mxu0
    %v2251 = vadd.f32 %v2138, %v2250
    %v2252 = vpop.f32.mrb[0].mxu0
    %v2253 = vadd.f32 %v2140, %v2252
    %v2254 = vpop.f32.mrb[0].mxu0
    %v2255 = vadd.f32 %v2142, %v2254
    %2256 = vmatprep.mubr.bf16.mxu0 %v544
    %2257 = vmatmul.mubr.bf16.gmra.mrb[0].mxu0 %v543
    %v2258 = vpop.f32.mrb[0].mxu0
    %v2259 = vadd.f32 %v2146, %v2258
    %v2260 = vpop.f32.mrb[0].mxu0
    %v2261 = vadd.f32 %v2148, %v2260
    %v2262 = vpop.f32.mrb[0].mxu0
    %v2263 = vadd.f32 %v2150, %v2262
    %v2264 = vpop.f32.mrb[0].mxu0
    %v2265 = vadd.f32 %v2152, %v2264
    %2266 = vmatprep.mubr.bf16.mxu0 %v551
    %2267 = vmatmul.mubr.bf16.gmra.mrb[0].mxu0 %v550
    %v2268 = vpop.f32.mrb[0].mxu0
    %v2269 = vadd.f32 %v2156, %v2268
    %v2270 = vpop.f32.mrb[0].mxu0
    %v2271 = vadd.f32 %v2158, %v2270
    %v2272 = vpop.f32.mrb[0].mxu0
    %v2273 = vadd.f32 %v2160, %v2272
    %v2274 = vpop.f32.mrb[0].mxu0
    %v2275 = vadd.f32 %v2162, %v2274
    %2276 = vmatprep.mubr.bf16.mxu0 %v558
    %2277 = vmatmul.mubr.bf16.gmra.mrb[0].mxu0 %v557
    %v2278 = vpop.f32.mrb[0].mxu0
    %v2279 = vadd.f32 %v2166, %v2278
    %v2280 = vpop.f32.mrb[0].mxu0
    %v2281 = vadd.f32 %v2168, %v2280
    %v2282 = vpop.f32.mrb[0].mxu0
    %v2283 = vadd.f32 %v2170, %v2282
    %v2284 = vpop.f32.mrb[0].mxu0
    %v2285 = vadd.f32 %v2172, %v2284
    %2286 = vmatprep.mubr.bf16.mxu0 %v565
    %2287 = vmatmul.mubr.bf16.gmra.mrb[0].mxu0 %v564
    %v2288 = vpop.f32.mrb[0].mxu0
    %v2289 = vadd.f32 %v2176, %v2288
    %v2290 = vpop.f32.mrb[0].mxu0
    %v2291 = vadd.f32 %v2178, %v2290
    %v2292 = vpop.f32.mrb[0].mxu0
    %v2293 = vadd.f32 %v2180, %v2292
    %v2294 = vpop.f32.mrb[0].mxu0
    %v2295 = vadd.f32 %v2182, %v2294
    %2296 = vmatprep.mubr.bf16.mxu0 %v572
    %2297 = vmatmul.mubr.bf16.gmra.mrb[0].mxu0 %v571
    %v2298 = vpop.f32.mrb[0].mxu0
    %v2299 = vadd.f32 %v2186, %v2298
    %v2300 = vpop.f32.mrb[0].mxu0
    %v2301 = vadd.f32 %v2188, %v2300
    %v2302 = vpop.f32.mrb[0].mxu0
    %v2303 = vadd.f32 %v2190, %v2302
    %v2304 = vpop.f32.mrb[0].mxu0
    %v2305 = vadd.f32 %v2192, %v2304
    %2306 = vdwg.mxu0
    %2307 = vmatprep.subr.bf16.mxu0 %v1343
    %2308 = vmatpush1.bf16.msra.mxu0 %v1342
    %2309 = vmatprep.subr.bf16.mxu0 %v1347
    %2310 = vmatpush1.bf16.msra.mxu0 %v1346
    %2311 = vmatprep.subr.bf16.mxu0 %v1351
    %2312 = vmatpush1.bf16.msra.mxu0 %v1350
    %2313 = vmatprep.subr.bf16.mxu0 %v1355
    %2314 = vmatpush1.bf16.msra.mxu0 %v1354
    %2315 = vmatprep.subr.bf16.mxu0 %v1359
    %2316 = vmatpush1.bf16.msra.mxu0 %v1358
    %2317 = vmatprep.subr.bf16.mxu0 %v1363
    %2318 = vmatpush1.bf16.msra.mxu0 %v1362
    %2319 = vmatprep.subr.bf16.mxu0 %v1367
    %2320 = vmatpush1.bf16.msra.mxu0 %v1366
    %2321 = vmatprep.subr.bf16.mxu0 %v1371
    %2322 = vmatpush1.bf16.msra.mxu0 %v1370
    %2323 = vmatprep.subr.bf16.mxu0 %v1375
    %2324 = vmatpush1.bf16.msra.mxu0 %v1374
    %2325 = vmatprep.subr.bf16.mxu0 %v1379
    %2326 = vmatpush1.bf16.msra.mxu0 %v1378
    %2327 = vmatprep.subr.bf16.mxu0 %v1383
    %2328 = vmatpush1.bf16.msra.mxu0 %v1382
    %2329 = vmatprep.subr.bf16.mxu0 %v1387
    %2330 = vmatpush1.bf16.msra.mxu0 %v1386
    %2331 = vmatprep.subr.bf16.mxu0 %v1391
    %2332 = vmatpush1.bf16.msra.mxu0 %v1390
    %2333 = vmatprep.subr.bf16.mxu0 %v1395
    %2334 = vmatpush1.bf16.msra.mxu0 %v1394
    %2335 = vmatprep.subr.bf16.mxu0 %v1399
    %2336 = vmatpush1.bf16.msra.mxu0 %v1398
    %2337 = vmatprep.subr.bf16.mxu0 %v1403
    %2338 = vmatpush1.bf16.msra.mxu0 %v1402
    %2339 = vmatprep.mubr.bf16.mxu0 %v525
    %2340 = vmatmul.mubr.bf16.gmra.mrb[0].mxu0 %v524
    %v2341 = vpop.f32.mrb[0].mxu0
    %v2342 = vadd.f32 %v2229, %v2341
    %v2343 = vpop.f32.mrb[0].mxu0
    %v2344 = vadd.f32 %v2231, %v2343
    %v2345 = vpop.f32.mrb[0].mxu0
    %v2346 = vadd.f32 %v2233, %v2345
    %v2347 = vpop.f32.mrb[0].mxu0
    %v2348 = vadd.f32 %v2235, %v2347
    %2349 = vmatprep.mubr.bf16.mxu0 %v532
    %2350 = vmatmul.mubr.bf16.gmra.mrb[0].mxu0 %v531
    %v2351 = vpop.f32.mrb[0].mxu0
    %v2352 = vadd.f32 %v2239, %v2351
    %v2353 = vpop.f32.mrb[0].mxu0
    %v2354 = vadd.f32 %v2241, %v2353
    %v2355 = vpop.f32.mrb[0].mxu0
    %v2356 = vadd.f32 %v2243, %v2355
    %v2357 = vpop.f32.mrb[0].mxu0
    %v2358 = vadd.f32 %v2245, %v2357
    %2359 = vmatprep.mubr.bf16.mxu0 %v539
    %2360 = vmatmul.mubr.bf16.gmra.mrb[0].mxu0 %v538
    %v2361 = vpop.f32.mrb[0].mxu0
    %v2362 = vadd.f32 %v2249, %v2361
    %v2363 = vpop.f32.mrb[0].mxu0
    %v2364 = vadd.f32 %v2251, %v2363
    %v2365 = vpop.f32.mrb[0].mxu0
    %v2366 = vadd.f32 %v2253, %v2365
    %v2367 = vpop.f32.mrb[0].mxu0
    %v2368 = vadd.f32 %v2255, %v2367
    %2369 = vmatprep.mubr.bf16.mxu0 %v546
    %2370 = vmatmul.mubr.bf16.gmra.mrb[0].mxu0 %v545
    %v2371 = vpop.f32.mrb[0].mxu0
    %v2372 = vadd.f32 %v2259, %v2371
    %v2373 = vpop.f32.mrb[0].mxu0
    %v2374 = vadd.f32 %v2261, %v2373
    %v2375 = vpop.f32.mrb[0].mxu0
    %v2376 = vadd.f32 %v2263, %v2375
    %v2377 = vpop.f32.mrb[0].mxu0
    %v2378 = vadd.f32 %v2265, %v2377
    %2379 = vmatprep.mubr.bf16.mxu0 %v553
    %2380 = vmatmul.mubr.bf16.gmra.mrb[0].mxu0 %v552
    %v2381 = vpop.f32.mrb[0].mxu0
    %v2382 = vadd.f32 %v2269, %v2381
    %v2383 = vpop.f32.mrb[0].mxu0
    %v2384 = vadd.f32 %v2271, %v2383
    %v2385 = vpop.f32.mrb[0].mxu0
    %v2386 = vadd.f32 %v2273, %v2385
    %v2387 = vpop.f32.mrb[0].mxu0
    %v2388 = vadd.f32 %v2275, %v2387
    %2389 = vmatprep.mubr.bf16.mxu0 %v560
    %2390 = vmatmul.mubr.bf16.gmra.mrb[0].mxu0 %v559
    %v2391 = vpop.f32.mrb[0].mxu0
    %v2392 = vadd.f32 %v2279, %v2391
    %v2393 = vpop.f32.mrb[0].mxu0
    %v2394 = vadd.f32 %v2281, %v2393
    %v2395 = vpop.f32.mrb[0].mxu0
    %v2396 = vadd.f32 %v2283, %v2395
    %v2397 = vpop.f32.mrb[0].mxu0
    %v2398 = vadd.f32 %v2285, %v2397
    %2399 = vmatprep.mubr.bf16.mxu0 %v567
    %2400 = vmatmul.mubr.bf16.gmra.mrb[0].mxu0 %v566
    %v2401 = vpop.f32.mrb[0].mxu0
    %v2402 = vadd.f32 %v2289, %v2401
    %v2403 = vpop.f32.mrb[0].mxu0
    %v2404 = vadd.f32 %v2291, %v2403
    %v2405 = vpop.f32.mrb[0].mxu0
    %v2406 = vadd.f32 %v2293, %v2405
    %v2407 = vpop.f32.mrb[0].mxu0
    %v2408 = vadd.f32 %v2295, %v2407
    %2409 = vmatprep.mubr.bf16.mxu0 %v574
    %2410 = vmatmul.mubr.bf16.gmra.mrb[0].mxu0 %v573
    %v2411 = vpop.f32.mrb[0].mxu0
    %v2412 = vadd.f32 %v2299, %v2411
    %v2413 = vpop.f32.mrb[0].mxu0
    %v2414 = vadd.f32 %v2301, %v2413
    %v2415 = vpop.f32.mrb[0].mxu0
    %v2416 = vadd.f32 %v2303, %v2415
    %v2417 = vpop.f32.mrb[0].mxu0
    %v2418 = vadd.f32 %v2305, %v2417
    %2419 = vdwg.mxu0
    %2420 = vmatprep.subr.bf16.mxu0 %v1407
    %2421 = vmatpush1.bf16.msra.mxu0 %v1406
    %2422 = vmatprep.subr.bf16.mxu0 0
    %2423 = vmatpush1.bf16.msra.mxu0 0
    %2424 = vmatprep.subr.bf16.mxu0 0
    %2425 = vmatpush1.bf16.msra.mxu0 0
    %2426 = vmatprep.subr.bf16.mxu0 0
    %2427 = vmatpush1.bf16.msra.mxu0 0
    %2428 = vmatprep.subr.bf16.mxu0 0
    %2429 = vmatpush1.bf16.msra.mxu0 0
    %2430 = vmatprep.subr.bf16.mxu0 0
    %2431 = vmatpush1.bf16.msra.mxu0 0
    %2432 = vmatprep.subr.bf16.mxu0 0
    %2433 = vmatpush1.bf16.msra.mxu0 0
    %2434 = vmatprep.subr.bf16.mxu0 0
    %2435 = vmatpush1.bf16.msra.mxu0 0
    %2436 = vmatprep.subr.bf16.mxu0 0
    %2437 = vmatpush1.bf16.msra.mxu0 0
    %2438 = vmatprep.subr.bf16.mxu0 0
    %2439 = vmatpush1.bf16.msra.mxu0 0
    %2440 = vmatprep.subr.bf16.mxu0 0
    %2441 = vmatpush1.bf16.msra.mxu0 0
    %2442 = vmatprep.subr.bf16.mxu0 0
    %2443 = vmatpush1.bf16.msra.mxu0 0
    %2444 = vmatprep.subr.bf16.mxu0 0
    %2445 = vmatpush1.bf16.msra.mxu0 0
    %2446 = vmatprep.subr.bf16.mxu0 0
    %2447 = vmatpush1.bf16.msra.mxu0 0
    %2448 = vmatprep.subr.bf16.mxu0 0
    %2449 = vmatpush1.bf16.msra.mxu0 0
    %2450 = vmatprep.subr.bf16.mxu0 0
    %2451 = vmatpush1.bf16.msra.mxu0 0
    %2452 = vmatprep.mubr.bf16.mxu0 0
    %2453 = vmatmul.mubr.bf16.gmra.mrb[0].mxu0 %v1606
    %v2454 = vpop.f32.mrb[0].mxu0
    %v2455 = vadd.f32 %v2342, %v2454
    %v2456 = vpop.f32.mrb[0].mxu0
    %v2457 = vadd.f32 %v2344, %v2456
    %v2458 = vpop.f32.mrb[0].mxu0
    %v2459 = vadd.f32 %v2346, %v2458
    %v2460 = vpop.f32.mrb[0].mxu0
    %v2461 = vadd.f32 %v2348, %v2460
    %2462 = vmatprep.mubr.bf16.mxu0 0
    %2463 = vmatmul.mubr.bf16.gmra.mrb[0].mxu0 %v1609
    %v2464 = vpop.f32.mrb[0].mxu0
    %v2465 = vadd.f32 %v2352, %v2464
    %v2466 = vpop.f32.mrb[0].mxu0
    %v2467 = vadd.f32 %v2354, %v2466
    %v2468 = vpop.f32.mrb[0].mxu0
    %v2469 = vadd.f32 %v2356, %v2468
    %v2470 = vpop.f32.mrb[0].mxu0
    %v2471 = vadd.f32 %v2358, %v2470
    %2472 = vmatprep.mubr.bf16.mxu0 0
    %2473 = vmatmul.mubr.bf16.gmra.mrb[0].mxu0 %v1612
    %v2474 = vpop.f32.mrb[0].mxu0
    %v2475 = vadd.f32 %v2362, %v2474
    %v2476 = vpop.f32.mrb[0].mxu0
    %v2477 = vadd.f32 %v2364, %v2476
    %v2478 = vpop.f32.mrb[0].mxu0
    %v2479 = vadd.f32 %v2366, %v2478
    %v2480 = vpop.f32.mrb[0].mxu0
    %v2481 = vadd.f32 %v2368, %v2480
    %2482 = vmatprep.mubr.bf16.mxu0 0
    %2483 = vmatmul.mubr.bf16.gmra.mrb[0].mxu0 %v1615
    %v2484 = vpop.f32.mrb[0].mxu0
    %v2485 = vadd.f32 %v2372, %v2484
    %v2486 = vpop.f32.mrb[0].mxu0
    %v2487 = vadd.f32 %v2374, %v2486
    %v2488 = vpop.f32.mrb[0].mxu0
    %v2489 = vadd.f32 %v2376, %v2488
    %v2490 = vpop.f32.mrb[0].mxu0
    %v2491 = vadd.f32 %v2378, %v2490
    %2492 = vmatprep.mubr.bf16.mxu0 0
    %2493 = vmatmul.mubr.bf16.gmra.mrb[0].mxu0 %v1618
    %v2494 = vpop.f32.mrb[0].mxu0
    %v2495 = vadd.f32 %v2382, %v2494
    %v2496 = vpop.f32.mrb[0].mxu0
    %v2497 = vadd.f32 %v2384, %v2496
    %v2498 = vpop.f32.mrb[0].mxu0
    %v2499 = vadd.f32 %v2386, %v2498
    %v2500 = vpop.f32.mrb[0].mxu0
    %v2501 = vadd.f32 %v2388, %v2500
    %2502 = vmatprep.mubr.bf16.mxu0 0
    %2503 = vmatmul.mubr.bf16.gmra.mrb[0].mxu0 %v1621
    %v2504 = vpop.f32.mrb[0].mxu0
    %v2505 = vadd.f32 %v2392, %v2504
    %v2506 = vpop.f32.mrb[0].mxu0
    %v2507 = vadd.f32 %v2394, %v2506
    %v2508 = vpop.f32.mrb[0].mxu0
    %v2509 = vadd.f32 %v2396, %v2508
    %v2510 = vpop.f32.mrb[0].mxu0
    %v2511 = vadd.f32 %v2398, %v2510
    %2512 = vmatprep.mubr.bf16.mxu0 0
    %2513 = vmatmul.mubr.bf16.gmra.mrb[0].mxu0 %v1624
    %v2514 = vpop.f32.mrb[0].mxu0
    %v2515 = vadd.f32 %v2402, %v2514
    %v2516 = vpop.f32.mrb[0].mxu0
    %v2517 = vadd.f32 %v2404, %v2516
    %v2518 = vpop.f32.mrb[0].mxu0
    %v2519 = vadd.f32 %v2406, %v2518
    %v2520 = vpop.f32.mrb[0].mxu0
    %v2521 = vadd.f32 %v2408, %v2520
    %2522 = vmatprep.mubr.bf16.mxu0 0
    %2523 = vmatmul.mubr.bf16.gmra.mrb[0].mxu0 %v1627
    %v2524 = vpop.f32.mrb[0].mxu0
    %v2525 = vadd.f32 %v2412, %v2524
    %v2526 = vpop.f32.mrb[0].mxu0
    %v2527 = vadd.f32 %v2414, %v2526
    %v2528 = vpop.f32.mrb[0].mxu0
    %v2529 = vadd.f32 %v2416, %v2528
    %v2530 = vpop.f32.mrb[0].mxu0
    %v2531 = vadd.f32 %v2418, %v2530
    %2532 = vdwg.mxu0
    %v2533 = vmax.f32 %v2003, 0.0
    %v2534 = vmax.f32 %v2005, 0.0
    %v2535 = vmax.f32 %v2455, 0.0
    %v2536 = vmax.f32 %v2457, 0.0
    %v2537 = vmax.f32 %v2007, 0.0
    %v2538 = vmax.f32 %v2009, 0.0
    %v2539 = vmax.f32 %v2459, 0.0
    %v2540 = vmax.f32 %v2461, 0.0
    %v2541 = vmax.f32 %v2013, 0.0
    %v2542 = vmax.f32 %v2015, 0.0
    %v2543 = vmax.f32 %v2465, 0.0
    %v2544 = vmax.f32 %v2467, 0.0
    %v2545 = vmax.f32 %v2017, 0.0
    %v2546 = vmax.f32 %v2019, 0.0
    %v2547 = vmax.f32 %v2469, 0.0
    %v2548 = vmax.f32 %v2471, 0.0
    %v2549 = vmax.f32 %v2023, 0.0
    %v2550 = vmax.f32 %v2025, 0.0
    %v2551 = vmax.f32 %v2475, 0.0
    %v2552 = vmax.f32 %v2477, 0.0
    %v2553 = vmax.f32 %v2027, 0.0
    %v2554 = vmax.f32 %v2029, 0.0
    %v2555 = vmax.f32 %v2479, 0.0
    %v2556 = vmax.f32 %v2481, 0.0
    %v2557 = vmax.f32 %v2033, 0.0
    %v2558 = vmax.f32 %v2035, 0.0
    %v2559 = vmax.f32 %v2485, 0.0
    %v2560 = vmax.f32 %v2487, 0.0
    %v2561 = vmax.f32 %v2037, 0.0
    %v2562 = vmax.f32 %v2039, 0.0
    %v2563 = vmax.f32 %v2489, 0.0
    %v2564 = vmax.f32 %v2491, 0.0
    %v2565 = vmax.f32 %v2043, 0.0
    %v2566 = vmax.f32 %v2045, 0.0
    %v2567 = vmax.f32 %v2495, 0.0
    %v2568 = vmax.f32 %v2497, 0.0
    %v2569 = vmax.f32 %v2047, 0.0
    %v2570 = vmax.f32 %v2049, 0.0
    %v2571 = vmax.f32 %v2499, 0.0
    %v2572 = vmax.f32 %v2501, 0.0
    %v2573 = vmax.f32 %v2053, 0.0
    %v2574 = vmax.f32 %v2055, 0.0
    %v2575 = vmax.f32 %v2505, 0.0
    %v2576 = vmax.f32 %v2507, 0.0
    %v2577 = vmax.f32 %v2057, 0.0
    %v2578 = vmax.f32 %v2059, 0.0
    %v2579 = vmax.f32 %v2509, 0.0
    %v2580 = vmax.f32 %v2511, 0.0
    %v2581 = vmax.f32 %v2063, 0.0
    %v2582 = vmax.f32 %v2065, 0.0
    %v2583 = vmax.f32 %v2515, 0.0
    %v2584 = vmax.f32 %v2517, 0.0
    %v2585 = vmax.f32 %v2067, 0.0
    %v2586 = vmax.f32 %v2069, 0.0
    %v2587 = vmax.f32 %v2519, 0.0
    %v2588 = vmax.f32 %v2521, 0.0
    %v2589 = vmax.f32 %v2073, 0.0
    %v2590 = vmax.f32 %v2075, 0.0
    %v2591 = vmax.f32 %v2525, 0.0
    %v2592 = vmax.f32 %v2527, 0.0
    %v2593 = vmax.f32 %v2077, 0.0
    %v2594 = vmax.f32 %v2079, 0.0
    %v2595 = vmax.f32 %v2529, 0.0
    %v2596 = vmax.f32 %v2531, 0.0
    %v2597 = vpack.c.bf16 %v2537, %v2533
    %v2598 = vpack.c.bf16 %v2538, %v2534
    %v2599 = vpack.c.bf16 %v2539, %v2535
    %v2600 = vpack.c.bf16 %v2540, %v2536
    %v2601 = vpack.c.bf16 %v2545, %v2541
    %v2602 = vpack.c.bf16 %v2546, %v2542
    %v2603 = vpack.c.bf16 %v2547, %v2543
    %v2604 = vpack.c.bf16 %v2548, %v2544
    %v2605 = vpack.c.bf16 %v2553, %v2549
    %v2606 = vpack.c.bf16 %v2554, %v2550
    %v2607 = vpack.c.bf16 %v2555, %v2551
    %v2608 = vpack.c.bf16 %v2556, %v2552
    %v2609 = vpack.c.bf16 %v2561, %v2557
    %v2610 = vpack.c.bf16 %v2562, %v2558
    %v2611 = vpack.c.bf16 %v2563, %v2559
    %v2612 = vpack.c.bf16 %v2564, %v2560
    %v2613 = vpack.c.bf16 %v2569, %v2565
    %v2614 = vpack.c.bf16 %v2570, %v2566
    %v2615 = vpack.c.bf16 %v2571, %v2567
    %v2616 = vpack.c.bf16 %v2572, %v2568
    %v2617 = vpack.c.bf16 %v2577, %v2573
    %v2618 = vpack.c.bf16 %v2578, %v2574
    %v2619 = vpack.c.bf16 %v2579, %v2575
    %v2620 = vpack.c.bf16 %v2580, %v2576
    %v2621 = vpack.c.bf16 %v2585, %v2581
    %v2622 = vpack.c.bf16 %v2586, %v2582
    %v2623 = vpack.c.bf16 %v2587, %v2583
    %v2624 = vpack.c.bf16 %v2588, %v2584
    %v2625 = vpack.c.bf16 %v2593, %v2589
    %v2626 = vpack.c.bf16 %v2594, %v2590
    %v2627 = vpack.c.bf16 %v2595, %v2591
    %v2628 = vpack.c.bf16 %v2596, %v2592
    %v2629 = vld [vmem:[#allocation5] sm:$0xff]
    %v2630 = vld [vmem:[#allocation5 + $0x8] sm:$0xff]
    %v2631 = vld [vmem:[#allocation5 + $0x10] sm:$0xff]
    %v2632 = vld [vmem:[#allocation5 + $0x18] sm:$0xff]
    %v2633 = vld [vmem:[#allocation5 + $0x20] sm:$0xff]
    %v2634 = vld [vmem:[#allocation5 + $0x28] sm:$0xff]
    %v2635 = vld [vmem:[#allocation5 + $0x30] sm:$0xff]
    %v2636 = vld [vmem:[#allocation5 + $0x38] sm:$0xff]
    %v2637 = vld [vmem:[#allocation5 + $0x40] sm:$0xff]
    %v2638 = vld [vmem:[#allocation5 + $0x48] sm:$0xff]
    %v2639 = vld [vmem:[#allocation5 + $0x50] sm:$0xff]
    %v2640 = vld [vmem:[#allocation5 + $0x58] sm:$0xff]
    %v2641 = vld [vmem:[#allocation5 + $0x60] sm:$0xff]
    %v2642 = vld [vmem:[#allocation5 + $0x68] sm:$0xff]
    %v2643 = vld [vmem:[#allocation5 + $0x70] sm:$0xff]
    %v2644 = vld [vmem:[#allocation5 + $0x78] sm:$0xff]
    %v2645 = vld [vmem:[#allocation5 + $0x80] sm:$0xff]
    %v2646 = vld [vmem:[#allocation5 + $0x88] sm:$0xff]
    %v2647 = vld [vmem:[#allocation5 + $0x90] sm:$0xff]
    %v2648 = vld [vmem:[#allocation5 + $0x98] sm:$0xff]
    %v2649 = vld [vmem:[#allocation5 + $0xa0] sm:$0xff]
    %v2650 = vld [vmem:[#allocation5 + $0xa8] sm:$0xff]
    %v2651 = vld [vmem:[#allocation5 + $0xb0] sm:$0xff]
    %v2652 = vld [vmem:[#allocation5 + $0xb8] sm:$0xff]
    %v2653 = vld [vmem:[#allocation5 + $0xc0] sm:$0xff]
    %v2654 = vld [vmem:[#allocation5 + $0xc8] sm:$0xff]
    %v2655 = vld [vmem:[#allocation5 + $0xd0] sm:$0xff]
    %v2656 = vld [vmem:[#allocation5 + $0xd8] sm:$0xff]
    %v2657 = vld [vmem:[#allocation5 + $0xe0] sm:$0xff]
    %v2658 = vld [vmem:[#allocation5 + $0xe8] sm:$0xff]
    %v2659 = vld [vmem:[#allocation5 + $0xf0] sm:$0xff]
    %v2660 = vld [vmem:[#allocation5 + $0xf8] sm:$0xff]
    %v2661 = vld [vmem:[#allocation5 + $0x100] sm:$0xff]
    %v2662 = vld [vmem:[#allocation5 + $0x108] sm:$0xff]
    %v2663 = vld [vmem:[#allocation5 + $0x110] sm:$0xff]
    %v2664 = vld [vmem:[#allocation5 + $0x118] sm:$0xff]
    %v2665 = vld [vmem:[#allocation5 + $0x120] sm:$0xff]
    %v2666 = vld [vmem:[#allocation5 + $0x128] sm:$0xff]
    %v2667 = vld [vmem:[#allocation5 + $0x130] sm:$0xff]
    %v2668 = vld [vmem:[#allocation5 + $0x138] sm:$0xff]
    %v2669 = vld [vmem:[#allocation5 + $0x140] sm:$0xff]
    %v2670 = vld [vmem:[#allocation5 + $0x148] sm:$0xff]
    %v2671 = vld [vmem:[#allocation5 + $0x150] sm:$0xff]
    %v2672 = vld [vmem:[#allocation5 + $0x158] sm:$0xff]
    %v2673 = vld [vmem:[#allocation5 + $0x160] sm:$0xff]
    %v2674 = vld [vmem:[#allocation5 + $0x168] sm:$0xff]
    %v2675 = vld [vmem:[#allocation5 + $0x170] sm:$0xff]
    %v2676 = vld [vmem:[#allocation5 + $0x178] sm:$0xff]
    %v2677 = vld [vmem:[#allocation5 + $0x180] sm:$0xff]
    %v2678 = vld [vmem:[#allocation5 + $0x188] sm:$0xff]
    %v2679 = vld [vmem:[#allocation5 + $0x190] sm:$0xff]
    %v2680 = vld [vmem:[#allocation5 + $0x198] sm:$0xff]
    %v2681 = vld [vmem:[#allocation5 + $0x1a0] sm:$0xff]
    %v2682 = vld [vmem:[#allocation5 + $0x1a8] sm:$0xff]
    %v2683 = vld [vmem:[#allocation5 + $0x1b0] sm:$0xff]
    %v2684 = vld [vmem:[#allocation5 + $0x1b8] sm:$0xff]
    %v2685 = vld [vmem:[#allocation5 + $0x1c0] sm:$0xff]
    %v2686 = vld [vmem:[#allocation5 + $0x1c8] sm:$0xff]
    %v2687 = vld [vmem:[#allocation5 + $0x1d0] sm:$0xff]
    %v2688 = vld [vmem:[#allocation5 + $0x1d8] sm:$0xff]
    %v2689 = vld [vmem:[#allocation5 + $0x1e0] sm:$0xff]
    %v2690 = vld [vmem:[#allocation5 + $0x1e8] sm:$0xff]
    %v2691 = vld [vmem:[#allocation5 + $0x1f0] sm:$0xff]
    %v2692 = vld [vmem:[#allocation5 + $0x1f8] sm:$0xff]
    %v2693 = vld [vmem:[#allocation5 + $0x200] sm:$0xff]
    %v2694 = vld [vmem:[#allocation5 + $0x208] sm:$0xff]
    %v2695 = vld [vmem:[#allocation5 + $0x210] sm:$0xff]
    %v2696 = vld [vmem:[#allocation5 + $0x218] sm:$0xff]
    %v2697 = vld [vmem:[#allocation5 + $0x220] sm:$0xff]
    %v2698 = vld [vmem:[#allocation5 + $0x228] sm:$0xff]
    %v2699 = vld [vmem:[#allocation5 + $0x230] sm:$0xff]
    %v2700 = vld [vmem:[#allocation5 + $0x238] sm:$0xff]
    %v2701 = vld [vmem:[#allocation5 + $0x240] sm:$0xff]
    %v2702 = vld [vmem:[#allocation5 + $0x248] sm:$0xff]
    %v2703 = vld [vmem:[#allocation5 + $0x250] sm:$0xff]
    %v2704 = vld [vmem:[#allocation5 + $0x258] sm:$0xff]
    %v2705 = vld [vmem:[#allocation5 + $0x260] sm:$0xff]
    %v2706 = vld [vmem:[#allocation5 + $0x268] sm:$0xff]
    %v2707 = vld [vmem:[#allocation5 + $0x270] sm:$0xff]
    %v2708 = vld [vmem:[#allocation5 + $0x278] sm:$0xff]
    %v2709 = vld [vmem:[#allocation5 + $0x280] sm:$0xff]
    %v2710 = vld [vmem:[#allocation5 + $0x288] sm:$0xff]
    %v2711 = vld [vmem:[#allocation5 + $0x290] sm:$0xff]
    %v2712 = vld [vmem:[#allocation5 + $0x298] sm:$0xff]
    %v2713 = vld [vmem:[#allocation5 + $0x2a0] sm:$0xff]
    %v2714 = vld [vmem:[#allocation5 + $0x2a8] sm:$0xff]
    %v2715 = vld [vmem:[#allocation5 + $0x2b0] sm:$0xff]
    %v2716 = vld [vmem:[#allocation5 + $0x2b8] sm:$0xff]
    %v2717 = vld [vmem:[#allocation5 + $0x2c0] sm:$0xff]
    %v2718 = vld [vmem:[#allocation5 + $0x2c8] sm:$0xff]
    %v2719 = vld [vmem:[#allocation5 + $0x2d0] sm:$0xff]
    %v2720 = vld [vmem:[#allocation5 + $0x2d8] sm:$0xff]
    %v2721 = vld [vmem:[#allocation5 + $0x2e0] sm:$0xff]
    %v2722 = vld [vmem:[#allocation5 + $0x2e8] sm:$0xff]
    %v2723 = vld [vmem:[#allocation5 + $0x2f0] sm:$0xff]
    %v2724 = vld [vmem:[#allocation5 + $0x2f8] sm:$0xff]
    %v2725 = vld [vmem:[#allocation5 + $0x300] sm:$0xff]
    %v2726 = vld [vmem:[#allocation5 + $0x308] sm:$0xff]
    %v2727 = vld [vmem:[#allocation5 + $0x310] sm:$0xff]
    %v2728 = vld [vmem:[#allocation5 + $0x318] sm:$0xff]
    %v2729 = vld [vmem:[#allocation5 + $0x320] sm:$0xff]
    %v2730 = vld [vmem:[#allocation5 + $0x328] sm:$0xff]
    %v2731 = vld [vmem:[#allocation5 + $0x330] sm:$0xff]
    %v2732 = vld [vmem:[#allocation5 + $0x338] sm:$0xff]
    %v2733 = vld [vmem:[#allocation5 + $0x340] sm:$0xff]
    %v2734 = vld [vmem:[#allocation5 + $0x348] sm:$0xff]
    %v2735 = vld [vmem:[#allocation5 + $0x350] sm:$0xff]
    %v2736 = vld [vmem:[#allocation5 + $0x358] sm:$0xff]
    %v2737 = vld [vmem:[#allocation5 + $0x360] sm:$0xff]
    %v2738 = vld [vmem:[#allocation5 + $0x368] sm:$0xff]
    %v2739 = vld [vmem:[#allocation5 + $0x370] sm:$0xff]
    %v2740 = vld [vmem:[#allocation5 + $0x378] sm:$0xff]
    %v2741 = vld [vmem:[#allocation5 + $0x380] sm:$0xff]
    %v2742 = vld [vmem:[#allocation5 + $0x388] sm:$0xff]
    %v2743 = vld [vmem:[#allocation5 + $0x390] sm:$0xff]
    %v2744 = vld [vmem:[#allocation5 + $0x398] sm:$0xff]
    %v2745 = vld [vmem:[#allocation5 + $0x3a0] sm:$0xff]
    %v2746 = vld [vmem:[#allocation5 + $0x3a8] sm:$0xff]
    %v2747 = vld [vmem:[#allocation5 + $0x3b0] sm:$0xff]
    %v2748 = vld [vmem:[#allocation5 + $0x3b8] sm:$0xff]
    %v2749 = vld [vmem:[#allocation5 + $0x3c0] sm:$0xff]
    %v2750 = vld [vmem:[#allocation5 + $0x3c8] sm:$0xff]
    %v2751 = vld [vmem:[#allocation5 + $0x3d0] sm:$0xff]
    %v2752 = vld [vmem:[#allocation5 + $0x3d8] sm:$0xff]
    %v2753 = vld [vmem:[#allocation5 + $0x3e0] sm:$0xff]
    %v2754 = vld [vmem:[#allocation5 + $0x3e8] sm:$0xff]
    %v2755 = vld [vmem:[#allocation5 + $0x3f0] sm:$0xff]
    %v2756 = vld [vmem:[#allocation5 + $0x3f8] sm:$0xff]
    %v2757 = vld [vmem:[%s4] sm:$0xf]
    %v2759 = vlaneseq
    %v2760 = vshrl.u32 %v2759, 7
    %v2761 = vsub.s32 0, %v2760
    %v2762 = vrot.slane %v2757, %v2761
    %v2763 = vlaneseq
    %v2764 = vshrl.u32 %v2763, 7
    %v2765 = vsub.s32 1, %v2764
    %v2766 = vrot.slane %v2757, %v2765
    %v2767 = vlaneseq
    %v2768 = vshrl.u32 %v2767, 7
    %v2769 = vsub.s32 2, %v2768
    %v2770 = vrot.slane %v2757, %v2769
    %v2771 = vlaneseq
    %v2772 = vshrl.u32 %v2771, 7
    %v2773 = vsub.s32 3, %v2772
    %v2774 = vrot.slane %v2757, %v2773
    %v2907 = vunpack.c.l.b16 %v2629
    %v2908 = vunpack.c.h.b16 %v2629
    %v2909 = vunpack.c.l.b16 %v2630
    %v2910 = vunpack.c.h.b16 %v2630
    %v2911 = vunpack.c.l.b16 %v2631
    %v2912 = vunpack.c.h.b16 %v2631
    %v2913 = vunpack.c.l.b16 %v2632
    %v2914 = vunpack.c.h.b16 %v2632
    %v2915 = vunpack.c.l.b16 %v2633
    %v2916 = vunpack.c.h.b16 %v2633
    %v2917 = vunpack.c.l.b16 %v2634
    %v2918 = vunpack.c.h.b16 %v2634
    %v2919 = vunpack.c.l.b16 %v2635
    %v2920 = vunpack.c.h.b16 %v2635
    %v2921 = vunpack.c.l.b16 %v2636
    %v2922 = vunpack.c.h.b16 %v2636
    %v2923 = vunpack.c.l.b16 %v2637
    %v2924 = vunpack.c.h.b16 %v2637
    %v2925 = vunpack.c.l.b16 %v2638
    %v2926 = vunpack.c.h.b16 %v2638
    %v2927 = vunpack.c.l.b16 %v2639
    %v2928 = vunpack.c.h.b16 %v2639
    %v2929 = vunpack.c.l.b16 %v2640
    %v2930 = vunpack.c.h.b16 %v2640
    %v2931 = vunpack.c.l.b16 %v2641
    %v2932 = vunpack.c.h.b16 %v2641
    %v2933 = vunpack.c.l.b16 %v2642
    %v2934 = vunpack.c.h.b16 %v2642
    %v2935 = vunpack.c.l.b16 %v2643
    %v2936 = vunpack.c.h.b16 %v2643
    %v2937 = vunpack.c.l.b16 %v2644
    %v2938 = vunpack.c.h.b16 %v2644
    %v2939 = vunpack.c.l.b16 %v2645
    %v2940 = vunpack.c.h.b16 %v2645
    %v2941 = vunpack.c.l.b16 %v2646
    %v2942 = vunpack.c.h.b16 %v2646
    %v2943 = vunpack.c.l.b16 %v2647
    %v2944 = vunpack.c.h.b16 %v2647
    %v2945 = vunpack.c.l.b16 %v2648
    %v2946 = vunpack.c.h.b16 %v2648
    %v2947 = vunpack.c.l.b16 %v2649
    %v2948 = vunpack.c.h.b16 %v2649
    %v2949 = vunpack.c.l.b16 %v2650
    %v2950 = vunpack.c.h.b16 %v2650
    %v2951 = vunpack.c.l.b16 %v2651
    %v2952 = vunpack.c.h.b16 %v2651
    %v2953 = vunpack.c.l.b16 %v2652
    %v2954 = vunpack.c.h.b16 %v2652
    %v2955 = vunpack.c.l.b16 %v2653
    %v2956 = vunpack.c.h.b16 %v2653
    %v2957 = vunpack.c.l.b16 %v2654
    %v2958 = vunpack.c.h.b16 %v2654
    %v2959 = vunpack.c.l.b16 %v2655
    %v2960 = vunpack.c.h.b16 %v2655
    %v2961 = vunpack.c.l.b16 %v2656
    %v2962 = vunpack.c.h.b16 %v2656
    %v2963 = vunpack.c.l.b16 %v2657
    %v2964 = vunpack.c.h.b16 %v2657
    %v2965 = vunpack.c.l.b16 %v2658
    %v2966 = vunpack.c.h.b16 %v2658
    %v2967 = vunpack.c.l.b16 %v2659
    %v2968 = vunpack.c.h.b16 %v2659
    %v2969 = vunpack.c.l.b16 %v2660
    %v2970 = vunpack.c.h.b16 %v2660
    %v2971 = vunpack.c.l.b16 %v2661
    %v2972 = vunpack.c.h.b16 %v2661
    %v2973 = vunpack.c.l.b16 %v2662
    %v2974 = vunpack.c.h.b16 %v2662
    %v2975 = vunpack.c.l.b16 %v2663
    %v2976 = vunpack.c.h.b16 %v2663
    %v2977 = vunpack.c.l.b16 %v2664
    %v2978 = vunpack.c.h.b16 %v2664
    %v2979 = vunpack.c.l.b16 %v2665
    %v2980 = vunpack.c.h.b16 %v2665
    %v2981 = vunpack.c.l.b16 %v2666
    %v2982 = vunpack.c.h.b16 %v2666
    %v2983 = vunpack.c.l.b16 %v2667
    %v2984 = vunpack.c.h.b16 %v2667
    %v2985 = vunpack.c.l.b16 %v2668
    %v2986 = vunpack.c.h.b16 %v2668
    %v2987 = vunpack.c.l.b16 %v2669
    %v2988 = vunpack.c.h.b16 %v2669
    %v2989 = vunpack.c.l.b16 %v2670
    %v2990 = vunpack.c.h.b16 %v2670
    %v2991 = vunpack.c.l.b16 %v2671
    %v2992 = vunpack.c.h.b16 %v2671
    %v2993 = vunpack.c.l.b16 %v2672
    %v2994 = vunpack.c.h.b16 %v2672
    %v2995 = vunpack.c.l.b16 %v2673
    %v2996 = vunpack.c.h.b16 %v2673
    %v2997 = vunpack.c.l.b16 %v2674
    %v2998 = vunpack.c.h.b16 %v2674
    %v2999 = vunpack.c.l.b16 %v2675
    %v3000 = vunpack.c.h.b16 %v2675
    %v3001 = vunpack.c.l.b16 %v2676
    %v3002 = vunpack.c.h.b16 %v2676
    %v3003 = vunpack.c.l.b16 %v2677
    %v3004 = vunpack.c.h.b16 %v2677
    %v3005 = vunpack.c.l.b16 %v2678
    %v3006 = vunpack.c.h.b16 %v2678
    %v3007 = vunpack.c.l.b16 %v2679
    %v3008 = vunpack.c.h.b16 %v2679
    %v3009 = vunpack.c.l.b16 %v2680
    %v3010 = vunpack.c.h.b16 %v2680
    %v3011 = vunpack.c.l.b16 %v2681
    %v3012 = vunpack.c.h.b16 %v2681
    %v3013 = vunpack.c.l.b16 %v2682
    %v3014 = vunpack.c.h.b16 %v2682
    %v3015 = vunpack.c.l.b16 %v2683
    %v3016 = vunpack.c.h.b16 %v2683
    %v3017 = vunpack.c.l.b16 %v2684
    %v3018 = vunpack.c.h.b16 %v2684
    %v3019 = vunpack.c.l.b16 %v2685
    %v3020 = vunpack.c.h.b16 %v2685
    %v3021 = vunpack.c.l.b16 %v2686
    %v3022 = vunpack.c.h.b16 %v2686
    %v3023 = vunpack.c.l.b16 %v2687
    %v3024 = vunpack.c.h.b16 %v2687
    %v3025 = vunpack.c.l.b16 %v2688
    %v3026 = vunpack.c.h.b16 %v2688
    %v3027 = vunpack.c.l.b16 %v2689
    %v3028 = vunpack.c.h.b16 %v2689
    %v3029 = vunpack.c.l.b16 %v2690
    %v3030 = vunpack.c.h.b16 %v2690
    %v3031 = vunpack.c.l.b16 %v2691
    %v3032 = vunpack.c.h.b16 %v2691
    %v3033 = vunpack.c.l.b16 %v2692
    %v3034 = vunpack.c.h.b16 %v2692
    %v3035 = vunpack.c.l.b16 %v2693
    %v3036 = vunpack.c.h.b16 %v2693
    %v3037 = vunpack.c.l.b16 %v2694
    %v3038 = vunpack.c.h.b16 %v2694
    %v3039 = vunpack.c.l.b16 %v2695
    %v3040 = vunpack.c.h.b16 %v2695
    %v3041 = vunpack.c.l.b16 %v2696
    %v3042 = vunpack.c.h.b16 %v2696
    %v3043 = vunpack.c.l.b16 %v2697
    %v3044 = vunpack.c.h.b16 %v2697
    %v3045 = vunpack.c.l.b16 %v2698
    %v3046 = vunpack.c.h.b16 %v2698
    %v3047 = vunpack.c.l.b16 %v2699
    %v3048 = vunpack.c.h.b16 %v2699
    %v3049 = vunpack.c.l.b16 %v2700
    %v3050 = vunpack.c.h.b16 %v2700
    %v3051 = vunpack.c.l.b16 %v2701
    %v3052 = vunpack.c.h.b16 %v2701
    %v3053 = vunpack.c.l.b16 %v2702
    %v3054 = vunpack.c.h.b16 %v2702
    %v3055 = vunpack.c.l.b16 %v2703
    %v3056 = vunpack.c.h.b16 %v2703
    %v3057 = vunpack.c.l.b16 %v2704
    %v3058 = vunpack.c.h.b16 %v2704
    %v3059 = vunpack.c.l.b16 %v2705
    %v3060 = vunpack.c.h.b16 %v2705
    %v3061 = vunpack.c.l.b16 %v2706
    %v3062 = vunpack.c.h.b16 %v2706
    %v3063 = vunpack.c.l.b16 %v2707
    %v3064 = vunpack.c.h.b16 %v2707
    %v3065 = vunpack.c.l.b16 %v2708
    %v3066 = vunpack.c.h.b16 %v2708
    %v3067 = vunpack.c.l.b16 %v2709
    %v3068 = vunpack.c.h.b16 %v2709
    %v3069 = vunpack.c.l.b16 %v2710
    %v3070 = vunpack.c.h.b16 %v2710
    %v3071 = vunpack.c.l.b16 %v2711
    %v3072 = vunpack.c.h.b16 %v2711
    %v3073 = vunpack.c.l.b16 %v2712
    %v3074 = vunpack.c.h.b16 %v2712
    %v3075 = vunpack.c.l.b16 %v2713
    %v3076 = vunpack.c.h.b16 %v2713
    %v3077 = vunpack.c.l.b16 %v2714
    %v3078 = vunpack.c.h.b16 %v2714
    %v3079 = vunpack.c.l.b16 %v2715
    %v3080 = vunpack.c.h.b16 %v2715
    %v3081 = vunpack.c.l.b16 %v2716
    %v3082 = vunpack.c.h.b16 %v2716
    %v3083 = vunpack.c.l.b16 %v2717
    %v3084 = vunpack.c.h.b16 %v2717
    %v3085 = vunpack.c.l.b16 %v2718
    %v3086 = vunpack.c.h.b16 %v2718
    %v3087 = vunpack.c.l.b16 %v2719
    %v3088 = vunpack.c.h.b16 %v2719
    %v3089 = vunpack.c.l.b16 %v2720
    %v3090 = vunpack.c.h.b16 %v2720
    %v3091 = vunpack.c.l.b16 %v2721
    %v3092 = vunpack.c.h.b16 %v2721
    %v3093 = vunpack.c.l.b16 %v2722
    %v3094 = vunpack.c.h.b16 %v2722
    %v3095 = vunpack.c.l.b16 %v2723
    %v3096 = vunpack.c.h.b16 %v2723
    %v3097 = vunpack.c.l.b16 %v2724
    %v3098 = vunpack.c.h.b16 %v2724
    %v3099 = vunpack.c.l.b16 %v2725
    %v3100 = vunpack.c.h.b16 %v2725
    %v3101 = vunpack.c.l.b16 %v2726
    %v3102 = vunpack.c.h.b16 %v2726
    %v3103 = vunpack.c.l.b16 %v2727
    %v3104 = vunpack.c.h.b16 %v2727
    %v3105 = vunpack.c.l.b16 %v2728
    %v3106 = vunpack.c.h.b16 %v2728
    %v3107 = vunpack.c.l.b16 %v2729
    %v3108 = vunpack.c.h.b16 %v2729
    %v3109 = vunpack.c.l.b16 %v2730
    %v3110 = vunpack.c.h.b16 %v2730
    %v3111 = vunpack.c.l.b16 %v2731
    %v3112 = vunpack.c.h.b16 %v2731
    %v3113 = vunpack.c.l.b16 %v2732
    %v3114 = vunpack.c.h.b16 %v2732
    %v3115 = vunpack.c.l.b16 %v2733
    %v3116 = vunpack.c.h.b16 %v2733
    %v3117 = vunpack.c.l.b16 %v2734
    %v3118 = vunpack.c.h.b16 %v2734
    %v3119 = vunpack.c.l.b16 %v2735
    %v3120 = vunpack.c.h.b16 %v2735
    %v3121 = vunpack.c.l.b16 %v2736
    %v3122 = vunpack.c.h.b16 %v2736
    %v3123 = vunpack.c.l.b16 %v2737
    %v3124 = vunpack.c.h.b16 %v2737
    %v3125 = vunpack.c.l.b16 %v2738
    %v3126 = vunpack.c.h.b16 %v2738
    %v3127 = vunpack.c.l.b16 %v2739
    %v3128 = vunpack.c.h.b16 %v2739
    %v3129 = vunpack.c.l.b16 %v2740
    %v3130 = vunpack.c.h.b16 %v2740
    %v3131 = vunpack.c.l.b16 %v2741
    %v3132 = vunpack.c.h.b16 %v2741
    %v3133 = vunpack.c.l.b16 %v2742
    %v3134 = vunpack.c.h.b16 %v2742
    %v3135 = vunpack.c.l.b16 %v2743
    %v3136 = vunpack.c.h.b16 %v2743
    %v3137 = vunpack.c.l.b16 %v2744
    %v3138 = vunpack.c.h.b16 %v2744
    %v3139 = vunpack.c.l.b16 %v2745
    %v3140 = vunpack.c.h.b16 %v2745
    %v3141 = vunpack.c.l.b16 %v2746
    %v3142 = vunpack.c.h.b16 %v2746
    %v3143 = vunpack.c.l.b16 %v2747
    %v3144 = vunpack.c.h.b16 %v2747
    %v3145 = vunpack.c.l.b16 %v2748
    %v3146 = vunpack.c.h.b16 %v2748
    %v3147 = vunpack.c.l.b16 %v2749
    %v3148 = vunpack.c.h.b16 %v2749
    %v3149 = vunpack.c.l.b16 %v2750
    %v3150 = vunpack.c.h.b16 %v2750
    %v3151 = vunpack.c.l.b16 %v2751
    %v3152 = vunpack.c.h.b16 %v2751
    %v3153 = vunpack.c.l.b16 %v2752
    %v3154 = vunpack.c.h.b16 %v2752
    %v3155 = vunpack.c.l.b16 %v2753
    %v3156 = vunpack.c.h.b16 %v2753
    %v3157 = vunpack.c.l.b16 %v2754
    %v3158 = vunpack.c.h.b16 %v2754
    %v3159 = vunpack.c.l.b16 %v2755
    %v3160 = vunpack.c.h.b16 %v2755
    %v3161 = vunpack.c.l.b16 %v2756
    %v3162 = vunpack.c.h.b16 %v2756
    %v3163 = vpack.c.b16 %v2911, %v2907
    %v3164 = vpack.c.b16 %v2912, %v2908
    %v3165 = vpack.c.b16 %v2913, %v2909
    %v3166 = vpack.c.b16 %v2914, %v2910
    %v3167 = vpack.c.b16 %v2919, %v2915
    %v3168 = vpack.c.b16 %v2920, %v2916
    %v3169 = vpack.c.b16 %v2921, %v2917
    %v3170 = vpack.c.b16 %v2922, %v2918
    %v3171 = vpack.c.b16 %v2927, %v2923
    %v3172 = vpack.c.b16 %v2928, %v2924
    %v3173 = vpack.c.b16 %v2929, %v2925
    %v3174 = vpack.c.b16 %v2930, %v2926
    %v3175 = vpack.c.b16 %v2935, %v2931
    %v3176 = vpack.c.b16 %v2936, %v2932
    %v3177 = vpack.c.b16 %v2937, %v2933
    %v3178 = vpack.c.b16 %v2938, %v2934
    %v3179 = vpack.c.b16 %v2943, %v2939
    %v3180 = vpack.c.b16 %v2944, %v2940
    %v3181 = vpack.c.b16 %v2945, %v2941
    %v3182 = vpack.c.b16 %v2946, %v2942
    %v3183 = vpack.c.b16 %v2951, %v2947
    %v3184 = vpack.c.b16 %v2952, %v2948
    %v3185 = vpack.c.b16 %v2953, %v2949
    %v3186 = vpack.c.b16 %v2954, %v2950
    %v3187 = vpack.c.b16 %v2959, %v2955
    %v3188 = vpack.c.b16 %v2960, %v2956
    %v3189 = vpack.c.b16 %v2961, %v2957
    %v3190 = vpack.c.b16 %v2962, %v2958
    %v3191 = vpack.c.b16 %v2967, %v2963
    %v3192 = vpack.c.b16 %v2968, %v2964
    %v3193 = vpack.c.b16 %v2969, %v2965
    %v3194 = vpack.c.b16 %v2970, %v2966
    %v3195 = vpack.c.b16 %v2975, %v2971
    %v3196 = vpack.c.b16 %v2976, %v2972
    %v3197 = vpack.c.b16 %v2977, %v2973
    %v3198 = vpack.c.b16 %v2978, %v2974
    %v3199 = vpack.c.b16 %v2983, %v2979
    %v3200 = vpack.c.b16 %v2984, %v2980
    %v3201 = vpack.c.b16 %v2985, %v2981
    %v3202 = vpack.c.b16 %v2986, %v2982
    %v3203 = vpack.c.b16 %v2991, %v2987
    %v3204 = vpack.c.b16 %v2992, %v2988
    %v3205 = vpack.c.b16 %v2993, %v2989
    %v3206 = vpack.c.b16 %v2994, %v2990
    %v3207 = vpack.c.b16 %v2999, %v2995
    %v3208 = vpack.c.b16 %v3000, %v2996
    %v3209 = vpack.c.b16 %v3001, %v2997
    %v3210 = vpack.c.b16 %v3002, %v2998
    %v3211 = vpack.c.b16 %v3007, %v3003
    %v3212 = vpack.c.b16 %v3008, %v3004
    %v3213 = vpack.c.b16 %v3009, %v3005
    %v3214 = vpack.c.b16 %v3010, %v3006
    %v3215 = vpack.c.b16 %v3015, %v3011
    %v3216 = vpack.c.b16 %v3016, %v3012
    %v3217 = vpack.c.b16 %v3017, %v3013
    %v3218 = vpack.c.b16 %v3018, %v3014
    %v3219 = vpack.c.b16 %v3023, %v3019
    %v3220 = vpack.c.b16 %v3024, %v3020
    %v3221 = vpack.c.b16 %v3025, %v3021
    %v3222 = vpack.c.b16 %v3026, %v3022
    %v3223 = vpack.c.b16 %v3031, %v3027
    %v3224 = vpack.c.b16 %v3032, %v3028
    %v3225 = vpack.c.b16 %v3033, %v3029
    %v3226 = vpack.c.b16 %v3034, %v3030
    %v3227 = vpack.c.b16 %v3039, %v3035
    %v3228 = vpack.c.b16 %v3040, %v3036
    %v3229 = vpack.c.b16 %v3041, %v3037
    %v3230 = vpack.c.b16 %v3042, %v3038
    %v3231 = vpack.c.b16 %v3047, %v3043
    %v3232 = vpack.c.b16 %v3048, %v3044
    %v3233 = vpack.c.b16 %v3049, %v3045
    %v3234 = vpack.c.b16 %v3050, %v3046
    %v3235 = vpack.c.b16 %v3055, %v3051
    %v3236 = vpack.c.b16 %v3056, %v3052
    %v3237 = vpack.c.b16 %v3057, %v3053
    %v3238 = vpack.c.b16 %v3058, %v3054
    %v3239 = vpack.c.b16 %v3063, %v3059
    %v3240 = vpack.c.b16 %v3064, %v3060
    %v3241 = vpack.c.b16 %v3065, %v3061
    %v3242 = vpack.c.b16 %v3066, %v3062
    %v3243 = vpack.c.b16 %v3071, %v3067
    %v3244 = vpack.c.b16 %v3072, %v3068
    %v3245 = vpack.c.b16 %v3073, %v3069
    %v3246 = vpack.c.b16 %v3074, %v3070
    %v3247 = vpack.c.b16 %v3079, %v3075
    %v3248 = vpack.c.b16 %v3080, %v3076
    %v3249 = vpack.c.b16 %v3081, %v3077
    %v3250 = vpack.c.b16 %v3082, %v3078
    %v3251 = vpack.c.b16 %v3087, %v3083
    %v3252 = vpack.c.b16 %v3088, %v3084
    %v3253 = vpack.c.b16 %v3089, %v3085
    %v3254 = vpack.c.b16 %v3090, %v3086
    %v3255 = vpack.c.b16 %v3095, %v3091
    %v3256 = vpack.c.b16 %v3096, %v3092
    %v3257 = vpack.c.b16 %v3097, %v3093
    %v3258 = vpack.c.b16 %v3098, %v3094
    %v3259 = vpack.c.b16 %v3103, %v3099
    %v3260 = vpack.c.b16 %v3104, %v3100
    %v3261 = vpack.c.b16 %v3105, %v3101
    %v3262 = vpack.c.b16 %v3106, %v3102
    %v3263 = vpack.c.b16 %v3111, %v3107
    %v3264 = vpack.c.b16 %v3112, %v3108
    %v3265 = vpack.c.b16 %v3113, %v3109
    %v3266 = vpack.c.b16 %v3114, %v3110
    %v3267 = vpack.c.b16 %v3119, %v3115
    %v3268 = vpack.c.b16 %v3120, %v3116
    %v3269 = vpack.c.b16 %v3121, %v3117
    %v3270 = vpack.c.b16 %v3122, %v3118
    %v3271 = vpack.c.b16 %v3127, %v3123
    %v3272 = vpack.c.b16 %v3128, %v3124
    %v3273 = vpack.c.b16 %v3129, %v3125
    %v3274 = vpack.c.b16 %v3130, %v3126
    %v3275 = vpack.c.b16 %v3135, %v3131
    %v3276 = vpack.c.b16 %v3136, %v3132
    %v3277 = vpack.c.b16 %v3137, %v3133
    %v3278 = vpack.c.b16 %v3138, %v3134
    %v3279 = vpack.c.b16 %v3143, %v3139
    %v3280 = vpack.c.b16 %v3144, %v3140
    %v3281 = vpack.c.b16 %v3145, %v3141
    %v3282 = vpack.c.b16 %v3146, %v3142
    %v3283 = vpack.c.b16 %v3151, %v3147
    %v3284 = vpack.c.b16 %v3152, %v3148
    %v3285 = vpack.c.b16 %v3153, %v3149
    %v3286 = vpack.c.b16 %v3154, %v3150
    %v3287 = vpack.c.b16 %v3159, %v3155
    %v3288 = vpack.c.b16 %v3160, %v3156
    %v3289 = vpack.c.b16 %v3161, %v3157
    %v3290 = vpack.c.b16 %v3162, %v3158
    %3419 = vmatprep.subr.bf16.mxu0 %v3164
    %3420 = vmatpush1.bf16.msra.mxu0 %v3163
    %3421 = vmatprep.subr.bf16.mxu0 %v3168
    %3422 = vmatpush1.bf16.msra.mxu0 %v3167
    %3423 = vmatprep.subr.bf16.mxu0 %v3172
    %3424 = vmatpush1.bf16.msra.mxu0 %v3171
    %3425 = vmatprep.subr.bf16.mxu0 %v3176
    %3426 = vmatpush1.bf16.msra.mxu0 %v3175
    %3427 = vmatprep.subr.bf16.mxu0 %v3180
    %3428 = vmatpush1.bf16.msra.mxu0 %v3179
    %3429 = vmatprep.subr.bf16.mxu0 %v3184
    %3430 = vmatpush1.bf16.msra.mxu0 %v3183
    %3431 = vmatprep.subr.bf16.mxu0 %v3188
    %3432 = vmatpush1.bf16.msra.mxu0 %v3187
    %3433 = vmatprep.subr.bf16.mxu0 %v3192
    %3434 = vmatpush1.bf16.msra.mxu0 %v3191
    %3435 = vmatprep.subr.bf16.mxu0 %v3196
    %3436 = vmatpush1.bf16.msra.mxu0 %v3195
    %3437 = vmatprep.subr.bf16.mxu0 %v3200
    %3438 = vmatpush1.bf16.msra.mxu0 %v3199
    %3439 = vmatprep.subr.bf16.mxu0 %v3204
    %3440 = vmatpush1.bf16.msra.mxu0 %v3203
    %3441 = vmatprep.subr.bf16.mxu0 %v3208
    %3442 = vmatpush1.bf16.msra.mxu0 %v3207
    %3443 = vmatprep.subr.bf16.mxu0 %v3212
    %3444 = vmatpush1.bf16.msra.mxu0 %v3211
    %3445 = vmatprep.subr.bf16.mxu0 %v3216
    %3446 = vmatpush1.bf16.msra.mxu0 %v3215
    %3447 = vmatprep.subr.bf16.mxu0 %v3220
    %3448 = vmatpush1.bf16.msra.mxu0 %v3219
    %3449 = vmatprep.subr.bf16.mxu0 %v3224
    %3450 = vmatpush1.bf16.msra.mxu0 %v3223
    %3451 = vmatprep.mubr.bf16.mxu0 %v2598
    %3452 = vmatmul.mubr.bf16.gmra.mrb[0].mxu0 %v2597
    %v3453 = vpop.f32.mrb[0].mxu0
    %v3454 = vadd.f32 %v2762, %v3453
    %v3455 = vpop.f32.mrb[0].mxu0
    %v3456 = vadd.f32 %v2766, %v3455
    %v3457 = vpop.f32.mrb[0].mxu0
    %v3458 = vadd.f32 %v2762, %v3457
    %v3459 = vpop.f32.mrb[0].mxu0
    %v3460 = vadd.f32 %v2766, %v3459
    %3461 = vmatprep.mubr.bf16.mxu0 %v2602
    %3462 = vmatmul.mubr.bf16.gmra.mrb[0].mxu0 %v2601
    %v3463 = vpop.f32.mrb[0].mxu0
    %v3464 = vadd.f32 %v2762, %v3463
    %v3465 = vpop.f32.mrb[0].mxu0
    %v3466 = vadd.f32 %v2766, %v3465
    %v3467 = vpop.f32.mrb[0].mxu0
    %v3468 = vadd.f32 %v2762, %v3467
    %v3469 = vpop.f32.mrb[0].mxu0
    %v3470 = vadd.f32 %v2766, %v3469
    %3471 = vmatprep.mubr.bf16.mxu0 %v2606
    %3472 = vmatmul.mubr.bf16.gmra.mrb[0].mxu0 %v2605
    %v3473 = vpop.f32.mrb[0].mxu0
    %v3474 = vadd.f32 %v2762, %v3473
    %v3475 = vpop.f32.mrb[0].mxu0
    %v3476 = vadd.f32 %v2766, %v3475
    %v3477 = vpop.f32.mrb[0].mxu0
    %v3478 = vadd.f32 %v2762, %v3477
    %v3479 = vpop.f32.mrb[0].mxu0
    %v3480 = vadd.f32 %v2766, %v3479
    %3481 = vmatprep.mubr.bf16.mxu0 %v2610
    %3482 = vmatmul.mubr.bf16.gmra.mrb[0].mxu0 %v2609
    %v3483 = vpop.f32.mrb[0].mxu0
    %v3484 = vadd.f32 %v2762, %v3483
    %v3485 = vpop.f32.mrb[0].mxu0
    %v3486 = vadd.f32 %v2766, %v3485
    %v3487 = vpop.f32.mrb[0].mxu0
    %v3488 = vadd.f32 %v2762, %v3487
    %v3489 = vpop.f32.mrb[0].mxu0
    %v3490 = vadd.f32 %v2766, %v3489
    %3491 = vmatprep.mubr.bf16.mxu0 %v2614
    %3492 = vmatmul.mubr.bf16.gmra.mrb[0].mxu0 %v2613
    %v3493 = vpop.f32.mrb[0].mxu0
    %v3494 = vadd.f32 %v2762, %v3493
    %v3495 = vpop.f32.mrb[0].mxu0
    %v3496 = vadd.f32 %v2766, %v3495
    %v3497 = vpop.f32.mrb[0].mxu0
    %v3498 = vadd.f32 %v2762, %v3497
    %v3499 = vpop.f32.mrb[0].mxu0
    %v3500 = vadd.f32 %v2766, %v3499
    %3501 = vmatprep.mubr.bf16.mxu0 %v2618
    %3502 = vmatmul.mubr.bf16.gmra.mrb[0].mxu0 %v2617
    %v3503 = vpop.f32.mrb[0].mxu0
    %v3504 = vadd.f32 %v2762, %v3503
    %v3505 = vpop.f32.mrb[0].mxu0
    %v3506 = vadd.f32 %v2766, %v3505
    %v3507 = vpop.f32.mrb[0].mxu0
    %v3508 = vadd.f32 %v2762, %v3507
    %v3509 = vpop.f32.mrb[0].mxu0
    %v3510 = vadd.f32 %v2766, %v3509
    %3511 = vmatprep.mubr.bf16.mxu0 %v2622
    %3512 = vmatmul.mubr.bf16.gmra.mrb[0].mxu0 %v2621
    %v3513 = vpop.f32.mrb[0].mxu0
    %v3514 = vadd.f32 %v2762, %v3513
    %v3515 = vpop.f32.mrb[0].mxu0
    %v3516 = vadd.f32 %v2766, %v3515
    %v3517 = vpop.f32.mrb[0].mxu0
    %v3518 = vadd.f32 %v2762, %v3517
    %v3519 = vpop.f32.mrb[0].mxu0
    %v3520 = vadd.f32 %v2766, %v3519
    %3521 = vmatprep.mubr.bf16.mxu0 %v2626
    %3522 = vmatmul.mubr.bf16.gmra.mrb[0].mxu0 %v2625
    %v3523 = vpop.f32.mrb[0].mxu0
    %v3524 = vadd.f32 %v2762, %v3523
    %v3525 = vpop.f32.mrb[0].mxu0
    %v3526 = vadd.f32 %v2766, %v3525
    %v3527 = vpop.f32.mrb[0].mxu0
    %v3528 = vadd.f32 %v2762, %v3527
    %v3529 = vpop.f32.mrb[0].mxu0
    %v3530 = vadd.f32 %v2766, %v3529
    %3531 = vdwg.mxu0
    %3532 = vmatprep.subr.bf16.mxu0 %v3228
    %3533 = vmatpush1.bf16.msra.mxu0 %v3227
    %3534 = vmatprep.subr.bf16.mxu0 %v3232
    %3535 = vmatpush1.bf16.msra.mxu0 %v3231
    %3536 = vmatprep.subr.bf16.mxu0 %v3236
    %3537 = vmatpush1.bf16.msra.mxu0 %v3235
    %3538 = vmatprep.subr.bf16.mxu0 %v3240
    %3539 = vmatpush1.bf16.msra.mxu0 %v3239
    %3540 = vmatprep.subr.bf16.mxu0 %v3244
    %3541 = vmatpush1.bf16.msra.mxu0 %v3243
    %3542 = vmatprep.subr.bf16.mxu0 %v3248
    %3543 = vmatpush1.bf16.msra.mxu0 %v3247
    %3544 = vmatprep.subr.bf16.mxu0 %v3252
    %3545 = vmatpush1.bf16.msra.mxu0 %v3251
    %3546 = vmatprep.subr.bf16.mxu0 %v3256
    %3547 = vmatpush1.bf16.msra.mxu0 %v3255
    %3548 = vmatprep.subr.bf16.mxu0 %v3260
    %3549 = vmatpush1.bf16.msra.mxu0 %v3259
    %3550 = vmatprep.subr.bf16.mxu0 %v3264
    %3551 = vmatpush1.bf16.msra.mxu0 %v3263
    %3552 = vmatprep.subr.bf16.mxu0 %v3268
    %3553 = vmatpush1.bf16.msra.mxu0 %v3267
    %3554 = vmatprep.subr.bf16.mxu0 %v3272
    %3555 = vmatpush1.bf16.msra.mxu0 %v3271
    %3556 = vmatprep.subr.bf16.mxu0 %v3276
    %3557 = vmatpush1.bf16.msra.mxu0 %v3275
    %3558 = vmatprep.subr.bf16.mxu0 %v3280
    %3559 = vmatpush1.bf16.msra.mxu0 %v3279
    %3560 = vmatprep.subr.bf16.mxu0 %v3284
    %3561 = vmatpush1.bf16.msra.mxu0 %v3283
    %3562 = vmatprep.subr.bf16.mxu0 %v3288
    %3563 = vmatpush1.bf16.msra.mxu0 %v3287
    %3564 = vmatprep.mubr.bf16.mxu0 %v2600
    %3565 = vmatmul.mubr.bf16.gmra.mrb[0].mxu0 %v2599
    %v3566 = vpop.f32.mrb[0].mxu0
    %v3567 = vadd.f32 %v3454, %v3566
    %v3568 = vpop.f32.mrb[0].mxu0
    %v3569 = vadd.f32 %v3456, %v3568
    %v3570 = vpop.f32.mrb[0].mxu0
    %v3571 = vadd.f32 %v3458, %v3570
    %v3572 = vpop.f32.mrb[0].mxu0
    %v3573 = vadd.f32 %v3460, %v3572
    %3574 = vmatprep.mubr.bf16.mxu0 %v2604
    %3575 = vmatmul.mubr.bf16.gmra.mrb[0].mxu0 %v2603
    %v3576 = vpop.f32.mrb[0].mxu0
    %v3577 = vadd.f32 %v3464, %v3576
    %v3578 = vpop.f32.mrb[0].mxu0
    %v3579 = vadd.f32 %v3466, %v3578
    %v3580 = vpop.f32.mrb[0].mxu0
    %v3581 = vadd.f32 %v3468, %v3580
    %v3582 = vpop.f32.mrb[0].mxu0
    %v3583 = vadd.f32 %v3470, %v3582
    %3584 = vmatprep.mubr.bf16.mxu0 %v2608
    %3585 = vmatmul.mubr.bf16.gmra.mrb[0].mxu0 %v2607
    %v3586 = vpop.f32.mrb[0].mxu0
    %v3587 = vadd.f32 %v3474, %v3586
    %v3588 = vpop.f32.mrb[0].mxu0
    %v3589 = vadd.f32 %v3476, %v3588
    %v3590 = vpop.f32.mrb[0].mxu0
    %v3591 = vadd.f32 %v3478, %v3590
    %v3592 = vpop.f32.mrb[0].mxu0
    %v3593 = vadd.f32 %v3480, %v3592
    %3594 = vmatprep.mubr.bf16.mxu0 %v2612
    %3595 = vmatmul.mubr.bf16.gmra.mrb[0].mxu0 %v2611
    %v3596 = vpop.f32.mrb[0].mxu0
    %v3597 = vadd.f32 %v3484, %v3596
    %v3598 = vpop.f32.mrb[0].mxu0
    %v3599 = vadd.f32 %v3486, %v3598
    %v3600 = vpop.f32.mrb[0].mxu0
    %v3601 = vadd.f32 %v3488, %v3600
    %v3602 = vpop.f32.mrb[0].mxu0
    %v3603 = vadd.f32 %v3490, %v3602
    %3604 = vmatprep.mubr.bf16.mxu0 %v2616
    %3605 = vmatmul.mubr.bf16.gmra.mrb[0].mxu0 %v2615
    %v3606 = vpop.f32.mrb[0].mxu0
    %v3607 = vadd.f32 %v3494, %v3606
    %v3608 = vpop.f32.mrb[0].mxu0
    %v3609 = vadd.f32 %v3496, %v3608
    %v3610 = vpop.f32.mrb[0].mxu0
    %v3611 = vadd.f32 %v3498, %v3610
    %v3612 = vpop.f32.mrb[0].mxu0
    %v3613 = vadd.f32 %v3500, %v3612
    %3614 = vmatprep.mubr.bf16.mxu0 %v2620
    %3615 = vmatmul.mubr.bf16.gmra.mrb[0].mxu0 %v2619
    %v3616 = vpop.f32.mrb[0].mxu0
    %v3617 = vadd.f32 %v3504, %v3616
    %v3618 = vpop.f32.mrb[0].mxu0
    %v3619 = vadd.f32 %v3506, %v3618
    %v3620 = vpop.f32.mrb[0].mxu0
    %v3621 = vadd.f32 %v3508, %v3620
    %v3622 = vpop.f32.mrb[0].mxu0
    %v3623 = vadd.f32 %v3510, %v3622
    %3624 = vmatprep.mubr.bf16.mxu0 %v2624
    %3625 = vmatmul.mubr.bf16.gmra.mrb[0].mxu0 %v2623
    %v3626 = vpop.f32.mrb[0].mxu0
    %v3627 = vadd.f32 %v3514, %v3626
    %v3628 = vpop.f32.mrb[0].mxu0
    %v3629 = vadd.f32 %v3516, %v3628
    %v3630 = vpop.f32.mrb[0].mxu0
    %v3631 = vadd.f32 %v3518, %v3630
    %v3632 = vpop.f32.mrb[0].mxu0
    %v3633 = vadd.f32 %v3520, %v3632
    %3634 = vmatprep.mubr.bf16.mxu0 %v2628
    %3635 = vmatmul.mubr.bf16.gmra.mrb[0].mxu0 %v2627
    %v3636 = vpop.f32.mrb[0].mxu0
    %v3637 = vadd.f32 %v3524, %v3636
    %v3638 = vpop.f32.mrb[0].mxu0
    %v3639 = vadd.f32 %v3526, %v3638
    %v3640 = vpop.f32.mrb[0].mxu0
    %v3641 = vadd.f32 %v3528, %v3640
    %v3642 = vpop.f32.mrb[0].mxu0
    %v3643 = vadd.f32 %v3530, %v3642
    %3644 = vdwg.mxu0
    %3645 = vmatprep.subr.bf16.mxu0 %v3166
    %3646 = vmatpush1.bf16.msra.mxu0 %v3165
    %3647 = vmatprep.subr.bf16.mxu0 %v3170
    %3648 = vmatpush1.bf16.msra.mxu0 %v3169
    %3649 = vmatprep.subr.bf16.mxu0 %v3174
    %3650 = vmatpush1.bf16.msra.mxu0 %v3173
    %3651 = vmatprep.subr.bf16.mxu0 %v3178
    %3652 = vmatpush1.bf16.msra.mxu0 %v3177
    %3653 = vmatprep.subr.bf16.mxu0 %v3182
    %3654 = vmatpush1.bf16.msra.mxu0 %v3181
    %3655 = vmatprep.subr.bf16.mxu0 %v3186
    %3656 = vmatpush1.bf16.msra.mxu0 %v3185
    %3657 = vmatprep.subr.bf16.mxu0 %v3190
    %3658 = vmatpush1.bf16.msra.mxu0 %v3189
    %3659 = vmatprep.subr.bf16.mxu0 %v3194
    %3660 = vmatpush1.bf16.msra.mxu0 %v3193
    %3661 = vmatprep.subr.bf16.mxu0 %v3198
    %3662 = vmatpush1.bf16.msra.mxu0 %v3197
    %3663 = vmatprep.subr.bf16.mxu0 %v3202
    %3664 = vmatpush1.bf16.msra.mxu0 %v3201
    %3665 = vmatprep.subr.bf16.mxu0 %v3206
    %3666 = vmatpush1.bf16.msra.mxu0 %v3205
    %3667 = vmatprep.subr.bf16.mxu0 %v3210
    %3668 = vmatpush1.bf16.msra.mxu0 %v3209
    %3669 = vmatprep.subr.bf16.mxu0 %v3214
    %3670 = vmatpush1.bf16.msra.mxu0 %v3213
    %3671 = vmatprep.subr.bf16.mxu0 %v3218
    %3672 = vmatpush1.bf16.msra.mxu0 %v3217
    %3673 = vmatprep.subr.bf16.mxu0 %v3222
    %3674 = vmatpush1.bf16.msra.mxu0 %v3221
    %3675 = vmatprep.subr.bf16.mxu0 %v3226
    %3676 = vmatpush1.bf16.msra.mxu0 %v3225
    %3677 = vmatprep.mubr.bf16.mxu0 %v2598
    %3678 = vmatmul.mubr.bf16.gmra.mrb[0].mxu0 %v2597
    %v3679 = vpop.f32.mrb[0].mxu0
    %v3680 = vadd.f32 %v2770, %v3679
    %v3681 = vpop.f32.mrb[0].mxu0
    %v3682 = vadd.f32 %v2774, %v3681
    %v3683 = vpop.f32.mrb[0].mxu0
    %v3684 = vadd.f32 %v2770, %v3683
    %v3685 = vpop.f32.mrb[0].mxu0
    %v3686 = vadd.f32 %v2774, %v3685
    %3687 = vmatprep.mubr.bf16.mxu0 %v2602
    %3688 = vmatmul.mubr.bf16.gmra.mrb[0].mxu0 %v2601
    %v3689 = vpop.f32.mrb[0].mxu0
    %v3690 = vadd.f32 %v2770, %v3689
    %v3691 = vpop.f32.mrb[0].mxu0
    %v3692 = vadd.f32 %v2774, %v3691
    %v3693 = vpop.f32.mrb[0].mxu0
    %v3694 = vadd.f32 %v2770, %v3693
    %v3695 = vpop.f32.mrb[0].mxu0
    %v3696 = vadd.f32 %v2774, %v3695
    %3697 = vmatprep.mubr.bf16.mxu0 %v2606
    %3698 = vmatmul.mubr.bf16.gmra.mrb[0].mxu0 %v2605
    %v3699 = vpop.f32.mrb[0].mxu0
    %v3700 = vadd.f32 %v2770, %v3699
    %v3701 = vpop.f32.mrb[0].mxu0
    %v3702 = vadd.f32 %v2774, %v3701
    %v3703 = vpop.f32.mrb[0].mxu0
    %v3704 = vadd.f32 %v2770, %v3703
    %v3705 = vpop.f32.mrb[0].mxu0
    %v3706 = vadd.f32 %v2774, %v3705
    %3707 = vmatprep.mubr.bf16.mxu0 %v2610
    %3708 = vmatmul.mubr.bf16.gmra.mrb[0].mxu0 %v2609
    %v3709 = vpop.f32.mrb[0].mxu0
    %v3710 = vadd.f32 %v2770, %v3709
    %v3711 = vpop.f32.mrb[0].mxu0
    %v3712 = vadd.f32 %v2774, %v3711
    %v3713 = vpop.f32.mrb[0].mxu0
    %v3714 = vadd.f32 %v2770, %v3713
    %v3715 = vpop.f32.mrb[0].mxu0
    %v3716 = vadd.f32 %v2774, %v3715
    %3717 = vmatprep.mubr.bf16.mxu0 %v2614
    %3718 = vmatmul.mubr.bf16.gmra.mrb[0].mxu0 %v2613
    %v3719 = vpop.f32.mrb[0].mxu0
    %v3720 = vadd.f32 %v2770, %v3719
    %v3721 = vpop.f32.mrb[0].mxu0
    %v3722 = vadd.f32 %v2774, %v3721
    %v3723 = vpop.f32.mrb[0].mxu0
    %v3724 = vadd.f32 %v2770, %v3723
    %v3725 = vpop.f32.mrb[0].mxu0
    %v3726 = vadd.f32 %v2774, %v3725
    %3727 = vmatprep.mubr.bf16.mxu0 %v2618
    %3728 = vmatmul.mubr.bf16.gmra.mrb[0].mxu0 %v2617
    %v3729 = vpop.f32.mrb[0].mxu0
    %v3730 = vadd.f32 %v2770, %v3729
    %v3731 = vpop.f32.mrb[0].mxu0
    %v3732 = vadd.f32 %v2774, %v3731
    %v3733 = vpop.f32.mrb[0].mxu0
    %v3734 = vadd.f32 %v2770, %v3733
    %v3735 = vpop.f32.mrb[0].mxu0
    %v3736 = vadd.f32 %v2774, %v3735
    %3737 = vmatprep.mubr.bf16.mxu0 %v2622
    %3738 = vmatmul.mubr.bf16.gmra.mrb[0].mxu0 %v2621
    %v3739 = vpop.f32.mrb[0].mxu0
    %v3740 = vadd.f32 %v2770, %v3739
    %v3741 = vpop.f32.mrb[0].mxu0
    %v3742 = vadd.f32 %v2774, %v3741
    %v3743 = vpop.f32.mrb[0].mxu0
    %v3744 = vadd.f32 %v2770, %v3743
    %v3745 = vpop.f32.mrb[0].mxu0
    %v3746 = vadd.f32 %v2774, %v3745
    %3747 = vmatprep.mubr.bf16.mxu0 %v2626
    %3748 = vmatmul.mubr.bf16.gmra.mrb[0].mxu0 %v2625
    %v3749 = vpop.f32.mrb[0].mxu0
    %v3750 = vadd.f32 %v2770, %v3749
    %v3751 = vpop.f32.mrb[0].mxu0
    %v3752 = vadd.f32 %v2774, %v3751
    %v3753 = vpop.f32.mrb[0].mxu0
    %v3754 = vadd.f32 %v2770, %v3753
    %v3755 = vpop.f32.mrb[0].mxu0
    %v3756 = vadd.f32 %v2774, %v3755
    %3757 = vdwg.mxu0
    %3758 = vmatprep.subr.bf16.mxu0 %v3230
    %3759 = vmatpush1.bf16.msra.mxu0 %v3229
    %3760 = vmatprep.subr.bf16.mxu0 %v3234
    %3761 = vmatpush1.bf16.msra.mxu0 %v3233
    %3762 = vmatprep.subr.bf16.mxu0 %v3238
    %3763 = vmatpush1.bf16.msra.mxu0 %v3237
    %3764 = vmatprep.subr.bf16.mxu0 %v3242
    %3765 = vmatpush1.bf16.msra.mxu0 %v3241
    %3766 = vmatprep.subr.bf16.mxu0 %v3246
    %3767 = vmatpush1.bf16.msra.mxu0 %v3245
    %3768 = vmatprep.subr.bf16.mxu0 %v3250
    %3769 = vmatpush1.bf16.msra.mxu0 %v3249
    %3770 = vmatprep.subr.bf16.mxu0 %v3254
    %3771 = vmatpush1.bf16.msra.mxu0 %v3253
    %3772 = vmatprep.subr.bf16.mxu0 %v3258
    %3773 = vmatpush1.bf16.msra.mxu0 %v3257
    %3774 = vmatprep.subr.bf16.mxu0 %v3262
    %3775 = vmatpush1.bf16.msra.mxu0 %v3261
    %3776 = vmatprep.subr.bf16.mxu0 %v3266
    %3777 = vmatpush1.bf16.msra.mxu0 %v3265
    %3778 = vmatprep.subr.bf16.mxu0 %v3270
    %3779 = vmatpush1.bf16.msra.mxu0 %v3269
    %3780 = vmatprep.subr.bf16.mxu0 %v3274
    %3781 = vmatpush1.bf16.msra.mxu0 %v3273
    %3782 = vmatprep.subr.bf16.mxu0 %v3278
    %3783 = vmatpush1.bf16.msra.mxu0 %v3277
    %3784 = vmatprep.subr.bf16.mxu0 %v3282
    %3785 = vmatpush1.bf16.msra.mxu0 %v3281
    %3786 = vmatprep.subr.bf16.mxu0 %v3286
    %3787 = vmatpush1.bf16.msra.mxu0 %v3285
    %3788 = vmatprep.subr.bf16.mxu0 %v3290
    %3789 = vmatpush1.bf16.msra.mxu0 %v3289
    %3790 = vmatprep.mubr.bf16.mxu0 %v2600
    %3791 = vmatmul.mubr.bf16.gmra.mrb[0].mxu0 %v2599
    %v3792 = vpop.f32.mrb[0].mxu0
    %v3793 = vadd.f32 %v3680, %v3792
    %v3794 = vpop.f32.mrb[0].mxu0
    %v3795 = vadd.f32 %v3682, %v3794
    %v3796 = vpop.f32.mrb[0].mxu0
    %v3797 = vadd.f32 %v3684, %v3796
    %v3798 = vpop.f32.mrb[0].mxu0
    %v3799 = vadd.f32 %v3686, %v3798
    %3800 = vmatprep.mubr.bf16.mxu0 %v2604
    %3801 = vmatmul.mubr.bf16.gmra.mrb[0].mxu0 %v2603
    %v3802 = vpop.f32.mrb[0].mxu0
    %v3803 = vadd.f32 %v3690, %v3802
    %v3804 = vpop.f32.mrb[0].mxu0
    %v3805 = vadd.f32 %v3692, %v3804
    %v3806 = vpop.f32.mrb[0].mxu0
    %v3807 = vadd.f32 %v3694, %v3806
    %v3808 = vpop.f32.mrb[0].mxu0
    %v3809 = vadd.f32 %v3696, %v3808
    %3810 = vmatprep.mubr.bf16.mxu0 %v2608
    %3811 = vmatmul.mubr.bf16.gmra.mrb[0].mxu0 %v2607
    %v3812 = vpop.f32.mrb[0].mxu0
    %v3813 = vadd.f32 %v3700, %v3812
    %v3814 = vpop.f32.mrb[0].mxu0
    %v3815 = vadd.f32 %v3702, %v3814
    %v3816 = vpop.f32.mrb[0].mxu0
    %v3817 = vadd.f32 %v3704, %v3816
    %v3818 = vpop.f32.mrb[0].mxu0
    %v3819 = vadd.f32 %v3706, %v3818
    %3820 = vmatprep.mubr.bf16.mxu0 %v2612
    %3821 = vmatmul.mubr.bf16.gmra.mrb[0].mxu0 %v2611
    %v3822 = vpop.f32.mrb[0].mxu0
    %v3823 = vadd.f32 %v3710, %v3822
    %v3824 = vpop.f32.mrb[0].mxu0
    %v3825 = vadd.f32 %v3712, %v3824
    %v3826 = vpop.f32.mrb[0].mxu0
    %v3827 = vadd.f32 %v3714, %v3826
    %v3828 = vpop.f32.mrb[0].mxu0
    %v3829 = vadd.f32 %v3716, %v3828
    %3830 = vmatprep.mubr.bf16.mxu0 %v2616
    %3831 = vmatmul.mubr.bf16.gmra.mrb[0].mxu0 %v2615
    %v3832 = vpop.f32.mrb[0].mxu0
    %v3833 = vadd.f32 %v3720, %v3832
    %v3834 = vpop.f32.mrb[0].mxu0
    %v3835 = vadd.f32 %v3722, %v3834
    %v3836 = vpop.f32.mrb[0].mxu0
    %v3837 = vadd.f32 %v3724, %v3836
    %v3838 = vpop.f32.mrb[0].mxu0
    %v3839 = vadd.f32 %v3726, %v3838
    %3840 = vmatprep.mubr.bf16.mxu0 %v2620
    %3841 = vmatmul.mubr.bf16.gmra.mrb[0].mxu0 %v2619
    %v3842 = vpop.f32.mrb[0].mxu0
    %v3843 = vadd.f32 %v3730, %v3842
    %v3844 = vpop.f32.mrb[0].mxu0
    %v3845 = vadd.f32 %v3732, %v3844
    %v3846 = vpop.f32.mrb[0].mxu0
    %v3847 = vadd.f32 %v3734, %v3846
    %v3848 = vpop.f32.mrb[0].mxu0
    %v3849 = vadd.f32 %v3736, %v3848
    %3850 = vmatprep.mubr.bf16.mxu0 %v2624
    %3851 = vmatmul.mubr.bf16.gmra.mrb[0].mxu0 %v2623
    %v3852 = vpop.f32.mrb[0].mxu0
    %v3853 = vadd.f32 %v3740, %v3852
    %v3854 = vpop.f32.mrb[0].mxu0
    %v3855 = vadd.f32 %v3742, %v3854
    %v3856 = vpop.f32.mrb[0].mxu0
    %v3857 = vadd.f32 %v3744, %v3856
    %v3858 = vpop.f32.mrb[0].mxu0
    %v3859 = vadd.f32 %v3746, %v3858
    %3860 = vmatprep.mubr.bf16.mxu0 %v2628
    %3861 = vmatmul.mubr.bf16.gmra.mrb[0].mxu0 %v2627
    %v3862 = vpop.f32.mrb[0].mxu0
    %v3863 = vadd.f32 %v3750, %v3862
    %v3864 = vpop.f32.mrb[0].mxu0
    %v3865 = vadd.f32 %v3752, %v3864
    %v3866 = vpop.f32.mrb[0].mxu0
    %v3867 = vadd.f32 %v3754, %v3866
    %v3868 = vpop.f32.mrb[0].mxu0
    %v3869 = vadd.f32 %v3756, %v3868
    %3870 = vdwg.mxu0
    %v3871 = vmax.f32 %v3567, 0.0
    %v3872 = vmax.f32 %v3569, 0.0
    %v3873 = vmax.f32 %v3793, 0.0
    %v3874 = vmax.f32 %v3795, 0.0
    %v3875 = vmax.f32 %v3571, 0.0
    %v3876 = vmax.f32 %v3573, 0.0
    %v3877 = vmax.f32 %v3797, 0.0
    %v3878 = vmax.f32 %v3799, 0.0
    %v3879 = vmax.f32 %v3577, 0.0
    %v3880 = vmax.f32 %v3579, 0.0
    %v3881 = vmax.f32 %v3803, 0.0
    %v3882 = vmax.f32 %v3805, 0.0
    %v3883 = vmax.f32 %v3581, 0.0
    %v3884 = vmax.f32 %v3583, 0.0
    %v3885 = vmax.f32 %v3807, 0.0
    %v3886 = vmax.f32 %v3809, 0.0
    %v3887 = vmax.f32 %v3587, 0.0
    %v3888 = vmax.f32 %v3589, 0.0
    %v3889 = vmax.f32 %v3813, 0.0
    %v3890 = vmax.f32 %v3815, 0.0
    %v3891 = vmax.f32 %v3591, 0.0
    %v3892 = vmax.f32 %v3593, 0.0
    %v3893 = vmax.f32 %v3817, 0.0
    %v3894 = vmax.f32 %v3819, 0.0
    %v3895 = vmax.f32 %v3597, 0.0
    %v3896 = vmax.f32 %v3599, 0.0
    %v3897 = vmax.f32 %v3823, 0.0
    %v3898 = vmax.f32 %v3825, 0.0
    %v3899 = vmax.f32 %v3601, 0.0
    %v3900 = vmax.f32 %v3603, 0.0
    %v3901 = vmax.f32 %v3827, 0.0
    %v3902 = vmax.f32 %v3829, 0.0
    %v3903 = vmax.f32 %v3607, 0.0
    %v3904 = vmax.f32 %v3609, 0.0
    %v3905 = vmax.f32 %v3833, 0.0
    %v3906 = vmax.f32 %v3835, 0.0
    %v3907 = vmax.f32 %v3611, 0.0
    %v3908 = vmax.f32 %v3613, 0.0
    %v3909 = vmax.f32 %v3837, 0.0
    %v3910 = vmax.f32 %v3839, 0.0
    %v3911 = vmax.f32 %v3617, 0.0
    %v3912 = vmax.f32 %v3619, 0.0
    %v3913 = vmax.f32 %v3843, 0.0
    %v3914 = vmax.f32 %v3845, 0.0
    %v3915 = vmax.f32 %v3621, 0.0
    %v3916 = vmax.f32 %v3623, 0.0
    %v3917 = vmax.f32 %v3847, 0.0
    %v3918 = vmax.f32 %v3849, 0.0
    %v3919 = vmax.f32 %v3627, 0.0
    %v3920 = vmax.f32 %v3629, 0.0
    %v3921 = vmax.f32 %v3853, 0.0
    %v3922 = vmax.f32 %v3855, 0.0
    %v3923 = vmax.f32 %v3631, 0.0
    %v3924 = vmax.f32 %v3633, 0.0
    %v3925 = vmax.f32 %v3857, 0.0
    %v3926 = vmax.f32 %v3859, 0.0
    %v3927 = vmax.f32 %v3637, 0.0
    %v3928 = vmax.f32 %v3639, 0.0
    %v3929 = vmax.f32 %v3863, 0.0
    %v3930 = vmax.f32 %v3865, 0.0
    %v3931 = vmax.f32 %v3641, 0.0
    %v3932 = vmax.f32 %v3643, 0.0
    %v3933 = vmax.f32 %v3867, 0.0
    %v3934 = vmax.f32 %v3869, 0.0
    %v3935 = vpack.c.bf16 %v3875, %v3871
    %v3936 = vpack.c.bf16 %v3876, %v3872
    %v3937 = vpack.c.bf16 %v3877, %v3873
    %v3938 = vpack.c.bf16 %v3878, %v3874
    %v3939 = vpack.c.bf16 %v3883, %v3879
    %v3940 = vpack.c.bf16 %v3884, %v3880
    %v3941 = vpack.c.bf16 %v3885, %v3881
    %v3942 = vpack.c.bf16 %v3886, %v3882
    %v3943 = vpack.c.bf16 %v3891, %v3887
    %v3944 = vpack.c.bf16 %v3892, %v3888
    %v3945 = vpack.c.bf16 %v3893, %v3889
    %v3946 = vpack.c.bf16 %v3894, %v3890
    %v3947 = vpack.c.bf16 %v3899, %v3895
    %v3948 = vpack.c.bf16 %v3900, %v3896
    %v3949 = vpack.c.bf16 %v3901, %v3897
    %v3950 = vpack.c.bf16 %v3902, %v3898
    %v3951 = vpack.c.bf16 %v3907, %v3903
    %v3952 = vpack.c.bf16 %v3908, %v3904
    %v3953 = vpack.c.bf16 %v3909, %v3905
    %v3954 = vpack.c.bf16 %v3910, %v3906
    %v3955 = vpack.c.bf16 %v3915, %v3911
    %v3956 = vpack.c.bf16 %v3916, %v3912
    %v3957 = vpack.c.bf16 %v3917, %v3913
    %v3958 = vpack.c.bf16 %v3918, %v3914
    %v3959 = vpack.c.bf16 %v3923, %v3919
    %v3960 = vpack.c.bf16 %v3924, %v3920
    %v3961 = vpack.c.bf16 %v3925, %v3921
    %v3962 = vpack.c.bf16 %v3926, %v3922
    %v3963 = vpack.c.bf16 %v3931, %v3927
    %v3964 = vpack.c.bf16 %v3932, %v3928
    %v3965 = vpack.c.bf16 %v3933, %v3929
    %v3966 = vpack.c.bf16 %v3934, %v3930
    %v3999 = vunpack.c.l.b16 %v3935
    %v4000 = vunpack.c.l.b16 %v3936
    %v4001 = vunpack.c.l.b16 %v3937
    %v4002 = vunpack.c.l.b16 %v3938
    %v4003 = vunpack.c.h.b16 %v3935
    %v4004 = vunpack.c.h.b16 %v3936
    %v4005 = vunpack.c.h.b16 %v3937
    %v4006 = vunpack.c.h.b16 %v3938
    %v4007 = vunpack.c.l.b16 %v3939
    %v4008 = vunpack.c.l.b16 %v3940
    %v4009 = vunpack.c.l.b16 %v3941
    %v4010 = vunpack.c.l.b16 %v3942
    %v4011 = vunpack.c.h.b16 %v3939
    %v4012 = vunpack.c.h.b16 %v3940
    %v4013 = vunpack.c.h.b16 %v3941
    %v4014 = vunpack.c.h.b16 %v3942
    %v4015 = vunpack.c.l.b16 %v3943
    %v4016 = vunpack.c.l.b16 %v3944
    %v4017 = vunpack.c.l.b16 %v3945
    %v4018 = vunpack.c.l.b16 %v3946
    %v4019 = vunpack.c.h.b16 %v3943
    %v4020 = vunpack.c.h.b16 %v3944
    %v4021 = vunpack.c.h.b16 %v3945
    %v4022 = vunpack.c.h.b16 %v3946
    %v4023 = vunpack.c.l.b16 %v3947
    %v4024 = vunpack.c.l.b16 %v3948
    %v4025 = vunpack.c.l.b16 %v3949
    %v4026 = vunpack.c.l.b16 %v3950
    %v4027 = vunpack.c.h.b16 %v3947
    %v4028 = vunpack.c.h.b16 %v3948
    %v4029 = vunpack.c.h.b16 %v3949
    %v4030 = vunpack.c.h.b16 %v3950
    %v4031 = vunpack.c.l.b16 %v3951
    %v4032 = vunpack.c.l.b16 %v3952
    %v4033 = vunpack.c.l.b16 %v3953
    %v4034 = vunpack.c.l.b16 %v3954
    %v4035 = vunpack.c.h.b16 %v3951
    %v4036 = vunpack.c.h.b16 %v3952
    %v4037 = vunpack.c.h.b16 %v3953
    %v4038 = vunpack.c.h.b16 %v3954
    %v4039 = vunpack.c.l.b16 %v3955
    %v4040 = vunpack.c.l.b16 %v3956
    %v4041 = vunpack.c.l.b16 %v3957
    %v4042 = vunpack.c.l.b16 %v3958
    %v4043 = vunpack.c.h.b16 %v3955
    %v4044 = vunpack.c.h.b16 %v3956
    %v4045 = vunpack.c.h.b16 %v3957
    %v4046 = vunpack.c.h.b16 %v3958
    %v4047 = vunpack.c.l.b16 %v3959
    %v4048 = vunpack.c.l.b16 %v3960
    %v4049 = vunpack.c.l.b16 %v3961
    %v4050 = vunpack.c.l.b16 %v3962
    %v4051 = vunpack.c.h.b16 %v3959
    %v4052 = vunpack.c.h.b16 %v3960
    %v4053 = vunpack.c.h.b16 %v3961
    %v4054 = vunpack.c.h.b16 %v3962
    %v4055 = vunpack.c.l.b16 %v3963
    %v4056 = vunpack.c.l.b16 %v3964
    %v4057 = vunpack.c.l.b16 %v3965
    %v4058 = vunpack.c.l.b16 %v3966
    %v4059 = vunpack.c.h.b16 %v3963
    %v4060 = vunpack.c.h.b16 %v3964
    %v4061 = vunpack.c.h.b16 %v3965
    %v4062 = vunpack.c.h.b16 %v3966
    %v4063 = vpack.c.b16 %v4000, %v3999
    %v4064 = vpack.c.b16 %v4002, %v4001
    %v4065 = vpack.c.b16 %v4004, %v4003
    %v4066 = vpack.c.b16 %v4006, %v4005
    %v4067 = vpack.c.b16 %v4008, %v4007
    %v4068 = vpack.c.b16 %v4010, %v4009
    %v4069 = vpack.c.b16 %v4012, %v4011
    %v4070 = vpack.c.b16 %v4014, %v4013
    %v4071 = vpack.c.b16 %v4016, %v4015
    %v4072 = vpack.c.b16 %v4018, %v4017
    %v4073 = vpack.c.b16 %v4020, %v4019
    %v4074 = vpack.c.b16 %v4022, %v4021
    %v4075 = vpack.c.b16 %v4024, %v4023
    %v4076 = vpack.c.b16 %v4026, %v4025
    %v4077 = vpack.c.b16 %v4028, %v4027
    %v4078 = vpack.c.b16 %v4030, %v4029
    %v4079 = vpack.c.b16 %v4032, %v4031
    %v4080 = vpack.c.b16 %v4034, %v4033
    %v4081 = vpack.c.b16 %v4036, %v4035
    %v4082 = vpack.c.b16 %v4038, %v4037
    %v4083 = vpack.c.b16 %v4040, %v4039
    %v4084 = vpack.c.b16 %v4042, %v4041
    %v4085 = vpack.c.b16 %v4044, %v4043
    %v4086 = vpack.c.b16 %v4046, %v4045
    %v4087 = vpack.c.b16 %v4048, %v4047
    %v4088 = vpack.c.b16 %v4050, %v4049
    %v4089 = vpack.c.b16 %v4052, %v4051
    %v4090 = vpack.c.b16 %v4054, %v4053
    %v4091 = vpack.c.b16 %v4056, %v4055
    %v4092 = vpack.c.b16 %v4058, %v4057
    %v4093 = vpack.c.b16 %v4060, %v4059
    %v4094 = vpack.c.b16 %v4062, %v4061
    %4127 = vst [vmem:[#allocation8] sm:$0xff] %v4063
    %4128 = vst [vmem:[#allocation8 + $0x8] sm:$0xff] %v4064
    %4129 = vst [vmem:[#allocation8 + $0x10] sm:$0xff] %v4065
    %4130 = vst [vmem:[#allocation8 + $0x18] sm:$0xff] %v4066
    %4131 = vst [vmem:[#allocation8 + $0x20] sm:$0xff] %v4067
    %4132 = vst [vmem:[#allocation8 + $0x28] sm:$0xff] %v4068
    %4133 = vst [vmem:[#allocation8 + $0x30] sm:$0xff] %v4069
    %4134 = vst [vmem:[#allocation8 + $0x38] sm:$0xff] %v4070
    %4135 = vst [vmem:[#allocation8 + $0x40] sm:$0xff] %v4071
    %4136 = vst [vmem:[#allocation8 + $0x48] sm:$0xff] %v4072
    %4137 = vst [vmem:[#allocation8 + $0x50] sm:$0xff] %v4073
    %4138 = vst [vmem:[#allocation8 + $0x58] sm:$0xff] %v4074
    %4139 = vst [vmem:[#allocation8 + $0x60] sm:$0xff] %v4075
    %4140 = vst [vmem:[#allocation8 + $0x68] sm:$0xff] %v4076
    %4141 = vst [vmem:[#allocation8 + $0x70] sm:$0xff] %v4077
    %4142 = vst [vmem:[#allocation8 + $0x78] sm:$0xff] %v4078
    %4143 = vst [vmem:[#allocation8 + $0x80] sm:$0xff] %v4079
    %4144 = vst [vmem:[#allocation8 + $0x88] sm:$0xff] %v4080
    %4145 = vst [vmem:[#allocation8 + $0x90] sm:$0xff] %v4081
    %4146 = vst [vmem:[#allocation8 + $0x98] sm:$0xff] %v4082
    %4147 = vst [vmem:[#allocation8 + $0xa0] sm:$0xff] %v4083
    %4148 = vst [vmem:[#allocation8 + $0xa8] sm:$0xff] %v4084
    %4149 = vst [vmem:[#allocation8 + $0xb0] sm:$0xff] %v4085
    %4150 = vst [vmem:[#allocation8 + $0xb8] sm:$0xff] %v4086
    %4151 = vst [vmem:[#allocation8 + $0xc0] sm:$0xff] %v4087
    %4152 = vst [vmem:[#allocation8 + $0xc8] sm:$0xff] %v4088
    %4153 = vst [vmem:[#allocation8 + $0xd0] sm:$0xff] %v4089
    %4154 = vst [vmem:[#allocation8 + $0xd8] sm:$0xff] %v4090
    %4155 = vst [vmem:[#allocation8 + $0xe0] sm:$0xff] %v4091
    %4156 = vst [vmem:[#allocation8 + $0xe8] sm:$0xff] %v4092
    %4157 = vst [vmem:[#allocation8 + $0xf0] sm:$0xff] %v4093
    %4158 = vst [vmem:[#allocation8 + $0xf8] sm:$0xff] %v4094
    %v4159 = vld [vmem:[%s5] sm:$0xf]
    %v4160 = vld [vmem:[%s5 + $0x4] sm:$0xf]
    %v4161 = vld [vmem:[%s5 + $0x8] sm:$0xf]
    %v4162 = vld [vmem:[%s5 + $0xc] sm:$0xf]
    %v4163 = vld [vmem:[%s5 + $0x10] sm:$0xf]
    %v4164 = vld [vmem:[%s5 + $0x14] sm:$0xf]
    %v4165 = vld [vmem:[%s5 + $0x18] sm:$0xf]
    %v4166 = vld [vmem:[%s5 + $0x1c] sm:$0xf]
    %v4167 = vld [vmem:[%s5 + $0x20] sm:$0xf]
    %v4168 = vld [vmem:[%s5 + $0x24] sm:$0xf]
    %v4169 = vld [vmem:[%s5 + $0x28] sm:$0xf]
    %v4170 = vld [vmem:[%s5 + $0x2c] sm:$0xf]
    %v4171 = vld [vmem:[%s5 + $0x30] sm:$0xf]
    %v4172 = vld [vmem:[%s5 + $0x34] sm:$0xf]
    %v4173 = vld [vmem:[%s5 + $0x38] sm:$0xf]
    %v4174 = vld [vmem:[%s5 + $0x3c] sm:$0xf]
    %v4175 = vld [vmem:[%s5 + $0x40] sm:$0xf]
    %v4176 = vld [vmem:[%s5 + $0x44] sm:$0xf]
    %v4177 = vld [vmem:[%s5 + $0x48] sm:$0xf]
    %v4178 = vld [vmem:[%s5 + $0x4c] sm:$0xf]
    %v4179 = vld [vmem:[%s5 + $0x50] sm:$0xf]
    %v4180 = vld [vmem:[%s5 + $0x54] sm:$0xf]
    %v4181 = vld [vmem:[%s5 + $0x58] sm:$0xf]
    %v4182 = vld [vmem:[%s5 + $0x5c] sm:$0xf]
    %v4183 = vld [vmem:[%s5 + $0x60] sm:$0xf]
    %v4184 = vld [vmem:[%s5 + $0x64] sm:$0xf]
    %v4185 = vld [vmem:[%s5 + $0x68] sm:$0xf]
    %v4186 = vld [vmem:[%s5 + $0x6c] sm:$0xf]
    %v4187 = vld [vmem:[%s5 + $0x70] sm:$0xf]
    %v4188 = vld [vmem:[%s5 + $0x74] sm:$0xf]
    %v4189 = vld [vmem:[%s5 + $0x78] sm:$0xf]
    %v4190 = vld [vmem:[%s5 + $0x7c] sm:$0xf]
    %v4191 = vld [vmem:[%s5 + $0x80] sm:$0xf]
    %v4192 = vld [vmem:[%s5 + $0x84] sm:$0xf]
    %v4193 = vld [vmem:[%s5 + $0x88] sm:$0xf]
    %v4194 = vld [vmem:[%s5 + $0x8c] sm:$0xf]
    %v4195 = vld [vmem:[%s5 + $0x90] sm:$0xf]
    %v4196 = vld [vmem:[%s5 + $0x94] sm:$0xf]
    %v4197 = vld [vmem:[%s5 + $0x98] sm:$0xf]
    %v4198 = vld [vmem:[%s5 + $0x9c] sm:$0xf]
    %v4199 = vld [vmem:[%s5 + $0xa0] sm:$0xf]
    %v4200 = vld [vmem:[%s5 + $0xa4] sm:$0xf]
    %v4201 = vld [vmem:[%s5 + $0xa8] sm:$0xf]
    %v4202 = vld [vmem:[%s5 + $0xac] sm:$0xf]
    %v4203 = vld [vmem:[%s5 + $0xb0] sm:$0xf]
    %v4204 = vld [vmem:[%s5 + $0xb4] sm:$0xf]
    %v4205 = vld [vmem:[%s5 + $0xb8] sm:$0xf]
    %v4206 = vld [vmem:[%s5 + $0xbc] sm:$0xf]
    %v4207 = vld [vmem:[%s5 + $0xc0] sm:$0xf]
    %v4208 = vld [vmem:[%s5 + $0xc4] sm:$0xf]
    %v4209 = vld [vmem:[%s5 + $0xc8] sm:$0xf]
    %v4210 = vld [vmem:[%s5 + $0xcc] sm:$0xf]
    %v4211 = vld [vmem:[%s5 + $0xd0] sm:$0xf]
    %v4212 = vld [vmem:[%s5 + $0xd4] sm:$0xf]
    %v4213 = vld [vmem:[%s5 + $0xd8] sm:$0xf]
    %v4214 = vld [vmem:[%s5 + $0xdc] sm:$0xf]
    %v4215 = vld [vmem:[%s5 + $0xe0] sm:$0xf]
    %v4216 = vld [vmem:[%s5 + $0xe4] sm:$0xf]
    %v4217 = vld [vmem:[%s5 + $0xe8] sm:$0xf]
    %v4218 = vld [vmem:[%s5 + $0xec] sm:$0xf]
    %v4219 = vld [vmem:[%s5 + $0xf0] sm:$0xf]
    %v4220 = vld [vmem:[%s5 + $0xf4] sm:$0xf]
    %v4221 = vld [vmem:[%s5 + $0xf8] sm:$0xf]
    %v4222 = vld [vmem:[%s5 + $0xfc] sm:$0xf]
    %v4223 = vld [vmem:[%s6] sm:$0x1]
    %v4225 = vlaneseq
    %v4226 = vshrl.u32 %v4225, 7
    %v4227 = vsub.s32 0, %v4226
    %v4228 = vrot.slane %v4223, %v4227
    %v4294 = vunpack.c.l.b16 %v4159
    %v4295 = vunpack.c.l.b16 %v4160
    %v4296 = vunpack.c.l.b16 %v4161
    %v4297 = vunpack.c.l.b16 %v4162
    %v4298 = vunpack.c.l.b16 %v4163
    %v4299 = vunpack.c.l.b16 %v4164
    %v4300 = vunpack.c.l.b16 %v4165
    %v4301 = vunpack.c.l.b16 %v4166
    %v4302 = vunpack.c.l.b16 %v4167
    %v4303 = vunpack.c.l.b16 %v4168
    %v4304 = vunpack.c.l.b16 %v4169
    %v4305 = vunpack.c.l.b16 %v4170
    %v4306 = vunpack.c.l.b16 %v4171
    %v4307 = vunpack.c.l.b16 %v4172
    %v4308 = vunpack.c.l.b16 %v4173
    %v4309 = vunpack.c.l.b16 %v4174
    %v4310 = vunpack.c.l.b16 %v4175
    %v4311 = vunpack.c.l.b16 %v4176
    %v4312 = vunpack.c.l.b16 %v4177
    %v4313 = vunpack.c.l.b16 %v4178
    %v4314 = vunpack.c.l.b16 %v4179
    %v4315 = vunpack.c.l.b16 %v4180
    %v4316 = vunpack.c.l.b16 %v4181
    %v4317 = vunpack.c.l.b16 %v4182
    %v4318 = vunpack.c.l.b16 %v4183
    %v4319 = vunpack.c.l.b16 %v4184
    %v4320 = vunpack.c.l.b16 %v4185
    %v4321 = vunpack.c.l.b16 %v4186
    %v4322 = vunpack.c.l.b16 %v4187
    %v4323 = vunpack.c.l.b16 %v4188
    %v4324 = vunpack.c.l.b16 %v4189
    %v4325 = vunpack.c.l.b16 %v4190
    %v4326 = vunpack.c.l.b16 %v4191
    %v4327 = vunpack.c.l.b16 %v4192
    %v4328 = vunpack.c.l.b16 %v4193
    %v4329 = vunpack.c.l.b16 %v4194
    %v4330 = vunpack.c.l.b16 %v4195
    %v4331 = vunpack.c.l.b16 %v4196
    %v4332 = vunpack.c.l.b16 %v4197
    %v4333 = vunpack.c.l.b16 %v4198
    %v4334 = vunpack.c.l.b16 %v4199
    %v4335 = vunpack.c.l.b16 %v4200
    %v4336 = vunpack.c.l.b16 %v4201
    %v4337 = vunpack.c.l.b16 %v4202
    %v4338 = vunpack.c.l.b16 %v4203
    %v4339 = vunpack.c.l.b16 %v4204
    %v4340 = vunpack.c.l.b16 %v4205
    %v4341 = vunpack.c.l.b16 %v4206
    %v4342 = vunpack.c.l.b16 %v4207
    %v4343 = vunpack.c.l.b16 %v4208
    %v4344 = vunpack.c.l.b16 %v4209
    %v4345 = vunpack.c.l.b16 %v4210
    %v4346 = vunpack.c.l.b16 %v4211
    %v4347 = vunpack.c.l.b16 %v4212
    %v4348 = vunpack.c.l.b16 %v4213
    %v4349 = vunpack.c.l.b16 %v4214
    %v4350 = vunpack.c.l.b16 %v4215
    %v4351 = vunpack.c.l.b16 %v4216
    %v4352 = vunpack.c.l.b16 %v4217
    %v4353 = vunpack.c.l.b16 %v4218
    %v4354 = vunpack.c.l.b16 %v4219
    %v4355 = vunpack.c.l.b16 %v4220
    %v4356 = vunpack.c.l.b16 %v4221
    %v4357 = vunpack.c.l.b16 %v4222
    %v4358 = vpack.c.b16 %v4295, %v4294
    %v4359 = vpack.c.b16 %v4297, %v4296
    %v4360 = vpack.c.b16 %v4299, %v4298
    %v4361 = vpack.c.b16 %v4301, %v4300
    %v4362 = vpack.c.b16 %v4303, %v4302
    %v4363 = vpack.c.b16 %v4305, %v4304
    %v4364 = vpack.c.b16 %v4307, %v4306
    %v4365 = vpack.c.b16 %v4309, %v4308
    %v4366 = vpack.c.b16 %v4311, %v4310
    %v4367 = vpack.c.b16 %v4313, %v4312
    %v4368 = vpack.c.b16 %v4315, %v4314
    %v4369 = vpack.c.b16 %v4317, %v4316
    %v4370 = vpack.c.b16 %v4319, %v4318
    %v4371 = vpack.c.b16 %v4321, %v4320
    %v4372 = vpack.c.b16 %v4323, %v4322
    %v4373 = vpack.c.b16 %v4325, %v4324
    %v4374 = vpack.c.b16 %v4327, %v4326
    %v4375 = vpack.c.b16 %v4329, %v4328
    %v4376 = vpack.c.b16 %v4331, %v4330
    %v4377 = vpack.c.b16 %v4333, %v4332
    %v4378 = vpack.c.b16 %v4335, %v4334
    %v4379 = vpack.c.b16 %v4337, %v4336
    %v4380 = vpack.c.b16 %v4339, %v4338
    %v4381 = vpack.c.b16 %v4341, %v4340
    %v4382 = vpack.c.b16 %v4343, %v4342
    %v4383 = vpack.c.b16 %v4345, %v4344
    %v4384 = vpack.c.b16 %v4347, %v4346
    %v4385 = vpack.c.b16 %v4349, %v4348
    %v4386 = vpack.c.b16 %v4351, %v4350
    %v4387 = vpack.c.b16 %v4353, %v4352
    %v4388 = vpack.c.b16 %v4355, %v4354
    %v4389 = vpack.c.b16 %v4357, %v4356
    %4422 = vmatprep.subr.bf16.mxu0 0
    %4423 = vmatpush1.bf16.msra.mxu0 %v4358
    %4424 = vmatprep.subr.bf16.mxu0 0
    %4425 = vmatpush1.bf16.msra.mxu0 %v4359
    %4426 = vmatprep.subr.bf16.mxu0 0
    %4427 = vmatpush1.bf16.msra.mxu0 %v4360
    %4428 = vmatprep.subr.bf16.mxu0 0
    %4429 = vmatpush1.bf16.msra.mxu0 %v4361
    %4430 = vmatprep.subr.bf16.mxu0 0
    %4431 = vmatpush1.bf16.msra.mxu0 %v4362
    %4432 = vmatprep.subr.bf16.mxu0 0
    %4433 = vmatpush1.bf16.msra.mxu0 %v4363
    %4434 = vmatprep.subr.bf16.mxu0 0
    %4435 = vmatpush1.bf16.msra.mxu0 %v4364
    %4436 = vmatprep.subr.bf16.mxu0 0
    %4437 = vmatpush1.bf16.msra.mxu0 %v4365
    %4438 = vmatprep.subr.bf16.mxu0 0
    %4439 = vmatpush1.bf16.msra.mxu0 %v4366
    %4440 = vmatprep.subr.bf16.mxu0 0
    %4441 = vmatpush1.bf16.msra.mxu0 %v4367
    %4442 = vmatprep.subr.bf16.mxu0 0
    %4443 = vmatpush1.bf16.msra.mxu0 %v4368
    %4444 = vmatprep.subr.bf16.mxu0 0
    %4445 = vmatpush1.bf16.msra.mxu0 %v4369
    %4446 = vmatprep.subr.bf16.mxu0 0
    %4447 = vmatpush1.bf16.msra.mxu0 %v4370
    %4448 = vmatprep.subr.bf16.mxu0 0
    %4449 = vmatpush1.bf16.msra.mxu0 %v4371
    %4450 = vmatprep.subr.bf16.mxu0 0
    %4451 = vmatpush1.bf16.msra.mxu0 %v4372
    %4452 = vmatprep.subr.bf16.mxu0 0
    %4453 = vmatpush1.bf16.msra.mxu0 %v4373
    %4454 = vmatprep.mubr.bf16.mxu0 %v3936
    %4455 = vmatmul.mubr.bf16.gmra.mrb[0].mxu0 %v3935
    %v4456 = vpop.f32.mrb[0].mxu0
    %v4457 = vadd.f32 %v4228, %v4456
    %v4458 = vpop.f32.mrb[0].mxu0
    %v4459 = vpop.f32.mrb[0].mxu0
    %v4460 = vadd.f32 %v4228, %v4459
    %v4461 = vpop.f32.mrb[0].mxu0
    %4462 = vmatprep.mubr.bf16.mxu0 %v3940
    %4463 = vmatmul.mubr.bf16.gmra.mrb[0].mxu0 %v3939
    %v4464 = vpop.f32.mrb[0].mxu0
    %v4465 = vadd.f32 %v4228, %v4464
    %v4466 = vpop.f32.mrb[0].mxu0
    %v4467 = vpop.f32.mrb[0].mxu0
    %v4468 = vadd.f32 %v4228, %v4467
    %v4469 = vpop.f32.mrb[0].mxu0
    %4470 = vmatprep.mubr.bf16.mxu0 %v3944
    %4471 = vmatmul.mubr.bf16.gmra.mrb[0].mxu0 %v3943
    %v4472 = vpop.f32.mrb[0].mxu0
    %v4473 = vadd.f32 %v4228, %v4472
    %v4474 = vpop.f32.mrb[0].mxu0
    %v4475 = vpop.f32.mrb[0].mxu0
    %v4476 = vadd.f32 %v4228, %v4475
    %v4477 = vpop.f32.mrb[0].mxu0
    %4478 = vmatprep.mubr.bf16.mxu0 %v3948
    %4479 = vmatmul.mubr.bf16.gmra.mrb[0].mxu0 %v3947
    %v4480 = vpop.f32.mrb[0].mxu0
    %v4481 = vadd.f32 %v4228, %v4480
    %v4482 = vpop.f32.mrb[0].mxu0
    %v4483 = vpop.f32.mrb[0].mxu0
    %v4484 = vadd.f32 %v4228, %v4483
    %v4485 = vpop.f32.mrb[0].mxu0
    %4486 = vmatprep.mubr.bf16.mxu0 %v3952
    %4487 = vmatmul.mubr.bf16.gmra.mrb[0].mxu0 %v3951
    %v4488 = vpop.f32.mrb[0].mxu0
    %v4489 = vadd.f32 %v4228, %v4488
    %v4490 = vpop.f32.mrb[0].mxu0
    %v4491 = vpop.f32.mrb[0].mxu0
    %v4492 = vadd.f32 %v4228, %v4491
    %v4493 = vpop.f32.mrb[0].mxu0
    %4494 = vmatprep.mubr.bf16.mxu0 %v3956
    %4495 = vmatmul.mubr.bf16.gmra.mrb[0].mxu0 %v3955
    %v4496 = vpop.f32.mrb[0].mxu0
    %v4497 = vadd.f32 %v4228, %v4496
    %v4498 = vpop.f32.mrb[0].mxu0
    %v4499 = vpop.f32.mrb[0].mxu0
    %v4500 = vadd.f32 %v4228, %v4499
    %v4501 = vpop.f32.mrb[0].mxu0
    %4502 = vmatprep.mubr.bf16.mxu0 %v3960
    %4503 = vmatmul.mubr.bf16.gmra.mrb[0].mxu0 %v3959
    %v4504 = vpop.f32.mrb[0].mxu0
    %v4505 = vadd.f32 %v4228, %v4504
    %v4506 = vpop.f32.mrb[0].mxu0
    %v4507 = vpop.f32.mrb[0].mxu0
    %v4508 = vadd.f32 %v4228, %v4507
    %v4509 = vpop.f32.mrb[0].mxu0
    %4510 = vmatprep.mubr.bf16.mxu0 %v3964
    %4511 = vmatmul.mubr.bf16.gmra.mrb[0].mxu0 %v3963
    %v4512 = vpop.f32.mrb[0].mxu0
    %v4513 = vadd.f32 %v4228, %v4512
    %v4514 = vpop.f32.mrb[0].mxu0
    %v4515 = vpop.f32.mrb[0].mxu0
    %v4516 = vadd.f32 %v4228, %v4515
    %v4517 = vpop.f32.mrb[0].mxu0
    %4518 = vdwg.mxu0
    %4519 = vmatprep.subr.bf16.mxu0 0
    %4520 = vmatpush1.bf16.msra.mxu0 %v4374
    %4521 = vmatprep.subr.bf16.mxu0 0
    %4522 = vmatpush1.bf16.msra.mxu0 %v4375
    %4523 = vmatprep.subr.bf16.mxu0 0
    %4524 = vmatpush1.bf16.msra.mxu0 %v4376
    %4525 = vmatprep.subr.bf16.mxu0 0
    %4526 = vmatpush1.bf16.msra.mxu0 %v4377
    %4527 = vmatprep.subr.bf16.mxu0 0
    %4528 = vmatpush1.bf16.msra.mxu0 %v4378
    %4529 = vmatprep.subr.bf16.mxu0 0
    %4530 = vmatpush1.bf16.msra.mxu0 %v4379
    %4531 = vmatprep.subr.bf16.mxu0 0
    %4532 = vmatpush1.bf16.msra.mxu0 %v4380
    %4533 = vmatprep.subr.bf16.mxu0 0
    %4534 = vmatpush1.bf16.msra.mxu0 %v4381
    %4535 = vmatprep.subr.bf16.mxu0 0
    %4536 = vmatpush1.bf16.msra.mxu0 %v4382
    %4537 = vmatprep.subr.bf16.mxu0 0
    %4538 = vmatpush1.bf16.msra.mxu0 %v4383
    %4539 = vmatprep.subr.bf16.mxu0 0
    %4540 = vmatpush1.bf16.msra.mxu0 %v4384
    %4541 = vmatprep.subr.bf16.mxu0 0
    %4542 = vmatpush1.bf16.msra.mxu0 %v4385
    %4543 = vmatprep.subr.bf16.mxu0 0
    %4544 = vmatpush1.bf16.msra.mxu0 %v4386
    %4545 = vmatprep.subr.bf16.mxu0 0
    %4546 = vmatpush1.bf16.msra.mxu0 %v4387
    %4547 = vmatprep.subr.bf16.mxu0 0
    %4548 = vmatpush1.bf16.msra.mxu0 %v4388
    %4549 = vmatprep.subr.bf16.mxu0 0
    %4550 = vmatpush1.bf16.msra.mxu0 %v4389
    %4551 = vmatprep.mubr.bf16.mxu0 %v3938
    %4552 = vmatmul.mubr.bf16.gmra.mrb[0].mxu0 %v3937
    %v4553 = vpop.f32.mrb[0].mxu0
    %v4554 = vadd.f32 %v4457, %v4553
    %v4555 = vpop.f32.mrb[0].mxu0
    %v4556 = vpop.f32.mrb[0].mxu0
    %v4557 = vadd.f32 %v4460, %v4556
    %v4558 = vpop.f32.mrb[0].mxu0
    %4559 = vmatprep.mubr.bf16.mxu0 %v3942
    %4560 = vmatmul.mubr.bf16.gmra.mrb[0].mxu0 %v3941
    %v4561 = vpop.f32.mrb[0].mxu0
    %v4562 = vadd.f32 %v4465, %v4561
    %v4563 = vpop.f32.mrb[0].mxu0
    %v4564 = vpop.f32.mrb[0].mxu0
    %v4565 = vadd.f32 %v4468, %v4564
    %v4566 = vpop.f32.mrb[0].mxu0
    %4567 = vmatprep.mubr.bf16.mxu0 %v3946
    %4568 = vmatmul.mubr.bf16.gmra.mrb[0].mxu0 %v3945
    %v4569 = vpop.f32.mrb[0].mxu0
    %v4570 = vadd.f32 %v4473, %v4569
    %v4571 = vpop.f32.mrb[0].mxu0
    %v4572 = vpop.f32.mrb[0].mxu0
    %v4573 = vadd.f32 %v4476, %v4572
    %v4574 = vpop.f32.mrb[0].mxu0
    %4575 = vmatprep.mubr.bf16.mxu0 %v3950
    %4576 = vmatmul.mubr.bf16.gmra.mrb[0].mxu0 %v3949
    %v4577 = vpop.f32.mrb[0].mxu0
    %v4578 = vadd.f32 %v4481, %v4577
    %v4579 = vpop.f32.mrb[0].mxu0
    %v4580 = vpop.f32.mrb[0].mxu0
    %v4581 = vadd.f32 %v4484, %v4580
    %v4582 = vpop.f32.mrb[0].mxu0
    %4583 = vmatprep.mubr.bf16.mxu0 %v3954
    %4584 = vmatmul.mubr.bf16.gmra.mrb[0].mxu0 %v3953
    %v4585 = vpop.f32.mrb[0].mxu0
    %v4586 = vadd.f32 %v4489, %v4585
    %v4587 = vpop.f32.mrb[0].mxu0
    %v4588 = vpop.f32.mrb[0].mxu0
    %v4589 = vadd.f32 %v4492, %v4588
    %v4590 = vpop.f32.mrb[0].mxu0
    %4591 = vmatprep.mubr.bf16.mxu0 %v3958
    %4592 = vmatmul.mubr.bf16.gmra.mrb[0].mxu0 %v3957
    %v4593 = vpop.f32.mrb[0].mxu0
    %v4594 = vadd.f32 %v4497, %v4593
    %v4595 = vpop.f32.mrb[0].mxu0
    %v4596 = vpop.f32.mrb[0].mxu0
    %v4597 = vadd.f32 %v4500, %v4596
    %v4598 = vpop.f32.mrb[0].mxu0
    %4599 = vmatprep.mubr.bf16.mxu0 %v3962
    %4600 = vmatmul.mubr.bf16.gmra.mrb[0].mxu0 %v3961
    %v4601 = vpop.f32.mrb[0].mxu0
    %v4602 = vadd.f32 %v4505, %v4601
    %v4603 = vpop.f32.mrb[0].mxu0
    %v4604 = vpop.f32.mrb[0].mxu0
    %v4605 = vadd.f32 %v4508, %v4604
    %v4606 = vpop.f32.mrb[0].mxu0
    %4607 = vmatprep.mubr.bf16.mxu0 %v3966
    %4608 = vmatmul.mubr.bf16.gmra.mrb[0].mxu0 %v3965
    %v4609 = vpop.f32.mrb[0].mxu0
    %v4610 = vadd.f32 %v4513, %v4609
    %v4611 = vpop.f32.mrb[0].mxu0
    %v4612 = vpop.f32.mrb[0].mxu0
    %v4613 = vadd.f32 %v4516, %v4612
    %v4614 = vpop.f32.mrb[0].mxu0
    %4615 = vdwg.mxu0
    %v4616 = vlaneseq
    %v4617 = vand.u32 %v4616, 127
    %vm4618 = vcmp.lt.s32.totalorder %v4617, 10
    %v4619 = vsel %vm4618, %v4554, -1e+30
    %v4620 = vsel %vm4618, %v4557, -1e+30
    %v4621 = vsel %vm4618, %v4562, -1e+30
    %v4622 = vsel %vm4618, %v4565, -1e+30
    %v4623 = vsel %vm4618, %v4570, -1e+30
    %v4624 = vsel %vm4618, %v4573, -1e+30
    %v4625 = vsel %vm4618, %v4578, -1e+30
    %v4626 = vsel %vm4618, %v4581, -1e+30
    %v4627 = vsel %vm4618, %v4586, -1e+30
    %v4628 = vsel %vm4618, %v4589, -1e+30
    %v4629 = vsel %vm4618, %v4594, -1e+30
    %v4630 = vsel %vm4618, %v4597, -1e+30
    %v4631 = vsel %vm4618, %v4602, -1e+30
    %v4632 = vsel %vm4618, %v4605, -1e+30
    %v4633 = vsel %vm4618, %v4610, -1e+30
    %v4634 = vsel %vm4618, %v4613, -1e+30
    %4635 = vmax.xlane.f32.xlu0 %v4619
    %v4636 = vpop.xlane.xlu0 %4635
    %4637 = vmax.xlane.f32.xlu0 %v4620
    %v4638 = vpop.xlane.xlu0 %4637
    %4639 = vmax.xlane.f32.xlu0 %v4621
    %v4640 = vpop.xlane.xlu0 %4639
    %4641 = vmax.xlane.f32.xlu0 %v4622
    %v4642 = vpop.xlane.xlu0 %4641
    %4643 = vmax.xlane.f32.xlu0 %v4623
    %v4644 = vpop.xlane.xlu0 %4643
    %4645 = vmax.xlane.f32.xlu0 %v4624
    %v4646 = vpop.xlane.xlu0 %4645
    %4647 = vmax.xlane.f32.xlu0 %v4625
    %v4648 = vpop.xlane.xlu0 %4647
    %4649 = vmax.xlane.f32.xlu0 %v4626
    %v4650 = vpop.xlane.xlu0 %4649
    %4651 = vmax.xlane.f32.xlu0 %v4627
    %v4652 = vpop.xlane.xlu0 %4651
    %4653 = vmax.xlane.f32.xlu0 %v4628
    %v4654 = vpop.xlane.xlu0 %4653
    %4655 = vmax.xlane.f32.xlu0 %v4629
    %v4656 = vpop.xlane.xlu0 %4655
    %4657 = vmax.xlane.f32.xlu0 %v4630
    %v4658 = vpop.xlane.xlu0 %4657
    %4659 = vmax.xlane.f32.xlu0 %v4631
    %v4660 = vpop.xlane.xlu0 %4659
    %4661 = vmax.xlane.f32.xlu0 %v4632
    %v4662 = vpop.xlane.xlu0 %4661
    %4663 = vmax.xlane.f32.xlu0 %v4633
    %v4664 = vpop.xlane.xlu0 %4663
    %4665 = vmax.xlane.f32.xlu0 %v4634
    %v4666 = vpop.xlane.xlu0 %4665
    %v4667 = vsub.f32 %v4619, %v4636
    %v4668 = vsub.f32 %v4620, %v4638
    %v4669 = vsub.f32 %v4621, %v4640
    %v4670 = vsub.f32 %v4622, %v4642
    %v4671 = vsub.f32 %v4623, %v4644
    %v4672 = vsub.f32 %v4624, %v4646
    %v4673 = vsub.f32 %v4625, %v4648
    %v4674 = vsub.f32 %v4626, %v4650
    %v4675 = vsub.f32 %v4627, %v4652
    %v4676 = vsub.f32 %v4628, %v4654
    %v4677 = vsub.f32 %v4629, %v4656
    %v4678 = vsub.f32 %v4630, %v4658
    %v4679 = vsub.f32 %v4631, %v4660
    %v4680 = vsub.f32 %v4632, %v4662
    %v4681 = vsub.f32 %v4633, %v4664
    %v4682 = vsub.f32 %v4634, %v4666
    %v4683 = vmul.f32 %v4667, 1.442695
    %v4684 = vpow.pop %v4683
    %v4685 = vmul.f32 %v4668, 1.442695
    %v4686 = vpow.pop %v4685
    %v4687 = vmul.f32 %v4669, 1.442695
    %v4688 = vpow.pop %v4687
    %v4689 = vmul.f32 %v4670, 1.442695
    %v4690 = vpow.pop %v4689
    %v4691 = vmul.f32 %v4671, 1.442695
    %v4692 = vpow.pop %v4691
    %v4693 = vmul.f32 %v4672, 1.442695
    %v4694 = vpow.pop %v4693
    %v4695 = vmul.f32 %v4673, 1.442695
    %v4696 = vpow.pop %v4695
    %v4697 = vmul.f32 %v4674, 1.442695
    %v4698 = vpow.pop %v4697
    %v4699 = vmul.f32 %v4675, 1.442695
    %v4700 = vpow.pop %v4699
    %v4701 = vmul.f32 %v4676, 1.442695
    %v4702 = vpow.pop %v4701
    %v4703 = vmul.f32 %v4677, 1.442695
    %v4704 = vpow.pop %v4703
    %v4705 = vmul.f32 %v4678, 1.442695
    %v4706 = vpow.pop %v4705
    %v4707 = vmul.f32 %v4679, 1.442695
    %v4708 = vpow.pop %v4707
    %v4709 = vmul.f32 %v4680, 1.442695
    %v4710 = vpow.pop %v4709
    %v4711 = vmul.f32 %v4681, 1.442695
    %v4712 = vpow.pop %v4711
    %v4713 = vmul.f32 %v4682, 1.442695
    %v4714 = vpow.pop %v4713
    %4715 = vadd.xlane.f32.xlu0 %v4684
    %v4716 = vpop.xlane.xlu0 %4715
    %4717 = vadd.xlane.f32.xlu0 %v4686
    %v4718 = vpop.xlane.xlu0 %4717
    %4719 = vadd.xlane.f32.xlu0 %v4688
    %v4720 = vpop.xlane.xlu0 %4719
    %4721 = vadd.xlane.f32.xlu0 %v4690
    %v4722 = vpop.xlane.xlu0 %4721
    %4723 = vadd.xlane.f32.xlu0 %v4692
    %v4724 = vpop.xlane.xlu0 %4723
    %4725 = vadd.xlane.f32.xlu0 %v4694
    %v4726 = vpop.xlane.xlu0 %4725
    %4727 = vadd.xlane.f32.xlu0 %v4696
    %v4728 = vpop.xlane.xlu0 %4727
    %4729 = vadd.xlane.f32.xlu0 %v4698
    %v4730 = vpop.xlane.xlu0 %4729
    %4731 = vadd.xlane.f32.xlu0 %v4700
    %v4732 = vpop.xlane.xlu0 %4731
    %4733 = vadd.xlane.f32.xlu0 %v4702
    %v4734 = vpop.xlane.xlu0 %4733
    %4735 = vadd.xlane.f32.xlu0 %v4704
    %v4736 = vpop.xlane.xlu0 %4735
    %4737 = vadd.xlane.f32.xlu0 %v4706
    %v4738 = vpop.xlane.xlu0 %4737
    %4739 = vadd.xlane.f32.xlu0 %v4708
    %v4740 = vpop.xlane.xlu0 %4739
    %4741 = vadd.xlane.f32.xlu0 %v4710
    %v4742 = vpop.xlane.xlu0 %4741
    %4743 = vadd.xlane.f32.xlu0 %v4712
    %v4744 = vpop.xlane.xlu0 %4743
    %4745 = vadd.xlane.f32.xlu0 %v4714
    %v4746 = vpop.xlane.xlu0 %4745
    %v4747 = vlog2.pop %v4716
    %v4748 = vmul.f32 %v4747, 0.6931472
    %v4749 = vlog2.pop %v4718
    %v4750 = vmul.f32 %v4749, 0.6931472
    %v4751 = vlog2.pop %v4720
    %v4752 = vmul.f32 %v4751, 0.6931472
    %v4753 = vlog2.pop %v4722
    %v4754 = vmul.f32 %v4753, 0.6931472
    %v4755 = vlog2.pop %v4724
    %v4756 = vmul.f32 %v4755, 0.6931472
    %v4757 = vlog2.pop %v4726
    %v4758 = vmul.f32 %v4757, 0.6931472
    %v4759 = vlog2.pop %v4728
    %v4760 = vmul.f32 %v4759, 0.6931472
    %v4761 = vlog2.pop %v4730
    %v4762 = vmul.f32 %v4761, 0.6931472
    %v4763 = vlog2.pop %v4732
    %v4764 = vmul.f32 %v4763, 0.6931472
    %v4765 = vlog2.pop %v4734
    %v4766 = vmul.f32 %v4765, 0.6931472
    %v4767 = vlog2.pop %v4736
    %v4768 = vmul.f32 %v4767, 0.6931472
    %v4769 = vlog2.pop %v4738
    %v4770 = vmul.f32 %v4769, 0.6931472
    %v4771 = vlog2.pop %v4740
    %v4772 = vmul.f32 %v4771, 0.6931472
    %v4773 = vlog2.pop %v4742
    %v4774 = vmul.f32 %v4773, 0.6931472
    %v4775 = vlog2.pop %v4744
    %v4776 = vmul.f32 %v4775, 0.6931472
    %v4777 = vlog2.pop %v4746
    %v4778 = vmul.f32 %v4777, 0.6931472
    %v4779 = vadd.f32 %v4636, %v4748
    %v4780 = vadd.f32 %v4638, %v4750
    %v4781 = vadd.f32 %v4640, %v4752
    %v4782 = vadd.f32 %v4642, %v4754
    %v4783 = vadd.f32 %v4644, %v4756
    %v4784 = vadd.f32 %v4646, %v4758
    %v4785 = vadd.f32 %v4648, %v4760
    %v4786 = vadd.f32 %v4650, %v4762
    %v4787 = vadd.f32 %v4652, %v4764
    %v4788 = vadd.f32 %v4654, %v4766
    %v4789 = vadd.f32 %v4656, %v4768
    %v4790 = vadd.f32 %v4658, %v4770
    %v4791 = vadd.f32 %v4660, %v4772
    %v4792 = vadd.f32 %v4662, %v4774
    %v4793 = vadd.f32 %v4664, %v4776
    %v4794 = vadd.f32 %v4666, %v4778
    %v4795 = vld [vmem:[%s7] sm:$0xff]
    %v4796 = vld [vmem:[%s7 + $0x8] sm:$0xff]
    %v4797 = vld [vmem:[%s7 + $0x10] sm:$0xff]
    %v4798 = vld [vmem:[%s7 + $0x18] sm:$0xff]
    %v4799 = vld [vmem:[%s7 + $0x20] sm:$0xff]
    %v4800 = vld [vmem:[%s7 + $0x28] sm:$0xff]
    %v4801 = vld [vmem:[%s7 + $0x30] sm:$0xff]
    %v4802 = vld [vmem:[%s7 + $0x38] sm:$0xff]
    %v4803 = vld [vmem:[%s7 + $0x40] sm:$0xff]
    %v4804 = vld [vmem:[%s7 + $0x48] sm:$0xff]
    %v4805 = vld [vmem:[%s7 + $0x50] sm:$0xff]
    %v4806 = vld [vmem:[%s7 + $0x58] sm:$0xff]
    %v4807 = vld [vmem:[%s7 + $0x60] sm:$0xff]
    %v4808 = vld [vmem:[%s7 + $0x68] sm:$0xff]
    %v4809 = vld [vmem:[%s7 + $0x70] sm:$0xff]
    %v4810 = vld [vmem:[%s7 + $0x78] sm:$0xff]
    %4811 = vset.pattern.permute.xlu0 0
    %4812 = vperm.xlu0 %4811, %v4795
    %v4813 = vpop.permute.xlu0 %4812
    %4814 = vset.pattern.permute.xlu0 0
    %4815 = vperm.xlu0 %4814, %v4796
    %v4816 = vpop.permute.xlu0 %4815
    %4817 = vset.pattern.permute.xlu0 0
    %4818 = vperm.xlu0 %4817, %v4797
    %v4819 = vpop.permute.xlu0 %4818
    %4820 = vset.pattern.permute.xlu0 0
    %4821 = vperm.xlu0 %4820, %v4798
    %v4822 = vpop.permute.xlu0 %4821
    %4823 = vset.pattern.permute.xlu0 0
    %4824 = vperm.xlu0 %4823, %v4799
    %v4825 = vpop.permute.xlu0 %4824
    %4826 = vset.pattern.permute.xlu0 0
    %4827 = vperm.xlu0 %4826, %v4800
    %v4828 = vpop.permute.xlu0 %4827
    %4829 = vset.pattern.permute.xlu0 0
    %4830 = vperm.xlu0 %4829, %v4801
    %v4831 = vpop.permute.xlu0 %4830
    %4832 = vset.pattern.permute.xlu0 0
    %4833 = vperm.xlu0 %4832, %v4802
    %v4834 = vpop.permute.xlu0 %4833
    %4835 = vset.pattern.permute.xlu0 0
    %4836 = vperm.xlu0 %4835, %v4803
    %v4837 = vpop.permute.xlu0 %4836
    %4838 = vset.pattern.permute.xlu0 0
    %4839 = vperm.xlu0 %4838, %v4804
    %v4840 = vpop.permute.xlu0 %4839
    %4841 = vset.pattern.permute.xlu0 0
    %4842 = vperm.xlu0 %4841, %v4805
    %v4843 = vpop.permute.xlu0 %4842
    %4844 = vset.pattern.permute.xlu0 0
    %4845 = vperm.xlu0 %4844, %v4806
    %v4846 = vpop.permute.xlu0 %4845
    %4847 = vset.pattern.permute.xlu0 0
    %4848 = vperm.xlu0 %4847, %v4807
    %v4849 = vpop.permute.xlu0 %4848
    %4850 = vset.pattern.permute.xlu0 0
    %4851 = vperm.xlu0 %4850, %v4808
    %v4852 = vpop.permute.xlu0 %4851
    %4853 = vset.pattern.permute.xlu0 0
    %4854 = vperm.xlu0 %4853, %v4809
    %v4855 = vpop.permute.xlu0 %4854
    %4856 = vset.pattern.permute.xlu0 0
    %4857 = vperm.xlu0 %4856, %v4810
    %v4858 = vpop.permute.xlu0 %4857
    %vm4859 = vcmp.eq.s32.totalorder %v4617, %v4813
    %vm4860 = vcmp.eq.s32.totalorder %v4617, %v4816
    %vm4861 = vcmp.eq.s32.totalorder %v4617, %v4819
    %vm4862 = vcmp.eq.s32.totalorder %v4617, %v4822
    %vm4863 = vcmp.eq.s32.totalorder %v4617, %v4825
    %vm4864 = vcmp.eq.s32.totalorder %v4617, %v4828
    %vm4865 = vcmp.eq.s32.totalorder %v4617, %v4831
    %vm4866 = vcmp.eq.s32.totalorder %v4617, %v4834
    %vm4867 = vcmp.eq.s32.totalorder %v4617, %v4837
    %vm4868 = vcmp.eq.s32.totalorder %v4617, %v4840
    %vm4869 = vcmp.eq.s32.totalorder %v4617, %v4843
    %vm4870 = vcmp.eq.s32.totalorder %v4617, %v4846
    %vm4871 = vcmp.eq.s32.totalorder %v4617, %v4849
    %vm4872 = vcmp.eq.s32.totalorder %v4617, %v4852
    %vm4873 = vcmp.eq.s32.totalorder %v4617, %v4855
    %vm4874 = vcmp.eq.s32.totalorder %v4617, %v4858
    %v4875 = vsel %vm4859, 1, 0
    %v4876 = vsel %vm4860, 1, 0
    %v4877 = vsel %vm4861, 1, 0
    %v4878 = vsel %vm4862, 1, 0
    %v4879 = vsel %vm4863, 1, 0
    %v4880 = vsel %vm4864, 1, 0
    %v4881 = vsel %vm4865, 1, 0
    %v4882 = vsel %vm4866, 1, 0
    %v4883 = vsel %vm4867, 1, 0
    %v4884 = vsel %vm4868, 1, 0
    %v4885 = vsel %vm4869, 1, 0
    %v4886 = vsel %vm4870, 1, 0
    %v4887 = vsel %vm4871, 1, 0
    %v4888 = vsel %vm4872, 1, 0
    %v4889 = vsel %vm4873, 1, 0
    %v4890 = vsel %vm4874, 1, 0
    %v4891 = vcvt.s32.f32 %v4875
    %v4892 = vcvt.s32.f32 %v4876
    %v4893 = vcvt.s32.f32 %v4877
    %v4894 = vcvt.s32.f32 %v4878
    %v4895 = vcvt.s32.f32 %v4879
    %v4896 = vcvt.s32.f32 %v4880
    %v4897 = vcvt.s32.f32 %v4881
    %v4898 = vcvt.s32.f32 %v4882
    %v4899 = vcvt.s32.f32 %v4883
    %v4900 = vcvt.s32.f32 %v4884
    %v4901 = vcvt.s32.f32 %v4885
    %v4902 = vcvt.s32.f32 %v4886
    %v4903 = vcvt.s32.f32 %v4887
    %v4904 = vcvt.s32.f32 %v4888
    %v4905 = vcvt.s32.f32 %v4889
    %v4906 = vcvt.s32.f32 %v4890
    %v4907 = vmul.f32 %v4554, %v4891
    %v4908 = vmul.f32 %v4557, %v4892
    %v4909 = vmul.f32 %v4562, %v4893
    %v4910 = vmul.f32 %v4565, %v4894
    %v4911 = vmul.f32 %v4570, %v4895
    %v4912 = vmul.f32 %v4573, %v4896
    %v4913 = vmul.f32 %v4578, %v4897
    %v4914 = vmul.f32 %v4581, %v4898
    %v4915 = vmul.f32 %v4586, %v4899
    %v4916 = vmul.f32 %v4589, %v4900
    %v4917 = vmul.f32 %v4594, %v4901
    %v4918 = vmul.f32 %v4597, %v4902
    %v4919 = vmul.f32 %v4602, %v4903
    %v4920 = vmul.f32 %v4605, %v4904
    %v4921 = vmul.f32 %v4610, %v4905
    %v4922 = vmul.f32 %v4613, %v4906
    %4923 = vadd.xlane.f32.xlu0 %v4907
    %v4924 = vpop.xlane.xlu0 %4923
    %4925 = vadd.xlane.f32.xlu0 %v4908
    %v4926 = vpop.xlane.xlu0 %4925
    %4927 = vadd.xlane.f32.xlu0 %v4909
    %v4928 = vpop.xlane.xlu0 %4927
    %4929 = vadd.xlane.f32.xlu0 %v4910
    %v4930 = vpop.xlane.xlu0 %4929
    %4931 = vadd.xlane.f32.xlu0 %v4911
    %v4932 = vpop.xlane.xlu0 %4931
    %4933 = vadd.xlane.f32.xlu0 %v4912
    %v4934 = vpop.xlane.xlu0 %4933
    %4935 = vadd.xlane.f32.xlu0 %v4913
    %v4936 = vpop.xlane.xlu0 %4935
    %4937 = vadd.xlane.f32.xlu0 %v4914
    %v4938 = vpop.xlane.xlu0 %4937
    %4939 = vadd.xlane.f32.xlu0 %v4915
    %v4940 = vpop.xlane.xlu0 %4939
    %4941 = vadd.xlane.f32.xlu0 %v4916
    %v4942 = vpop.xlane.xlu0 %4941
    %4943 = vadd.xlane.f32.xlu0 %v4917
    %v4944 = vpop.xlane.xlu0 %4943
    %4945 = vadd.xlane.f32.xlu0 %v4918
    %v4946 = vpop.xlane.xlu0 %4945
    %4947 = vadd.xlane.f32.xlu0 %v4919
    %v4948 = vpop.xlane.xlu0 %4947
    %4949 = vadd.xlane.f32.xlu0 %v4920
    %v4950 = vpop.xlane.xlu0 %4949
    %4951 = vadd.xlane.f32.xlu0 %v4921
    %v4952 = vpop.xlane.xlu0 %4951
    %4953 = vadd.xlane.f32.xlu0 %v4922
    %v4954 = vpop.xlane.xlu0 %4953
    %v4955 = vsub.f32 %v4779, %v4924
    %v4956 = vsub.f32 %v4780, %v4926
    %v4957 = vsub.f32 %v4781, %v4928
    %v4958 = vsub.f32 %v4782, %v4930
    %v4959 = vsub.f32 %v4783, %v4932
    %v4960 = vsub.f32 %v4784, %v4934
    %v4961 = vsub.f32 %v4785, %v4936
    %v4962 = vsub.f32 %v4786, %v4938
    %v4963 = vsub.f32 %v4787, %v4940
    %v4964 = vsub.f32 %v4788, %v4942
    %v4965 = vsub.f32 %v4789, %v4944
    %v4966 = vsub.f32 %v4790, %v4946
    %v4967 = vsub.f32 %v4791, %v4948
    %v4968 = vsub.f32 %v4792, %v4950
    %v4969 = vsub.f32 %v4793, %v4952
    %v4970 = vsub.f32 %v4794, %v4954
    %vm4971 = vcmp.eq.s32.totalorder %v4617, 10
    %v4972 = vsel %vm4971, %v4955, 0.0
    %v4973 = vsel %vm4971, %v4956, 0.0
    %v4974 = vsel %vm4971, %v4957, 0.0
    %v4975 = vsel %vm4971, %v4958, 0.0
    %v4976 = vsel %vm4971, %v4959, 0.0
    %v4977 = vsel %vm4971, %v4960, 0.0
    %v4978 = vsel %vm4971, %v4961, 0.0
    %v4979 = vsel %vm4971, %v4962, 0.0
    %v4980 = vsel %vm4971, %v4963, 0.0
    %v4981 = vsel %vm4971, %v4964, 0.0
    %v4982 = vsel %vm4971, %v4965, 0.0
    %v4983 = vsel %vm4971, %v4966, 0.0
    %v4984 = vsel %vm4971, %v4967, 0.0
    %v4985 = vsel %vm4971, %v4968, 0.0
    %v4986 = vsel %vm4971, %v4969, 0.0
    %v4987 = vsel %vm4971, %v4970, 0.0
    %v4988 = vsel %vm4618, %v4554, %v4972
    %v4989 = vsel %vm4618, %v4557, %v4973
    %v4990 = vsel %vm4618, %v4562, %v4974
    %v4991 = vsel %vm4618, %v4565, %v4975
    %v4992 = vsel %vm4618, %v4570, %v4976
    %v4993 = vsel %vm4618, %v4573, %v4977
    %v4994 = vsel %vm4618, %v4578, %v4978
    %v4995 = vsel %vm4618, %v4581, %v4979
    %v4996 = vsel %vm4618, %v4586, %v4980
    %v4997 = vsel %vm4618, %v4589, %v4981
    %v4998 = vsel %vm4618, %v4594, %v4982
    %v4999 = vsel %vm4618, %v4597, %v4983
    %v5000 = vsel %vm4618, %v4602, %v4984
    %v5001 = vsel %vm4618, %v4605, %v4985
    %v5002 = vsel %vm4618, %v4610, %v4986
    %v5003 = vsel %vm4618, %v4613, %v4987
    %5004 = vst [vmem:[#allocation7] sm:$0xff] %v4988
    %5005 = vst [vmem:[#allocation7 + $0x8] sm:$0xff] %v4989
    %5006 = vst [vmem:[#allocation7 + $0x10] sm:$0xff] %v4990
    %5007 = vst [vmem:[#allocation7 + $0x18] sm:$0xff] %v4991
    %5008 = vst [vmem:[#allocation7 + $0x20] sm:$0xff] %v4992
    %5009 = vst [vmem:[#allocation7 + $0x28] sm:$0xff] %v4993
    %5010 = vst [vmem:[#allocation7 + $0x30] sm:$0xff] %v4994
    %5011 = vst [vmem:[#allocation7 + $0x38] sm:$0xff] %v4995
    %5012 = vst [vmem:[#allocation7 + $0x40] sm:$0xff] %v4996
    %5013 = vst [vmem:[#allocation7 + $0x48] sm:$0xff] %v4997
    %5014 = vst [vmem:[#allocation7 + $0x50] sm:$0xff] %v4998
    %5015 = vst [vmem:[#allocation7 + $0x58] sm:$0xff] %v4999
    %5016 = vst [vmem:[#allocation7 + $0x60] sm:$0xff] %v5000
    %5017 = vst [vmem:[#allocation7 + $0x68] sm:$0xff] %v5001
    %5018 = vst [vmem:[#allocation7 + $0x70] sm:$0xff] %v5002
    %5019 = vst [vmem:[#allocation7 + $0x78] sm:$0xff] %v5003
    // Predicated region
    $region42: #{tpu_custom_call.1} parent=1 // pred_check
      _
    $region43: #{tpu_custom_call.1} parent=1 // pred_check_branch
      %5021 = sbr.rel (0) target = $region45
    $region44: #{tpu_custom_call.1} parent=1 // pred_region
      %s5023 = ssub.s32 2048, 2048
      %5024 = vsyncadd [#allocation4], %s5023
      %s5025 = sshll.u32 [#allocation7], 4
      %s5026 = int_to_ptr.vmem [resolvable:$true] %s5025
      %5031 = dma.vmem_to_hbm [thread:$0]  %s5026, 2048, %s8, [#allocation4], 128, 128, 8
    $region45: #{tpu_custom_call.1} parent=1 // pred_fallthru
      _
    // Predicated region
    $region46: #{tpu_custom_call.1} parent=1 // pred_check
      _
    $region47: #{tpu_custom_call.1} parent=1 // pred_check_branch
      %5033 = sbr.rel (0) target = $region49
    $region48: #{tpu_custom_call.1} parent=1 // pred_region
      %s5035 = ssub.s32 4096, 4096
      %5036 = vsyncadd [#allocation9], %s5035
      %s5037 = sshll.u32 [#allocation8], 4
      %s5038 = int_to_ptr.vmem [resolvable:$true] %s5037
      %5043 = dma.vmem_to_hbm [thread:$0]  %s5038, 4096, %s9, [#allocation9], 256, 256, 16
    $region49: #{tpu_custom_call.1} parent=1 // pred_fallthru
      _
    // Predicated region
    $region50: #{tpu_custom_call.1} parent=1 // pred_check
      _
    $region51: #{tpu_custom_call.1} parent=1 // pred_check_branch
      %5045 = sbr.rel (0) target = $region53
    $region52: #{tpu_custom_call.1} parent=1 // pred_region
      %5046 = dma.done [#allocation4], 2048
    $region53: #{tpu_custom_call.1} parent=1 // pred_fallthru
      _
    // Predicated region
    $region54: #{tpu_custom_call.1} parent=1 // pred_check
      _
    $region55: #{tpu_custom_call.1} parent=1 // pred_check_branch
      %5048 = sbr.rel (0) target = $region57
    $region56: #{tpu_custom_call.1} parent=1 // pred_region
      %5049 = dma.done [#allocation9], 4096
    $region57: #{tpu_custom_call.1} parent=1 // pred_fallthru
      _
    %5050 = vsyncpa [#allocation3], 1
    %5051 = vsyncpa [#allocation6], 1
    %5052 = vsyncpa [#allocation4], 1
    %5053 = vsyncpa [#allocation9], 1

</llo_original>
